<compile_context>
chip_gen: v7x
topology: tpu7x:2x2x1
jax: 0.10.0
libtpu: 0.0.40
codegen_flags: <defaults>
</compile_context>

<pallas_src>
import jax
import jax.numpy as jnp
from jax.experimental import pallas as pl
from jax.experimental.pallas import tpu as pltpu

EM_SIZE = 256
SEQ = 28
IN_DIM = SEQ * EM_SIZE      # 7168
HIDDEN = 128
GATES_FULL = 4 * HIDDEN     # 512  (PyTorch i,f,g,o)
GATES_P = 3 * HIDDEN        # 384  (packed i,g,o -- forget gate dropped)
TK = 3584                   # K-tile; grid = 7168 / 3584 = 2 steps
OUT_PAD = 128               # lane-padded fc3 output width (real width = 5)


def rnn_kernel(x_ref, w_ih_ref, b_ref, w1_ref, b1_ref, w2_ref, b2_ref,
               w3_ref, b3_ref, out_ref, acc_ref):
    """Grid: (IN_DIM // TK,) reduction over the 7168-wide input dim."""
    k = pl.program_id(0)

    @pl.when(k == 0)
    def _():
        # Fold the LSTM bias (b_ih + b_hh, packed i|g|o) into the acc init.
        acc_ref[...] = jnp.broadcast_to(b_ref[...], acc_ref.shape)

    # Accumulate x @ W_ih^T tile-by-tile on the MXU (bf16 in, f32 acc).
    acc_ref[...] += jnp.dot(x_ref[...], w_ih_ref[...],
                            preferred_element_type=jnp.float32)

    @pl.when(k == pl.num_programs(0) - 1)
    def _():
        gates = acc_ref[...]                              # (B, 384) f32
        i_g = jax.nn.sigmoid(gates[:, 0 * HIDDEN:1 * HIDDEN])
        g_g = jnp.tanh(gates[:, 1 * HIDDEN:2 * HIDDEN])
        o_g = jax.nn.sigmoid(gates[:, 2 * HIDDEN:3 * HIDDEN])
        c = i_g * g_g                                     # f * c0 == 0 omitted
        h = o_g * jnp.tanh(c)                             # (B, 128) LSTM output

        y = jnp.maximum(h, 0.0)                                            # F.relu
        y = jnp.dot(y, w1_ref[...], preferred_element_type=jnp.float32) + b1_ref[...]
        y = jnp.dot(y, w2_ref[...], preferred_element_type=jnp.float32) + b2_ref[...]
        y = jnp.maximum(y, 0.0)                                            # F.relu
        out_ref[...] = (jnp.dot(y, w3_ref[...], preferred_element_type=jnp.float32)
                        + b3_ref[...])                    # (B, 128), lanes 5..127 are 0


def rnn_forward(x_idx, params):
    # Embedding gather + reshape is glue (plain JAX); the matmul / gate /
    # MLP hot path runs inside the Pallas kernel.
    emb = jnp.take(params["emb"], x_idx, axis=0)          # (B, 28, 256) f32
    x = emb.reshape(-1, IN_DIM).astype(jnp.bfloat16)      # (B, 7168) bf16
    B = x.shape[0]
    nk = IN_DIM // TK                                     # 2

    vmem_spec = pl.BlockSpec(memory_space=pltpu.MemorySpace.VMEM)

    out_pad = pl.pallas_call(
        rnn_kernel,
        out_shape=jax.ShapeDtypeStruct((B, OUT_PAD), jnp.float32),
        grid_spec=pltpu.PrefetchScalarGridSpec(
            num_scalar_prefetch=0,
            grid=(nk,),
            in_specs=[
                pl.BlockSpec((B, TK), lambda k: (0, k)),           # x tile (bf16)
                pl.BlockSpec((TK, GATES_P), lambda k: (k, 0)),     # packed W_ih^T tile (bf16)
                vmem_spec,                                         # packed b_ih + b_hh (1, 384)
                vmem_spec,                                         # fc1 W^T (128, 64)
                vmem_spec,                                         # fc1 b   (1, 64)
                vmem_spec,                                         # fc2 W^T (64, 32)
                vmem_spec,                                         # fc2 b   (1, 32)
                vmem_spec,                                         # fc3 W^T padded (32, 128)
                vmem_spec,                                         # fc3 b   padded (1, 128)
            ],
            out_specs=pl.BlockSpec((B, OUT_PAD), lambda k: (0, 0)),
            scratch_shapes=[pltpu.VMEM((B, GATES_P), jnp.float32)],
        ),
        compiler_params=pltpu.CompilerParams(
            dimension_semantics=("arbitrary",),
            vmem_limit_bytes=32 * 1024 * 1024),
    )(x, params["w_ih_t_p"], params["b_lstm_p"], params["w1_t"], params["b1"],
      params["w2_t"], params["b2"], params["w3_t_pad"], params["b3_pad"])

    return out_pad[:, :5]


def init_params(key, word_bag_size):
    """Deterministic synthetic parameters matching PyTorch module shapes."""
    ks = jax.random.split(key, 10)

    def uniform(k, shape, fan_in):
        bound = 1.0 / jnp.sqrt(jnp.float32(fan_in))
        return jax.random.uniform(k, shape, jnp.float32, -bound, bound)

    emb = jax.random.normal(ks[0], (word_bag_size, EM_SIZE), jnp.float32) * 0.02
    w_ih = uniform(ks[1], (GATES_FULL, IN_DIM), HIDDEN)   # LSTM weight_ih_l0
    b_ih = uniform(ks[2], (GATES_FULL,), HIDDEN)
    b_hh = uniform(ks[3], (GATES_FULL,), HIDDEN)
    # NOTE: LSTM weight_hh_l0 is mathematically inert here (h0 == 0, seq_len == 1).
    w1 = uniform(ks[4], (64, HIDDEN), HIDDEN)
    b1 = uniform(ks[5], (64,), HIDDEN)
    w2 = uniform(ks[6], (32, 64), 64)
    b2 = uniform(ks[7], (32,), 64)
    w3 = uniform(ks[8], (5, 32), 32)
    b3 = uniform(ks[9], (5,), 32)

    # Pack i | g | o gate rows (PyTorch order i,f,g,o); forget gate dropped.
    keep = jnp.concatenate([jnp.arange(0 * HIDDEN, 1 * HIDDEN),
                            jnp.arange(2 * HIDDEN, 3 * HIDDEN),
                            jnp.arange(3 * HIDDEN, 4 * HIDDEN)])
    w_ih_p = w_ih[keep]                                   # (384, 7168)
    b_lstm_p = (b_ih + b_hh)[keep]                        # (384,)

    # Lane-pad fc3 to 128 output columns (zeros beyond column 4).
    w3_t_pad = jnp.zeros((32, OUT_PAD), jnp.float32).at[:, :5].set(w3.T)
    b3_pad = jnp.zeros((1, OUT_PAD), jnp.float32).at[:, :5].set(b3)

    return {
        "emb": emb,
        # Kernel operands (packed / bf16 / padded):
        "w_ih_t_p": w_ih_p.T.astype(jnp.bfloat16),        # (7168, 384) bf16
        "b_lstm_p": b_lstm_p.reshape(1, GATES_P),         # (1, 384) f32
        "w1_t": w1.T, "b1": b1.reshape(1, 64),
        "w2_t": w2.T, "b2": b2.reshape(1, 32),
        "w3_t_pad": w3_t_pad, "b3_pad": b3_pad,
        # Full-precision originals for the pure-JAX reference:
        "w_ih_t_full": w_ih.T,                            # (7168, 512) f32
        "b_lstm_full": (b_ih + b_hh).reshape(1, GATES_FULL),
        "w3_t": w3.T, "b3": b3.reshape(1, 5),
    }


def rnn_reference(x_idx, params):
    """Pure-JAX f32 reference of the same forward pass (full gate layout)."""
    x = jnp.take(params["emb"], x_idx, axis=0).reshape(-1, IN_DIM)
    gates = x @ params["w_ih_t_full"] + params["b_lstm_full"]
    i = jax.nn.sigmoid(gates[:, 0 * HIDDEN:1 * HIDDEN])
    # forget gate multiplies c0 == 0 -> no contribution
    g = jnp.tanh(gates[:, 2 * HIDDEN:3 * HIDDEN])
    o = jax.nn.sigmoid(gates[:, 3 * HIDDEN:4 * HIDDEN])
    h = o * jnp.tanh(i * g)
    y = jnp.maximum(h, 0.0) @ params["w1_t"] + params["b1"]
    y = y @ params["w2_t"] + params["b2"]
    y = jnp.maximum(y, 0.0) @ params["w3_t"] + params["b3"]
    return y


if __name__ == "__main__":
    word_bag_size = 50
    B = 8

    key = jax.random.PRNGKey(0)
    pkey, xkey = jax.random.split(key)
    params = init_params(pkey, word_bag_size)
    x_idx = jax.random.randint(xkey, (B, SEQ), 0, word_bag_size, dtype=jnp.int32)

    out = rnn_forward(x_idx, params)
    jax.block_until_ready(out)

    ref = rnn_reference(x_idx, params)
    assert out.shape == (B, 5), out.shape
    assert jnp.allclose(out, ref, atol=5e-3, rtol=5e-3), "mismatch vs JAX reference"
    print("KERNEL_OK")
</pallas_src>

<mosaic_0001>
module attributes {stable_mosaic.version = 11 : i64} {
  func.func @rnn_kernel(%arg0: i32, %arg1: memref<8x3584xbf16, #tpu.memory_space<vmem>>, %arg2: memref<3584x384xbf16, #tpu.memory_space<vmem>>, %arg3: memref<1x384xf32, #tpu.memory_space<vmem>>, %arg4: memref<128x64xf32, #tpu.memory_space<vmem>>, %arg5: memref<1x64xf32, #tpu.memory_space<vmem>>, %arg6: memref<64x32xf32, #tpu.memory_space<vmem>>, %arg7: memref<1x32xf32, #tpu.memory_space<vmem>>, %arg8: memref<32x128xf32, #tpu.memory_space<vmem>>, %arg9: memref<1x128xf32, #tpu.memory_space<vmem>>, %arg10: memref<8x128xf32, #tpu.memory_space<vmem>>, %arg11: memref<8x384xf32, #tpu.memory_space<vmem>>) attributes {dimension_semantics = [#tpu.dimension_semantics<arbitrary>], iteration_bounds = array<i64: 2>, scalar_prefetch = 0 : i64, scratch_operands = 1 : i64, tpu.core_type = #tpu.core_type<tc>, window_params = [{transform_indices = @transform_0, window_bounds = array<i64: 8, 3584>}, {transform_indices = @transform_1, window_bounds = array<i64: 3584, 384>}, {pipeline_mode = #tpu.pipeline_mode<synchronous>, transform_indices = @transform_2, window_bounds = array<i64: 1, 384>}, {pipeline_mode = #tpu.pipeline_mode<synchronous>, transform_indices = @transform_3, window_bounds = array<i64: 128, 64>}, {pipeline_mode = #tpu.pipeline_mode<synchronous>, transform_indices = @transform_4, window_bounds = array<i64: 1, 64>}, {pipeline_mode = #tpu.pipeline_mode<synchronous>, transform_indices = @transform_5, window_bounds = array<i64: 64, 32>}, {pipeline_mode = #tpu.pipeline_mode<synchronous>, transform_indices = @transform_6, window_bounds = array<i64: 1, 32>}, {pipeline_mode = #tpu.pipeline_mode<synchronous>, transform_indices = @transform_7, window_bounds = array<i64: 32, 128>}, {pipeline_mode = #tpu.pipeline_mode<synchronous>, transform_indices = @transform_8, window_bounds = array<i64: 1, 128>}, {pipeline_mode = #tpu.pipeline_mode<synchronous>, transform_indices = @transform_9, window_bounds = array<i64: 8, 128>}]} {
    %c0_i32 = arith.constant 0 : i32
    %0 = arith.cmpi eq, %arg0, %c0_i32 : i32
    %1 = arith.extui %0 : i1 to i32
    %c0_i32_0 = arith.constant 0 : i32
    %2 = arith.cmpi ne, %1, %c0_i32_0 : i32
    scf.if %2 {
      %c0_9 = arith.constant 0 : index
      %c0_10 = arith.constant 0 : index
      %12 = vector.load %arg3[%c0_9, %c0_10] : memref<1x384xf32, #tpu.memory_space<vmem>>, vector<1x384xf32>
      %13 = vector.shape_cast %12 : vector<1x384xf32> to vector<1x384xf32>
      %14 = vector.broadcast %13 : vector<1x384xf32> to vector<8x384xf32>
      %c0_11 = arith.constant 0 : index
      %c0_12 = arith.constant 0 : index
      %15 = vector.load %arg11[%c0_11, %c0_12] : memref<8x384xf32, #tpu.memory_space<vmem>>, vector<8x384xf32>
      tpu.vector_store %arg11[%c0_11, %c0_12], %14 {strides = array<i32>} : memref<8x384xf32, #tpu.memory_space<vmem>>, vector<8x384xf32>,
    } else {
    }
    %c0 = arith.constant 0 : index
    %c0_1 = arith.constant 0 : index
    %3 = vector.load %arg11[%c0, %c0_1] : memref<8x384xf32, #tpu.memory_space<vmem>>, vector<8x384xf32>
    %c0_2 = arith.constant 0 : index
    %c0_3 = arith.constant 0 : index
    %4 = vector.load %arg1[%c0_2, %c0_3] : memref<8x3584xbf16, #tpu.memory_space<vmem>>, vector<8x3584xbf16>
    %c0_4 = arith.constant 0 : index
    %c0_5 = arith.constant 0 : index
    %5 = vector.load %arg2[%c0_4, %c0_5] : memref<3584x384xbf16, #tpu.memory_space<vmem>>, vector<3584x384xbf16>
    %cst = arith.constant dense<0.000000e+00> : vector<8x384xf32>
    %6 = tpu.matmul %4, %5, %cst {dimension_numbers = #tpu.dot_dimension_numbers<[1], [0], [0], [1], [0, 0, 1, 1], [], []>} : vector<8x3584xbf16>, vector<3584x384xbf16>, vector<8x384xf32> -> vector<8x384xf32>
    %7 = arith.addf %3, %6 : vector<8x384xf32>
    %c0_6 = arith.constant 0 : index
    %c0_7 = arith.constant 0 : index
    %8 = vector.load %arg11[%c0_6, %c0_7] : memref<8x384xf32, #tpu.memory_space<vmem>>, vector<8x384xf32>
    tpu.vector_store %arg11[%c0_6, %c0_7], %7 {strides = array<i32>} : memref<8x384xf32, #tpu.memory_space<vmem>>, vector<8x384xf32>,
    %c1_i32 = arith.constant 1 : i32
    %9 = arith.cmpi eq, %arg0, %c1_i32 : i32
    %10 = arith.extui %9 : i1 to i32
    %c0_i32_8 = arith.constant 0 : i32
    %11 = arith.cmpi ne, %10, %c0_i32_8 : i32
    scf.if %11 {
      %c0_9 = arith.constant 0 : index
      %c0_10 = arith.constant 0 : index
      %12 = vector.load %arg11[%c0_9, %c0_10] : memref<8x384xf32, #tpu.memory_space<vmem>>, vector<8x384xf32>
      %13 = vector.extract_strided_slice %12 {offsets = [0, 0], sizes = [8, 128], strides = [1, 1]} : vector<8x384xf32> to vector<8x128xf32>
      %14 = arith.negf %13 : vector<8x128xf32>
      %15 = math.exp %14 : vector<8x128xf32>
      %cst_11 = arith.constant 1.000000e+00 : f32
      %16 = vector.broadcast %cst_11 : f32 to vector<8x128xf32>
      %17 = arith.addf %16, %15 : vector<8x128xf32>
      %18 = arith.divf %16, %17 : vector<8x128xf32>
      %19 = vector.extract_strided_slice %12 {offsets = [0, 128], sizes = [8, 128], strides = [1, 1]} : vector<8x384xf32> to vector<8x128xf32>
      %20 = math.tanh %19 : vector<8x128xf32>
      %21 = vector.extract_strided_slice %12 {offsets = [0, 256], sizes = [8, 128], strides = [1, 1]} : vector<8x384xf32> to vector<8x128xf32>
      %22 = arith.negf %21 : vector<8x128xf32>
      %23 = math.exp %22 : vector<8x128xf32>
      %cst_12 = arith.constant 1.000000e+00 : f32
      %24 = vector.broadcast %cst_12 : f32 to vector<8x128xf32>
      %25 = arith.addf %24, %23 : vector<8x128xf32>
      %26 = arith.divf %24, %25 : vector<8x128xf32>
      %27 = arith.mulf %18, %20 : vector<8x128xf32>
      %28 = math.tanh %27 : vector<8x128xf32>
      %29 = arith.mulf %26, %28 : vector<8x128xf32>
      %cst_13 = arith.constant 0.000000e+00 : f32
      %30 = vector.broadcast %cst_13 : f32 to vector<8x128xf32>
      %31 = arith.maximumf %29, %30 : vector<8x128xf32>
      %c0_14 = arith.constant 0 : index
      %c0_15 = arith.constant 0 : index
      %32 = vector.load %arg4[%c0_14, %c0_15] : memref<128x64xf32, #tpu.memory_space<vmem>>, vector<128x64xf32>
      %cst_16 = arith.constant dense<0.000000e+00> : vector<8x64xf32>
      %33 = tpu.matmul %31, %32, %cst_16 {dimension_numbers = #tpu.dot_dimension_numbers<[1], [0], [0], [1], [0, 0, 1, 1], [], []>} : vector<8x128xf32>, vector<128x64xf32>, vector<8x64xf32> -> vector<8x64xf32>
      %c0_17 = arith.constant 0 : index
      %c0_18 = arith.constant 0 : index
      %34 = vector.load %arg5[%c0_17, %c0_18] : memref<1x64xf32, #tpu.memory_space<vmem>>, vector<1x64xf32>
      %35 = vector.broadcast %34 : vector<1x64xf32> to vector<8x64xf32>
      %36 = arith.addf %33, %35 : vector<8x64xf32>
      %c0_19 = arith.constant 0 : index
      %c0_20 = arith.constant 0 : index
      %37 = vector.load %arg6[%c0_19, %c0_20] : memref<64x32xf32, #tpu.memory_space<vmem>>, vector<64x32xf32>
      %cst_21 = arith.constant dense<0.000000e+00> : vector<8x32xf32>
      %38 = tpu.matmul %36, %37, %cst_21 {dimension_numbers = #tpu.dot_dimension_numbers<[1], [0], [0], [1], [0, 0, 1, 1], [], []>} : vector<8x64xf32>, vector<64x32xf32>, vector<8x32xf32> -> vector<8x32xf32>
      %c0_22 = arith.constant 0 : index
      %c0_23 = arith.constant 0 : index
      %39 = vector.load %arg7[%c0_22, %c0_23] : memref<1x32xf32, #tpu.memory_space<vmem>>, vector<1x32xf32>
      %40 = vector.broadcast %39 : vector<1x32xf32> to vector<8x32xf32>
      %41 = arith.addf %38, %40 : vector<8x32xf32>
      %cst_24 = arith.constant 0.000000e+00 : f32
      %42 = vector.broadcast %cst_24 : f32 to vector<8x32xf32>
      %43 = arith.maximumf %41, %42 : vector<8x32xf32>
      %c0_25 = arith.constant 0 : index
      %c0_26 = arith.constant 0 : index
      %44 = vector.load %arg8[%c0_25, %c0_26] : memref<32x128xf32, #tpu.memory_space<vmem>>, vector<32x128xf32>
      %cst_27 = arith.constant dense<0.000000e+00> : vector<8x128xf32>
      %45 = tpu.matmul %43, %44, %cst_27 {dimension_numbers = #tpu.dot_dimension_numbers<[1], [0], [0], [1], [0, 0, 1, 1], [], []>} : vector<8x32xf32>, vector<32x128xf32>, vector<8x128xf32> -> vector<8x128xf32>
      %c0_28 = arith.constant 0 : index
      %c0_29 = arith.constant 0 : index
      %46 = vector.load %arg9[%c0_28, %c0_29] : memref<1x128xf32, #tpu.memory_space<vmem>>, vector<1x128xf32>
      %47 = vector.broadcast %46 : vector<1x128xf32> to vector<8x128xf32>
      %48 = arith.addf %45, %47 : vector<8x128xf32>
      %c0_30 = arith.constant 0 : index
      %c0_31 = arith.constant 0 : index
      %49 = vector.load %arg10[%c0_30, %c0_31] : memref<8x128xf32, #tpu.memory_space<vmem>>, vector<8x128xf32>
      tpu.vector_store %arg10[%c0_30, %c0_31], %48 {strides = array<i32>} : memref<8x128xf32, #tpu.memory_space<vmem>>, vector<8x128xf32>,
    } else {
    }
    return
  }
  func.func @transform_0(%arg0: i32) -> (i32, i32) {
    %c0_i32 = arith.constant 0 : i32
    %c0_i32_0 = arith.constant 0 : i32
    return %c0_i32, %arg0 : i32, i32
  }
  func.func @transform_1(%arg0: i32) -> (i32, i32) {
    %c0_i32 = arith.constant 0 : i32
    %c0_i32_0 = arith.constant 0 : i32
    return %arg0, %c0_i32 : i32, i32
  }
  func.func @transform_2(%arg0: i32) -> (i32, i32) {
    %c0_i32 = arith.constant 0 : i32
    %c0_i32_0 = arith.constant 0 : i32
    %c0_i32_1 = arith.constant 0 : i32
    return %c0_i32, %c0_i32_0 : i32, i32
  }
  func.func @transform_3(%arg0: i32) -> (i32, i32) {
    %c0_i32 = arith.constant 0 : i32
    %c0_i32_0 = arith.constant 0 : i32
    %c0_i32_1 = arith.constant 0 : i32
    return %c0_i32, %c0_i32_0 : i32, i32
  }
  func.func @transform_4(%arg0: i32) -> (i32, i32) {
    %c0_i32 = arith.constant 0 : i32
    %c0_i32_0 = arith.constant 0 : i32
    %c0_i32_1 = arith.constant 0 : i32
    return %c0_i32, %c0_i32_0 : i32, i32
  }
  func.func @transform_5(%arg0: i32) -> (i32, i32) {
    %c0_i32 = arith.constant 0 : i32
    %c0_i32_0 = arith.constant 0 : i32
    %c0_i32_1 = arith.constant 0 : i32
    return %c0_i32, %c0_i32_0 : i32, i32
  }
  func.func @transform_6(%arg0: i32) -> (i32, i32) {
    %c0_i32 = arith.constant 0 : i32
    %c0_i32_0 = arith.constant 0 : i32
    %c0_i32_1 = arith.constant 0 : i32
    return %c0_i32, %c0_i32_0 : i32, i32
  }
  func.func @transform_7(%arg0: i32) -> (i32, i32) {
    %c0_i32 = arith.constant 0 : i32
    %c0_i32_0 = arith.constant 0 : i32
    %c0_i32_1 = arith.constant 0 : i32
    return %c0_i32, %c0_i32_0 : i32, i32
  }
  func.func @transform_8(%arg0: i32) -> (i32, i32) {
    %c0_i32 = arith.constant 0 : i32
    %c0_i32_0 = arith.constant 0 : i32
    %c0_i32_1 = arith.constant 0 : i32
    return %c0_i32, %c0_i32_0 : i32, i32
  }
  func.func @transform_9(%arg0: i32) -> (i32, i32) {
    %c0_i32 = arith.constant 0 : i32
    %c0_i32_0 = arith.constant 0 : i32
    %c0_i32_1 = arith.constant 0 : i32
    return %c0_i32, %c0_i32_0 : i32, i32
  }
}

</mosaic_0001>

<llo_original>
// kernel: tpu_custom_call.1
$region0: #{tpu_custom_call.1}
  #allocation0 [shape = 'u32[]', space=smem, size = 0x4, offset = 0x4, fixed_abs, tag = 'smem constant byte address 0x4 - core index']
  #allocation1 [shape = 'u32[144,128]{1,0:T(1,128)}', space=vmem, size = 0x12000, scoped, tag = 'internal scratch']
  #allocation2 [shape = 'f32[8,384]{1,0:T(8,128)}', space=vmem, size = 0x3000, scoped, tag = 'scratch operand']
  %s0 = inlined_call_operand.hbm [shape: bf16[8,7168], index: 0, kind: input, shape index: {}]
  %s1 = inlined_call_operand.hbm [shape: bf16[7168,384], index: 1, kind: input, shape index: {}]
  %s2 = inlined_call_operand.hbm [shape: f32[1,384], index: 2, kind: input, shape index: {}]
  %s3 = inlined_call_operand.vmem [shape: f32[128,64], index: 3, kind: input, shape index: {}]
  %s4 = inlined_call_operand.hbm [shape: f32[1,64], index: 4, kind: input, shape index: {}]
  %s5 = inlined_call_operand.vmem [shape: f32[64,32], index: 5, kind: input, shape index: {}]
  %s6 = inlined_call_operand.hbm [shape: f32[1,32], index: 6, kind: input, shape index: {}]
  %s7 = inlined_call_operand.hbm [shape: f32[32,128], index: 7, kind: input, shape index: {}]
  %s8 = inlined_call_operand.hbm [shape: f32[1,128], index: 8, kind: input, shape index: {}]
  %s9 = inlined_call_operand.hbm [shape: f32[8,128], index: 9, kind: output, shape index: {}]
  %s10 = sld [smem:[#allocation0]]
  $region105: #{tpu_custom_call.1} parent=0
    _
  %s12 = ssub.s32 1, %s10
  %s13 = scalar_select 0, %s12, %s10
  $region1: #{tpu_custom_call.1} parent=0
    #allocation3 [shape = 'u8[114688]{0}', space=vmem, size = 0x1c000, scoped, tag = 'input window, operand 0']
    #allocation4 [shape = 's32[2]{0}', space=sflag, size = 0x8, scoped, tag = 'scoped memory for tpu_custom_call.1']
    #allocation5 [shape = 's32[2]{0}', space=sflag, size = 0x8, scoped, tag = 'scoped memory for tpu_custom_call.1']
    #allocation6 [shape = 'u8[5505024]{0}', space=vmem, size = 0x540000, scoped, tag = 'input window, operand 1']
    #allocation7 [shape = 's32[2]{0}', space=sflag, size = 0x8, scoped, tag = 'scoped memory for tpu_custom_call.1']
    #allocation8 [shape = 'u8[1536]{0}', space=vmem, size = 0x800, scoped, tag = 'input window, operand 2, single buffered']
    #allocation9 [shape = 'u8[512]{0}', space=vmem, size = 0x400, scoped, tag = 'input window, operand 4, single buffered']
    #allocation10 [shape = 's32[1]{0}', space=sflag, size = 0x4, scoped, tag = 'scoped memory for tpu_custom_call.1']
    #allocation11 [shape = 'u8[512]{0}', space=vmem, size = 0x400, scoped, tag = 'input window, operand 6, single buffered']
    #allocation12 [shape = 'u8[16384]{0}', space=vmem, size = 0x4000, scoped, tag = 'input window, operand 7, single buffered']
    #allocation13 [shape = 's32[1]{0}', space=sflag, size = 0x4, scoped, tag = 'scoped memory for tpu_custom_call.1']
    #allocation14 [shape = 'u8[512]{0}', space=vmem, size = 0x400, scoped, tag = 'input window, operand 8, single buffered']
    #allocation15 [shape = 'u8[4096]{0}', space=vmem, size = 0x1000, scoped, tag = 'output window, operand 0, single buffered']
    %14 = vsyncpa [#allocation4], 0
    %s15 = scalar_lea.sflag [#allocation4], 1
    %16 = vsyncpa %s15, 0
    %17 = vsyncpa [#allocation7], 0
    %s18 = scalar_lea.sflag [#allocation7], 1
    %19 = vsyncpa %s18, 0
    %20 = vsyncpa [#allocation10], 0
    %21 = vsyncpa [#allocation13], 0
    %22 = vsyncpa [#allocation5], 0
    loop: start=0, step=1, limit=4
    $region2: #{tpu_custom_call.1} parent=1 // loop_pre_header
      _
    $region3: #{tpu_custom_call.1} parent=1 // loop_header
      %s24 = sphi 0, %s28
      %p25 = scmp.ge.s32.totalorder %s24, 4
      %s34 = sphi 0, %s36
      %s37 = sphi 0, %s34
      %s38 = sphi 0, %s37
      %s54 = sphi 0, %s38
      %s60 = sphi 0, %s62
      %s63 = sphi 0, %s60
      %s64 = sphi 0, %s63
      %s80 = sphi 0, %s64
      %s84 = sphi 0, %s84
      %s86 = sphi 0, %s84
      %s87 = sphi 0, %s86
      %s101 = sphi 0, %s87
      %s105 = sphi 0, %s105
      %s107 = sphi 0, %s105
      %s108 = sphi 0, %s107
      %s122 = sphi 0, %s108
      %s126 = sphi 0, %s126
      %s128 = sphi 0, %s126
      %s129 = sphi 0, %s128
      %s143 = sphi 0, %s129
      %s147 = sphi 0, %s147
      %s149 = sphi 0, %s147
      %s150 = sphi 0, %s149
      %s164 = sphi 0, %s150
      %s168 = sphi 0, %s168
      %s170 = sphi 0, %s168
      %s171 = sphi 0, %s170
      %s185 = sphi 0, %s171
      %s189 = sphi 0, %s189
      %s191 = sphi 0, %s189
      %s192 = sphi 0, %s191
      %s206 = sphi 0, %s192
      %s210 = sphi 0, %s210
      %s212 = sphi 0, %s210
      %s213 = sphi 0, %s212
      %s227 = sphi 0, %s213
      %s231 = sphi 0, %s231
      %s233 = sphi 0, %s231
      %s234 = sphi 0, %s233
      %s248 = sphi 0, %s234
    $region4: #{tpu_custom_call.1} parent=1 // loop_header_branch
      %27 = sbr.rel (%p25) target = $region8
    $region5: #{tpu_custom_call.1} parent=1 // loop_body
      %s29 = ssub.s32 %s24, 1
      %s30 = ssub.s32 %s24, 2
      %s31 = sadd.s32 %s24, 1
      %s32 = ssub.s32 %s24, %s31
      %p33 = scmp.eq.s32.totalorder %s32, 0
      %s35 = sadd.s32 %s34, 1
      %s36 = scalar_select %p33, %s34, %s35
      %p39 = pneg %p33
      %p40 = scmp.eq.s32.totalorder %s24, 1
      %p41 = por %p39, %p40
      %p42 = scmp.ne.s32.totalorder %s34, %s37
      %p43 = scmp.eq.s32.totalorder %s24, 0
      %p44 = por %p42, %p43
      %p45 = scmp.ne.s32.totalorder %s34, %s37
      %p46 = scmp.eq.s32.totalorder %s29, 1
      %p47 = por %p45, %p46
      %p48 = scmp.ne.s32.totalorder %s37, %s38
      %p49 = scmp.eq.s32.totalorder %s29, 0
      %p50 = por %p48, %p49
      %p51 = scmp.ne.s32.totalorder %s37, %s38
      %p52 = scmp.eq.s32.totalorder %s30, 1
      %p53 = por %p51, %p52
      %p55 = scmp.ne.s32.totalorder %s38, %s54
      %p56 = scmp.eq.s32.totalorder %s30, 0
      %p57 = por %p55, %p56
      %s58 = ssub.s32 %s24, %s31
      %p59 = scmp.eq.s32.totalorder %s58, 0
      %s61 = sadd.s32 %s60, 1
      %s62 = scalar_select %p59, %s60, %s61
      %p65 = pneg %p59
      %p66 = scmp.eq.s32.totalorder %s24, 1
      %p67 = por %p65, %p66
      %p68 = scmp.ne.s32.totalorder %s60, %s63
      %p69 = scmp.eq.s32.totalorder %s24, 0
      %p70 = por %p68, %p69
      %p71 = scmp.ne.s32.totalorder %s60, %s63
      %p72 = scmp.eq.s32.totalorder %s29, 1
      %p73 = por %p71, %p72
      %p74 = scmp.ne.s32.totalorder %s63, %s64
      %p75 = scmp.eq.s32.totalorder %s29, 0
      %p76 = por %p74, %p75
      %p77 = scmp.ne.s32.totalorder %s63, %s64
      %p78 = scmp.eq.s32.totalorder %s30, 1
      %p79 = por %p77, %p78
      %p81 = scmp.ne.s32.totalorder %s64, %s80
      %p82 = scmp.eq.s32.totalorder %s30, 0
      %p83 = por %p81, %p82
      %s85 = sadd.s32 %s84, 1
      %p88 = scmp.eq.s32.totalorder %s24, 1
      %p89 = scmp.ne.s32.totalorder %s84, %s86
      %p90 = scmp.eq.s32.totalorder %s24, 0
      %p91 = por %p89, %p90
      %p92 = scmp.ne.s32.totalorder %s84, %s86
      %p93 = scmp.eq.s32.totalorder %s29, 1
      %p94 = por %p92, %p93
      %p95 = scmp.ne.s32.totalorder %s86, %s87
      %p96 = scmp.eq.s32.totalorder %s29, 0
      %p97 = por %p95, %p96
      %p98 = scmp.ne.s32.totalorder %s86, %s87
      %p99 = scmp.eq.s32.totalorder %s30, 1
      %p100 = por %p98, %p99
      %p102 = scmp.ne.s32.totalorder %s87, %s101
      %p103 = scmp.eq.s32.totalorder %s30, 0
      %p104 = por %p102, %p103
      %s106 = sadd.s32 %s105, 1
      %p109 = scmp.eq.s32.totalorder %s24, 1
      %p110 = scmp.ne.s32.totalorder %s105, %s107
      %p111 = scmp.eq.s32.totalorder %s24, 0
      %p112 = por %p110, %p111
      %p113 = scmp.ne.s32.totalorder %s105, %s107
      %p114 = scmp.eq.s32.totalorder %s29, 1
      %p115 = por %p113, %p114
      %p116 = scmp.ne.s32.totalorder %s107, %s108
      %p117 = scmp.eq.s32.totalorder %s29, 0
      %p118 = por %p116, %p117
      %p119 = scmp.ne.s32.totalorder %s107, %s108
      %p120 = scmp.eq.s32.totalorder %s30, 1
      %p121 = por %p119, %p120
      %p123 = scmp.ne.s32.totalorder %s108, %s122
      %p124 = scmp.eq.s32.totalorder %s30, 0
      %p125 = por %p123, %p124
      %s127 = sadd.s32 %s126, 1
      %p130 = scmp.eq.s32.totalorder %s24, 1
      %p131 = scmp.ne.s32.totalorder %s126, %s128
      %p132 = scmp.eq.s32.totalorder %s24, 0
      %p133 = por %p131, %p132
      %p134 = scmp.ne.s32.totalorder %s126, %s128
      %p135 = scmp.eq.s32.totalorder %s29, 1
      %p136 = por %p134, %p135
      %p137 = scmp.ne.s32.totalorder %s128, %s129
      %p138 = scmp.eq.s32.totalorder %s29, 0
      %p139 = por %p137, %p138
      %p140 = scmp.ne.s32.totalorder %s128, %s129
      %p141 = scmp.eq.s32.totalorder %s30, 1
      %p142 = por %p140, %p141
      %p144 = scmp.ne.s32.totalorder %s129, %s143
      %p145 = scmp.eq.s32.totalorder %s30, 0
      %p146 = por %p144, %p145
      %s148 = sadd.s32 %s147, 1
      %p151 = scmp.eq.s32.totalorder %s24, 1
      %p152 = scmp.ne.s32.totalorder %s147, %s149
      %p153 = scmp.eq.s32.totalorder %s24, 0
      %p154 = por %p152, %p153
      %p155 = scmp.ne.s32.totalorder %s147, %s149
      %p156 = scmp.eq.s32.totalorder %s29, 1
      %p157 = por %p155, %p156
      %p158 = scmp.ne.s32.totalorder %s149, %s150
      %p159 = scmp.eq.s32.totalorder %s29, 0
      %p160 = por %p158, %p159
      %p161 = scmp.ne.s32.totalorder %s149, %s150
      %p162 = scmp.eq.s32.totalorder %s30, 1
      %p163 = por %p161, %p162
      %p165 = scmp.ne.s32.totalorder %s150, %s164
      %p166 = scmp.eq.s32.totalorder %s30, 0
      %p167 = por %p165, %p166
      %s169 = sadd.s32 %s168, 1
      %p172 = scmp.eq.s32.totalorder %s24, 1
      %p173 = scmp.ne.s32.totalorder %s168, %s170
      %p174 = scmp.eq.s32.totalorder %s24, 0
      %p175 = por %p173, %p174
      %p176 = scmp.ne.s32.totalorder %s168, %s170
      %p177 = scmp.eq.s32.totalorder %s29, 1
      %p178 = por %p176, %p177
      %p179 = scmp.ne.s32.totalorder %s170, %s171
      %p180 = scmp.eq.s32.totalorder %s29, 0
      %p181 = por %p179, %p180
      %p182 = scmp.ne.s32.totalorder %s170, %s171
      %p183 = scmp.eq.s32.totalorder %s30, 1
      %p184 = por %p182, %p183
      %p186 = scmp.ne.s32.totalorder %s171, %s185
      %p187 = scmp.eq.s32.totalorder %s30, 0
      %p188 = por %p186, %p187
      %s190 = sadd.s32 %s189, 1
      %p193 = scmp.eq.s32.totalorder %s24, 1
      %p194 = scmp.ne.s32.totalorder %s189, %s191
      %p195 = scmp.eq.s32.totalorder %s24, 0
      %p196 = por %p194, %p195
      %p197 = scmp.ne.s32.totalorder %s189, %s191
      %p198 = scmp.eq.s32.totalorder %s29, 1
      %p199 = por %p197, %p198
      %p200 = scmp.ne.s32.totalorder %s191, %s192
      %p201 = scmp.eq.s32.totalorder %s29, 0
      %p202 = por %p200, %p201
      %p203 = scmp.ne.s32.totalorder %s191, %s192
      %p204 = scmp.eq.s32.totalorder %s30, 1
      %p205 = por %p203, %p204
      %p207 = scmp.ne.s32.totalorder %s192, %s206
      %p208 = scmp.eq.s32.totalorder %s30, 0
      %p209 = por %p207, %p208
      %s211 = sadd.s32 %s210, 1
      %p214 = scmp.eq.s32.totalorder %s24, 1
      %p215 = scmp.ne.s32.totalorder %s210, %s212
      %p216 = scmp.eq.s32.totalorder %s24, 0
      %p217 = por %p215, %p216
      %p218 = scmp.ne.s32.totalorder %s210, %s212
      %p219 = scmp.eq.s32.totalorder %s29, 1
      %p220 = por %p218, %p219
      %p221 = scmp.ne.s32.totalorder %s212, %s213
      %p222 = scmp.eq.s32.totalorder %s29, 0
      %p223 = por %p221, %p222
      %p224 = scmp.ne.s32.totalorder %s212, %s213
      %p225 = scmp.eq.s32.totalorder %s30, 1
      %p226 = por %p224, %p225
      %p228 = scmp.ne.s32.totalorder %s213, %s227
      %p229 = scmp.eq.s32.totalorder %s30, 0
      %p230 = por %p228, %p229
      %s232 = sadd.s32 %s231, 1
      %p235 = scmp.eq.s32.totalorder %s24, 1
      %p236 = scmp.ne.s32.totalorder %s231, %s233
      %p237 = scmp.eq.s32.totalorder %s24, 0
      %p238 = por %p236, %p237
      %p239 = scmp.ne.s32.totalorder %s231, %s233
      %p240 = scmp.eq.s32.totalorder %s29, 1
      %p241 = por %p239, %p240
      %p242 = scmp.ne.s32.totalorder %s233, %s234
      %p243 = scmp.eq.s32.totalorder %s29, 0
      %p244 = por %p242, %p243
      %p245 = scmp.ne.s32.totalorder %s233, %s234
      %p246 = scmp.eq.s32.totalorder %s30, 1
      %p247 = por %p245, %p246
      %p249 = scmp.ne.s32.totalorder %s234, %s248
      %p250 = scmp.eq.s32.totalorder %s30, 0
      %p251 = por %p249, %p250
      %p252 = scmp.le.s32.totalorder 1, %s24
      %p253 = scmp.lt.s32.totalorder %s24, 3
      %p254 = pnand %p252, %p253
      %p255 = pneg %p254
      // Predicated region
      $region9: #{tpu_custom_call.1} parent=5 // pred_check
        _
      $region10: #{tpu_custom_call.1} parent=5 // pred_check_branch
        %257 = sbr.rel (%p254) target = $region12
      $region11: #{tpu_custom_call.1} parent=5 // pred_region
        %s258 = ssub.s32 %s24, 1
        // Predicated region
        $region13: #{tpu_custom_call.1} parent=11 // pred_check
          %p259 = pneg %p97
        $region14: #{tpu_custom_call.1} parent=11 // pred_check_branch
          %261 = sbr.rel (%p259) target = $region16
        $region15: #{tpu_custom_call.1} parent=11 // pred_region
          %s263 = ssub.s32 48, 48
          %264 = vsyncadd [#allocation7], %s263
          %s266 = sshll.u32 [#allocation8], 4
          %s267 = int_to_ptr.vmem [resolvable:$true] %s266
          %269 = dma.hbm_to_vmem [thread:$0]  %s2, 48, %s267, [#allocation7]
        $region16: #{tpu_custom_call.1} parent=11 // pred_fallthru
          _
        // Predicated region
        $region17: #{tpu_custom_call.1} parent=11 // pred_check
          %p270 = pneg %p118
        $region18: #{tpu_custom_call.1} parent=11 // pred_check_branch
          %272 = sbr.rel (%p270) target = $region20
        $region19: #{tpu_custom_call.1} parent=11 // pred_region
          _
        $region20: #{tpu_custom_call.1} parent=11 // pred_fallthru
          _
        // Predicated region
        $region21: #{tpu_custom_call.1} parent=11 // pred_check
          %p273 = pneg %p139
        $region22: #{tpu_custom_call.1} parent=11 // pred_check_branch
          %275 = sbr.rel (%p273) target = $region24
        $region23: #{tpu_custom_call.1} parent=11 // pred_region
          %s277 = ssub.s32 16, 16
          %278 = vsyncadd [#allocation10], %s277
          %s280 = sshll.u32 [#allocation9], 4
          %s281 = int_to_ptr.vmem [resolvable:$true] %s280
          %283 = dma.hbm_to_vmem [thread:$0]  %s4, 16, %s281, [#allocation10]
        $region24: #{tpu_custom_call.1} parent=11 // pred_fallthru
          _
        // Predicated region
        $region25: #{tpu_custom_call.1} parent=11 // pred_check
          %p284 = pneg %p160
        $region26: #{tpu_custom_call.1} parent=11 // pred_check_branch
          %286 = sbr.rel (%p284) target = $region28
        $region27: #{tpu_custom_call.1} parent=11 // pred_region
          _
        $region28: #{tpu_custom_call.1} parent=11 // pred_fallthru
          _
        // Predicated region
        $region29: #{tpu_custom_call.1} parent=11 // pred_check
          %p287 = pneg %p181
        $region30: #{tpu_custom_call.1} parent=11 // pred_check_branch
          %289 = sbr.rel (%p287) target = $region32
        $region31: #{tpu_custom_call.1} parent=11 // pred_region
          %s291 = ssub.s32 16, 16
          %292 = vsyncadd [#allocation10], %s291
          %s294 = sshll.u32 [#allocation11], 4
          %s295 = int_to_ptr.vmem [resolvable:$true] %s294
          %297 = dma.hbm_to_vmem [thread:$0]  %s6, 16, %s295, [#allocation10]
        $region32: #{tpu_custom_call.1} parent=11 // pred_fallthru
          _
        // Predicated region
        $region33: #{tpu_custom_call.1} parent=11 // pred_check
          %p298 = pneg %p202
        $region34: #{tpu_custom_call.1} parent=11 // pred_check_branch
          %300 = sbr.rel (%p298) target = $region36
        $region35: #{tpu_custom_call.1} parent=11 // pred_region
          %s302 = ssub.s32 512, 512
          %303 = vsyncadd [#allocation13], %s302
          %s304 = sshll.u32 [#allocation12], 4
          %s305 = int_to_ptr.vmem [resolvable:$true] %s304
          %310 = dma.hbm_to_vmem [thread:$0]  %s7, 512, %s305, [#allocation13], 128, 128, 8
        $region36: #{tpu_custom_call.1} parent=11 // pred_fallthru
          _
        // Predicated region
        $region37: #{tpu_custom_call.1} parent=11 // pred_check
          %p311 = pneg %p223
        $region38: #{tpu_custom_call.1} parent=11 // pred_check_branch
          %313 = sbr.rel (%p311) target = $region40
        $region39: #{tpu_custom_call.1} parent=11 // pred_region
          %s315 = ssub.s32 16, 16
          %316 = vsyncadd [#allocation13], %s315
          %s318 = sshll.u32 [#allocation14], 4
          %s319 = int_to_ptr.vmem [resolvable:$true] %s318
          %321 = dma.hbm_to_vmem [thread:$0]  %s8, 16, %s319, [#allocation13]
        $region40: #{tpu_custom_call.1} parent=11 // pred_fallthru
          _
      $region12: #{tpu_custom_call.1} parent=5 // pred_fallthru
        _
      %p322 = scmp.lt.s32.totalorder %s24, 2
      // Predicated region
      $region41: #{tpu_custom_call.1} parent=5 // pred_check
        %p323 = pneg %p322
      $region42: #{tpu_custom_call.1} parent=5 // pred_check_branch
        %325 = sbr.rel (%p323) target = $region44
      $region43: #{tpu_custom_call.1} parent=5 // pred_region
        // Predicated region
        $region45: #{tpu_custom_call.1} parent=43 // pred_check
          %p326 = pneg %p44
        $region46: #{tpu_custom_call.1} parent=43 // pred_check_branch
          %328 = sbr.rel (%p326) target = $region48
        $region47: #{tpu_custom_call.1} parent=43 // pred_region
          %s329 = sand.u32 %s34, 1
          %s330 = scalar_lea.sflag [#allocation4], %s329
          %s331 = sand.u32 %s34, 1
          %s332 = smul.addr %s331, 112
          %s333 = scalar_lea.vmem [#allocation3], %s332
          %s334 = smul.u32 28, %s24
          %s336 = ssub.s32 1792, 1792
          %337 = vsyncadd %s330, %s336
          %s338 = smul.addr %s334, 64
          %s339 = scalar_lea.hbm %s0, %s338
          %s341 = sshll.u32 %s333, 4
          %s342 = int_to_ptr.vmem [resolvable:$true] %s341
          %344 = dma.hbm_to_vmem [thread:$0]  %s339, 1792, %s342, %s330
        $region48: #{tpu_custom_call.1} parent=43 // pred_fallthru
          _
        // Predicated region
        $region49: #{tpu_custom_call.1} parent=43 // pred_check
          %p345 = pneg %p70
        $region50: #{tpu_custom_call.1} parent=43 // pred_check_branch
          %347 = sbr.rel (%p345) target = $region52
        $region51: #{tpu_custom_call.1} parent=43 // pred_region
          %s348 = sand.u32 %s24, 1
          %s349 = scalar_lea.sflag [#allocation7], %s348
          %s350 = sand.u32 %s60, 1
          %s351 = smul.addr %s350, 5376
          %s352 = scalar_lea.vmem [#allocation6], %s351
          %s353 = smul.u32 448, %s24
          %s355 = ssub.s32 86016, 86016
          %356 = vsyncadd %s349, %s355
          %s357 = smul.addr %s353, 3
          %s358 = smul.addr %s357, 64
          %s359 = scalar_lea.hbm %s1, %s358
          %s360 = sshll.u32 %s352, 4
          %s361 = int_to_ptr.vmem [resolvable:$true] %s360
          %366 = dma.hbm_to_vmem [thread:$0]  %s359, 86016, %s361, %s349, 192, 192, 12
        $region52: #{tpu_custom_call.1} parent=43 // pred_fallthru
          _
      $region44: #{tpu_custom_call.1} parent=5 // pred_fallthru
        _
      %p367 = scmp.le.s32.totalorder 1, %s24
      %p368 = scmp.lt.s32.totalorder %s24, 3
      %p369 = pnand %p367, %p368
      %p370 = pneg %p369
      // Predicated region
      $region53: #{tpu_custom_call.1} parent=5 // pred_check
        _
      $region54: #{tpu_custom_call.1} parent=5 // pred_check_branch
        %372 = sbr.rel (%p369) target = $region56
      $region55: #{tpu_custom_call.1} parent=5 // pred_region
        %s373 = ssub.s32 %s24, 1
        %s374 = sand.u32 %s37, 1
        %s375 = scalar_lea.sflag [#allocation4], %s374
        %s376 = sand.u32 %s37, 1
        %s377 = smul.addr %s376, 112
        %s378 = scalar_lea.vmem [#allocation3], %s377
        // Predicated region
        $region57: #{tpu_custom_call.1} parent=55 // pred_check
          %p379 = pneg %p50
        $region58: #{tpu_custom_call.1} parent=55 // pred_check_branch
          %381 = sbr.rel (%p379) target = $region60
        $region59: #{tpu_custom_call.1} parent=55 // pred_region
          %382 = dma.done %s375, 1792
        $region60: #{tpu_custom_call.1} parent=55 // pred_fallthru
          _
        %s383 = sand.u32 %s29, 1
        %s384 = scalar_lea.sflag [#allocation7], %s383
        %s385 = sand.u32 %s63, 1
        %s386 = smul.addr %s385, 5376
        %s387 = scalar_lea.vmem [#allocation6], %s386
        // Predicated region
        $region61: #{tpu_custom_call.1} parent=55 // pred_check
          %p388 = pneg %p76
        $region62: #{tpu_custom_call.1} parent=55 // pred_check_branch
          %390 = sbr.rel (%p388) target = $region64
        $region63: #{tpu_custom_call.1} parent=55 // pred_region
          %391 = dma.done %s384, 86016
        $region64: #{tpu_custom_call.1} parent=55 // pred_fallthru
          _
        // Predicated region
        $region65: #{tpu_custom_call.1} parent=55 // pred_check
          %p392 = pneg %p97
        $region66: #{tpu_custom_call.1} parent=55 // pred_check_branch
          %394 = sbr.rel (%p392) target = $region68
        $region67: #{tpu_custom_call.1} parent=55 // pred_region
          %395 = dma.done [#allocation7], 48
        $region68: #{tpu_custom_call.1} parent=55 // pred_fallthru
          _
        // Predicated region
        $region69: #{tpu_custom_call.1} parent=55 // pred_check
          %p396 = pneg %p139
        $region70: #{tpu_custom_call.1} parent=55 // pred_check_branch
          %398 = sbr.rel (%p396) target = $region72
        $region71: #{tpu_custom_call.1} parent=55 // pred_region
          %399 = dma.done [#allocation10], 16
        $region72: #{tpu_custom_call.1} parent=55 // pred_fallthru
          _
        // Predicated region
        $region73: #{tpu_custom_call.1} parent=55 // pred_check
          %p400 = pneg %p181
        $region74: #{tpu_custom_call.1} parent=55 // pred_check_branch
          %402 = sbr.rel (%p400) target = $region76
        $region75: #{tpu_custom_call.1} parent=55 // pred_region
          %403 = dma.done [#allocation10], 16
        $region76: #{tpu_custom_call.1} parent=55 // pred_fallthru
          _
        // Predicated region
        $region77: #{tpu_custom_call.1} parent=55 // pred_check
          %p404 = pneg %p202
        $region78: #{tpu_custom_call.1} parent=55 // pred_check_branch
          %406 = sbr.rel (%p404) target = $region80
        $region79: #{tpu_custom_call.1} parent=55 // pred_region
          %407 = dma.done [#allocation13], 512
        $region80: #{tpu_custom_call.1} parent=55 // pred_fallthru
          _
        // Predicated region
        $region81: #{tpu_custom_call.1} parent=55 // pred_check
          %p408 = pneg %p223
        $region82: #{tpu_custom_call.1} parent=55 // pred_check_branch
          %410 = sbr.rel (%p408) target = $region84
        $region83: #{tpu_custom_call.1} parent=55 // pred_region
          %411 = dma.done [#allocation13], 16
        $region84: #{tpu_custom_call.1} parent=55 // pred_fallthru
          _
        %s412 = sand.u32 %s37, 1
        %s413 = scalar_lea.sflag [#allocation4], %s412
        %s414 = sand.u32 %s37, 1
        %s415 = smul.addr %s414, 112
        %s416 = scalar_lea.vmem [#allocation3], %s415
        %p417 = pneg %p50
        %p418 = pneg %p47
        %s419 = sand.u32 %s29, 1
        %s420 = scalar_lea.sflag [#allocation7], %s419
        %s421 = sand.u32 %s63, 1
        %s422 = smul.addr %s421, 5376
        %s423 = scalar_lea.vmem [#allocation6], %s422
        %p424 = pneg %p76
        %p425 = pneg %p73
        %p426 = pneg %p97
        %p427 = pneg %p94
        %p428 = pneg %p118
        %p429 = pneg %p115
        %p430 = pneg %p139
        %p431 = pneg %p136
        %p432 = pneg %p160
        %p433 = pneg %p157
        %p434 = pneg %p181
        %p435 = pneg %p178
        %p436 = pneg %p202
        %p437 = pneg %p199
        %p438 = pneg %p223
        %p439 = pneg %p220
        %p440 = pneg %p244
        %p441 = pneg %p241
        %s442 = smul.u32 28, %s29
        %s443 = smul.u32 448, %s29
        %p445 = scmp.eq.s32.totalorder %s29, 0
        // Predicated region
        $region85: #{tpu_custom_call.1} parent=55 // pred_check
          %p446 = pneg %p445
        $region86: #{tpu_custom_call.1} parent=55 // pred_check_branch
          %448 = sbr.rel (%p446) target = $region88
        $region87: #{tpu_custom_call.1} parent=55 // pred_region
          %v449 = vld [vmem:[#allocation8] sm:$0x7]
          %v451 = vlaneseq
          %v452 = vshrl.u32 %v451, 7
          %v453 = vsub.s32 0, %v452
          %v454 = vrot.slane %v449, %v453
          %v455 = vlaneseq
          %v456 = vshrl.u32 %v455, 7
          %v457 = vsub.s32 1, %v456
          %v458 = vrot.slane %v449, %v457
          %v459 = vlaneseq
          %v460 = vshrl.u32 %v459, 7
          %v461 = vsub.s32 2, %v460
          %v462 = vrot.slane %v449, %v461
          %466 = vst [vmem:[#allocation2] sm:$0xff] %v454
          %467 = vst [vmem:[#allocation2 + $0x8] sm:$0xff] %v458
          %468 = vst [vmem:[#allocation2 + $0x10] sm:$0xff] %v462
        $region88: #{tpu_custom_call.1} parent=55 // pred_fallthru
          _
        %v469 = vld [vmem:[#allocation2] sm:$0xff]
        %v470 = vld [vmem:[#allocation2 + $0x8] sm:$0xff]
        %v471 = vld [vmem:[#allocation2 + $0x10] sm:$0xff]
        %v472 = vld [vmem:[%s378] sm:$0xff]
        %v473 = vld [vmem:[%s378 + $0x8] sm:$0xff]
        %v474 = vld [vmem:[%s378 + $0x10] sm:$0xff]
        %v475 = vld [vmem:[%s378 + $0x18] sm:$0xff]
        %v476 = vld [vmem:[%s378 + $0x20] sm:$0xff]
        %v477 = vld [vmem:[%s378 + $0x28] sm:$0xff]
        %v478 = vld [vmem:[%s378 + $0x30] sm:$0xff]
        %v479 = vld [vmem:[%s378 + $0x38] sm:$0xff]
        %v480 = vld [vmem:[%s378 + $0x40] sm:$0xff]
        %v481 = vld [vmem:[%s378 + $0x48] sm:$0xff]
        %v482 = vld [vmem:[%s378 + $0x50] sm:$0xff]
        %v483 = vld [vmem:[%s378 + $0x58] sm:$0xff]
        %v484 = vld [vmem:[%s378 + $0x60] sm:$0xff]
        %v485 = vld [vmem:[%s378 + $0x68] sm:$0xff]
        %v486 = vld [vmem:[%s387] sm:$0xff]
        %v487 = vld [vmem:[%s387 + $0x8] sm:$0xf]
        %v488 = vld [vmem:[%s387 + $0xc] sm:$0xff]
        %v489 = vld [vmem:[%s387 + $0x14] sm:$0xf]
        %v490 = vld [vmem:[%s387 + $0x18] sm:$0xff]
        %v491 = vld [vmem:[%s387 + $0x20] sm:$0xf]
        %v492 = vld [vmem:[%s387 + $0x24] sm:$0xff]
        %v493 = vld [vmem:[%s387 + $0x2c] sm:$0xf]
        %v494 = vld [vmem:[%s387 + $0x30] sm:$0xff]
        %v495 = vld [vmem:[%s387 + $0x38] sm:$0xf]
        %v496 = vld [vmem:[%s387 + $0x3c] sm:$0xff]
        %v497 = vld [vmem:[%s387 + $0x44] sm:$0xf]
        %v498 = vld [vmem:[%s387 + $0x48] sm:$0xff]
        %v499 = vld [vmem:[%s387 + $0x50] sm:$0xf]
        %v500 = vld [vmem:[%s387 + $0x54] sm:$0xff]
        %v501 = vld [vmem:[%s387 + $0x5c] sm:$0xf]
        %v502 = vld [vmem:[%s387 + $0x60] sm:$0xff]
        %v503 = vld [vmem:[%s387 + $0x68] sm:$0xf]
        %v504 = vld [vmem:[%s387 + $0x6c] sm:$0xff]
        %v505 = vld [vmem:[%s387 + $0x74] sm:$0xf]
        %v506 = vld [vmem:[%s387 + $0x78] sm:$0xff]
        %v507 = vld [vmem:[%s387 + $0x80] sm:$0xf]
        %v508 = vld [vmem:[%s387 + $0x84] sm:$0xff]
        %v509 = vld [vmem:[%s387 + $0x8c] sm:$0xf]
        %v510 = vld [vmem:[%s387 + $0x90] sm:$0xff]
        %v511 = vld [vmem:[%s387 + $0x98] sm:$0xf]
        %v512 = vld [vmem:[%s387 + $0x9c] sm:$0xff]
        %v513 = vld [vmem:[%s387 + $0xa4] sm:$0xf]
        %v514 = vld [vmem:[%s387 + $0xa8] sm:$0xff]
        %v515 = vld [vmem:[%s387 + $0xb0] sm:$0xf]
        %v516 = vld [vmem:[%s387 + $0xb4] sm:$0xff]
        %v517 = vld [vmem:[%s387 + $0xbc] sm:$0xf]
        %v518 = vld [vmem:[%s387 + $0xc0] sm:$0xff]
        %v519 = vld [vmem:[%s387 + $0xc8] sm:$0xf]
        %v520 = vld [vmem:[%s387 + $0xcc] sm:$0xff]
        %v521 = vld [vmem:[%s387 + $0xd4] sm:$0xf]
        %v522 = vld [vmem:[%s387 + $0xd8] sm:$0xff]
        %v523 = vld [vmem:[%s387 + $0xe0] sm:$0xf]
        %v524 = vld [vmem:[%s387 + $0xe4] sm:$0xff]
        %v525 = vld [vmem:[%s387 + $0xec] sm:$0xf]
        %v526 = vld [vmem:[%s387 + $0xf0] sm:$0xff]
        %v527 = vld [vmem:[%s387 + $0xf8] sm:$0xf]
        %v528 = vld [vmem:[%s387 + $0xfc] sm:$0xff]
        %v529 = vld [vmem:[%s387 + $0x104] sm:$0xf]
        %v530 = vld [vmem:[%s387 + $0x108] sm:$0xff]
        %v531 = vld [vmem:[%s387 + $0x110] sm:$0xf]
        %v532 = vld [vmem:[%s387 + $0x114] sm:$0xff]
        %v533 = vld [vmem:[%s387 + $0x11c] sm:$0xf]
        %v534 = vld [vmem:[%s387 + $0x120] sm:$0xff]
        %v535 = vld [vmem:[%s387 + $0x128] sm:$0xf]
        %v536 = vld [vmem:[%s387 + $0x12c] sm:$0xff]
        %v537 = vld [vmem:[%s387 + $0x134] sm:$0xf]
        %v538 = vld [vmem:[%s387 + $0x138] sm:$0xff]
        %v539 = vld [vmem:[%s387 + $0x140] sm:$0xf]
        %v540 = vld [vmem:[%s387 + $0x144] sm:$0xff]
        %v541 = vld [vmem:[%s387 + $0x14c] sm:$0xf]
        %v542 = vld [vmem:[%s387 + $0x150] sm:$0xff]
        %v543 = vld [vmem:[%s387 + $0x158] sm:$0xf]
        %v544 = vld [vmem:[%s387 + $0x15c] sm:$0xff]
        %v545 = vld [vmem:[%s387 + $0x164] sm:$0xf]
        %v546 = vld [vmem:[%s387 + $0x168] sm:$0xff]
        %v547 = vld [vmem:[%s387 + $0x170] sm:$0xf]
        %v548 = vld [vmem:[%s387 + $0x174] sm:$0xff]
        %v549 = vld [vmem:[%s387 + $0x17c] sm:$0xf]
        %v550 = vld [vmem:[%s387 + $0x180] sm:$0xff]
        %v551 = vld [vmem:[%s387 + $0x188] sm:$0xf]
        %v552 = vld [vmem:[%s387 + $0x18c] sm:$0xff]
        %v553 = vld [vmem:[%s387 + $0x194] sm:$0xf]
        %v554 = vld [vmem:[%s387 + $0x198] sm:$0xff]
        %v555 = vld [vmem:[%s387 + $0x1a0] sm:$0xf]
        %v556 = vld [vmem:[%s387 + $0x1a4] sm:$0xff]
        %v557 = vld [vmem:[%s387 + $0x1ac] sm:$0xf]
        %v558 = vld [vmem:[%s387 + $0x1b0] sm:$0xff]
        %v559 = vld [vmem:[%s387 + $0x1b8] sm:$0xf]
        %v560 = vld [vmem:[%s387 + $0x1bc] sm:$0xff]
        %v561 = vld [vmem:[%s387 + $0x1c4] sm:$0xf]
        %v562 = vld [vmem:[%s387 + $0x1c8] sm:$0xff]
        %v563 = vld [vmem:[%s387 + $0x1d0] sm:$0xf]
        %v564 = vld [vmem:[%s387 + $0x1d4] sm:$0xff]
        %v565 = vld [vmem:[%s387 + $0x1dc] sm:$0xf]
        %v566 = vld [vmem:[%s387 + $0x1e0] sm:$0xff]
        %v567 = vld [vmem:[%s387 + $0x1e8] sm:$0xf]
        %v568 = vld [vmem:[%s387 + $0x1ec] sm:$0xff]
        %v569 = vld [vmem:[%s387 + $0x1f4] sm:$0xf]
        %v570 = vld [vmem:[%s387 + $0x1f8] sm:$0xff]
        %v571 = vld [vmem:[%s387 + $0x200] sm:$0xf]
        %v572 = vld [vmem:[%s387 + $0x204] sm:$0xff]
        %v573 = vld [vmem:[%s387 + $0x20c] sm:$0xf]
        %v574 = vld [vmem:[%s387 + $0x210] sm:$0xff]
        %v575 = vld [vmem:[%s387 + $0x218] sm:$0xf]
        %v576 = vld [vmem:[%s387 + $0x21c] sm:$0xff]
        %v577 = vld [vmem:[%s387 + $0x224] sm:$0xf]
        %v578 = vld [vmem:[%s387 + $0x228] sm:$0xff]
        %v579 = vld [vmem:[%s387 + $0x230] sm:$0xf]
        %v580 = vld [vmem:[%s387 + $0x234] sm:$0xff]
        %v581 = vld [vmem:[%s387 + $0x23c] sm:$0xf]
        %v582 = vld [vmem:[%s387 + $0x240] sm:$0xff]
        %v583 = vld [vmem:[%s387 + $0x248] sm:$0xf]
        %v584 = vld [vmem:[%s387 + $0x24c] sm:$0xff]
        %v585 = vld [vmem:[%s387 + $0x254] sm:$0xf]
        %v586 = vld [vmem:[%s387 + $0x258] sm:$0xff]
        %v587 = vld [vmem:[%s387 + $0x260] sm:$0xf]
        %v588 = vld [vmem:[%s387 + $0x264] sm:$0xff]
        %v589 = vld [vmem:[%s387 + $0x26c] sm:$0xf]
        %v590 = vld [vmem:[%s387 + $0x270] sm:$0xff]
        %v591 = vld [vmem:[%s387 + $0x278] sm:$0xf]
        %v592 = vld [vmem:[%s387 + $0x27c] sm:$0xff]
        %v593 = vld [vmem:[%s387 + $0x284] sm:$0xf]
        %v594 = vld [vmem:[%s387 + $0x288] sm:$0xff]
        %v595 = vld [vmem:[%s387 + $0x290] sm:$0xf]
        %v596 = vld [vmem:[%s387 + $0x294] sm:$0xff]
        %v597 = vld [vmem:[%s387 + $0x29c] sm:$0xf]
        %v598 = vld [vmem:[%s387 + $0x2a0] sm:$0xff]
        %v599 = vld [vmem:[%s387 + $0x2a8] sm:$0xf]
        %v600 = vld [vmem:[%s387 + $0x2ac] sm:$0xff]
        %v601 = vld [vmem:[%s387 + $0x2b4] sm:$0xf]
        %v602 = vld [vmem:[%s387 + $0x2b8] sm:$0xff]
        %v603 = vld [vmem:[%s387 + $0x2c0] sm:$0xf]
        %v604 = vld [vmem:[%s387 + $0x2c4] sm:$0xff]
        %v605 = vld [vmem:[%s387 + $0x2cc] sm:$0xf]
        %v606 = vld [vmem:[%s387 + $0x2d0] sm:$0xff]
        %v607 = vld [vmem:[%s387 + $0x2d8] sm:$0xf]
        %v608 = vld [vmem:[%s387 + $0x2dc] sm:$0xff]
        %v609 = vld [vmem:[%s387 + $0x2e4] sm:$0xf]
        %v610 = vld [vmem:[%s387 + $0x2e8] sm:$0xff]
        %v611 = vld [vmem:[%s387 + $0x2f0] sm:$0xf]
        %v612 = vld [vmem:[%s387 + $0x2f4] sm:$0xff]
        %v613 = vld [vmem:[%s387 + $0x2fc] sm:$0xf]
        %v614 = vld [vmem:[%s387 + $0x300] sm:$0xff]
        %v615 = vld [vmem:[%s387 + $0x308] sm:$0xf]
        %v616 = vld [vmem:[%s387 + $0x30c] sm:$0xff]
        %v617 = vld [vmem:[%s387 + $0x314] sm:$0xf]
        %v618 = vld [vmem:[%s387 + $0x318] sm:$0xff]
        %v619 = vld [vmem:[%s387 + $0x320] sm:$0xf]
        %v620 = vld [vmem:[%s387 + $0x324] sm:$0xff]
        %v621 = vld [vmem:[%s387 + $0x32c] sm:$0xf]
        %v622 = vld [vmem:[%s387 + $0x330] sm:$0xff]
        %v623 = vld [vmem:[%s387 + $0x338] sm:$0xf]
        %v624 = vld [vmem:[%s387 + $0x33c] sm:$0xff]
        %v625 = vld [vmem:[%s387 + $0x344] sm:$0xf]
        %v626 = vld [vmem:[%s387 + $0x348] sm:$0xff]
        %v627 = vld [vmem:[%s387 + $0x350] sm:$0xf]
        %v628 = vld [vmem:[%s387 + $0x354] sm:$0xff]
        %v629 = vld [vmem:[%s387 + $0x35c] sm:$0xf]
        %v630 = vld [vmem:[%s387 + $0x360] sm:$0xff]
        %v631 = vld [vmem:[%s387 + $0x368] sm:$0xf]
        %v632 = vld [vmem:[%s387 + $0x36c] sm:$0xff]
        %v633 = vld [vmem:[%s387 + $0x374] sm:$0xf]
        %v634 = vld [vmem:[%s387 + $0x378] sm:$0xff]
        %v635 = vld [vmem:[%s387 + $0x380] sm:$0xf]
        %v636 = vld [vmem:[%s387 + $0x384] sm:$0xff]
        %v637 = vld [vmem:[%s387 + $0x38c] sm:$0xf]
        %v638 = vld [vmem:[%s387 + $0x390] sm:$0xff]
        %v639 = vld [vmem:[%s387 + $0x398] sm:$0xf]
        %v640 = vld [vmem:[%s387 + $0x39c] sm:$0xff]
        %v641 = vld [vmem:[%s387 + $0x3a4] sm:$0xf]
        %v642 = vld [vmem:[%s387 + $0x3a8] sm:$0xff]
        %v643 = vld [vmem:[%s387 + $0x3b0] sm:$0xf]
        %v644 = vld [vmem:[%s387 + $0x3b4] sm:$0xff]
        %v645 = vld [vmem:[%s387 + $0x3bc] sm:$0xf]
        %v646 = vld [vmem:[%s387 + $0x3c0] sm:$0xff]
        %v647 = vld [vmem:[%s387 + $0x3c8] sm:$0xf]
        %v648 = vld [vmem:[%s387 + $0x3cc] sm:$0xff]
        %v649 = vld [vmem:[%s387 + $0x3d4] sm:$0xf]
        %v650 = vld [vmem:[%s387 + $0x3d8] sm:$0xff]
        %v651 = vld [vmem:[%s387 + $0x3e0] sm:$0xf]
        %v652 = vld [vmem:[%s387 + $0x3e4] sm:$0xff]
        %v653 = vld [vmem:[%s387 + $0x3ec] sm:$0xf]
        %v654 = vld [vmem:[%s387 + $0x3f0] sm:$0xff]
        %v655 = vld [vmem:[%s387 + $0x3f8] sm:$0xf]
        %v656 = vld [vmem:[%s387 + $0x3fc] sm:$0xff]
        %v657 = vld [vmem:[%s387 + $0x404] sm:$0xf]
        %v658 = vld [vmem:[%s387 + $0x408] sm:$0xff]
        %v659 = vld [vmem:[%s387 + $0x410] sm:$0xf]
        %v660 = vld [vmem:[%s387 + $0x414] sm:$0xff]
        %v661 = vld [vmem:[%s387 + $0x41c] sm:$0xf]
        %v662 = vld [vmem:[%s387 + $0x420] sm:$0xff]
        %v663 = vld [vmem:[%s387 + $0x428] sm:$0xf]
        %v664 = vld [vmem:[%s387 + $0x42c] sm:$0xff]
        %v665 = vld [vmem:[%s387 + $0x434] sm:$0xf]
        %v666 = vld [vmem:[%s387 + $0x438] sm:$0xff]
        %v667 = vld [vmem:[%s387 + $0x440] sm:$0xf]
        %v668 = vld [vmem:[%s387 + $0x444] sm:$0xff]
        %v669 = vld [vmem:[%s387 + $0x44c] sm:$0xf]
        %v670 = vld [vmem:[%s387 + $0x450] sm:$0xff]
        %v671 = vld [vmem:[%s387 + $0x458] sm:$0xf]
        %v672 = vld [vmem:[%s387 + $0x45c] sm:$0xff]
        %v673 = vld [vmem:[%s387 + $0x464] sm:$0xf]
        %v674 = vld [vmem:[%s387 + $0x468] sm:$0xff]
        %v675 = vld [vmem:[%s387 + $0x470] sm:$0xf]
        %v676 = vld [vmem:[%s387 + $0x474] sm:$0xff]
        %v677 = vld [vmem:[%s387 + $0x47c] sm:$0xf]
        %v678 = vld [vmem:[%s387 + $0x480] sm:$0xff]
        %v679 = vld [vmem:[%s387 + $0x488] sm:$0xf]
        %v680 = vld [vmem:[%s387 + $0x48c] sm:$0xff]
        %v681 = vld [vmem:[%s387 + $0x494] sm:$0xf]
        %v682 = vld [vmem:[%s387 + $0x498] sm:$0xff]
        %v683 = vld [vmem:[%s387 + $0x4a0] sm:$0xf]
        %v684 = vld [vmem:[%s387 + $0x4a4] sm:$0xff]
        %v685 = vld [vmem:[%s387 + $0x4ac] sm:$0xf]
        %v686 = vld [vmem:[%s387 + $0x4b0] sm:$0xff]
        %v687 = vld [vmem:[%s387 + $0x4b8] sm:$0xf]
        %v688 = vld [vmem:[%s387 + $0x4bc] sm:$0xff]
        %v689 = vld [vmem:[%s387 + $0x4c4] sm:$0xf]
        %v690 = vld [vmem:[%s387 + $0x4c8] sm:$0xff]
        %v691 = vld [vmem:[%s387 + $0x4d0] sm:$0xf]
        %v692 = vld [vmem:[%s387 + $0x4d4] sm:$0xff]
        %v693 = vld [vmem:[%s387 + $0x4dc] sm:$0xf]
        %v694 = vld [vmem:[%s387 + $0x4e0] sm:$0xff]
        %v695 = vld [vmem:[%s387 + $0x4e8] sm:$0xf]
        %v696 = vld [vmem:[%s387 + $0x4ec] sm:$0xff]
        %v697 = vld [vmem:[%s387 + $0x4f4] sm:$0xf]
        %v698 = vld [vmem:[%s387 + $0x4f8] sm:$0xff]
        %v699 = vld [vmem:[%s387 + $0x500] sm:$0xf]
        %v700 = vld [vmem:[%s387 + $0x504] sm:$0xff]
        %v701 = vld [vmem:[%s387 + $0x50c] sm:$0xf]
        %v702 = vld [vmem:[%s387 + $0x510] sm:$0xff]
        %v703 = vld [vmem:[%s387 + $0x518] sm:$0xf]
        %v704 = vld [vmem:[%s387 + $0x51c] sm:$0xff]
        %v705 = vld [vmem:[%s387 + $0x524] sm:$0xf]
        %v706 = vld [vmem:[%s387 + $0x528] sm:$0xff]
        %v707 = vld [vmem:[%s387 + $0x530] sm:$0xf]
        %v708 = vld [vmem:[%s387 + $0x534] sm:$0xff]
        %v709 = vld [vmem:[%s387 + $0x53c] sm:$0xf]
        %v710 = vld [vmem:[%s387 + $0x540] sm:$0xff]
        %v711 = vld [vmem:[%s387 + $0x548] sm:$0xf]
        %v712 = vld [vmem:[%s387 + $0x54c] sm:$0xff]
        %v713 = vld [vmem:[%s387 + $0x554] sm:$0xf]
        %v714 = vld [vmem:[%s387 + $0x558] sm:$0xff]
        %v715 = vld [vmem:[%s387 + $0x560] sm:$0xf]
        %v716 = vld [vmem:[%s387 + $0x564] sm:$0xff]
        %v717 = vld [vmem:[%s387 + $0x56c] sm:$0xf]
        %v718 = vld [vmem:[%s387 + $0x570] sm:$0xff]
        %v719 = vld [vmem:[%s387 + $0x578] sm:$0xf]
        %v720 = vld [vmem:[%s387 + $0x57c] sm:$0xff]
        %v721 = vld [vmem:[%s387 + $0x584] sm:$0xf]
        %v722 = vld [vmem:[%s387 + $0x588] sm:$0xff]
        %v723 = vld [vmem:[%s387 + $0x590] sm:$0xf]
        %v724 = vld [vmem:[%s387 + $0x594] sm:$0xff]
        %v725 = vld [vmem:[%s387 + $0x59c] sm:$0xf]
        %v726 = vld [vmem:[%s387 + $0x5a0] sm:$0xff]
        %v727 = vld [vmem:[%s387 + $0x5a8] sm:$0xf]
        %v728 = vld [vmem:[%s387 + $0x5ac] sm:$0xff]
        %v729 = vld [vmem:[%s387 + $0x5b4] sm:$0xf]
        %v730 = vld [vmem:[%s387 + $0x5b8] sm:$0xff]
        %v731 = vld [vmem:[%s387 + $0x5c0] sm:$0xf]
        %v732 = vld [vmem:[%s387 + $0x5c4] sm:$0xff]
        %v733 = vld [vmem:[%s387 + $0x5cc] sm:$0xf]
        %v734 = vld [vmem:[%s387 + $0x5d0] sm:$0xff]
        %v735 = vld [vmem:[%s387 + $0x5d8] sm:$0xf]
        %v736 = vld [vmem:[%s387 + $0x5dc] sm:$0xff]
        %v737 = vld [vmem:[%s387 + $0x5e4] sm:$0xf]
        %v738 = vld [vmem:[%s387 + $0x5e8] sm:$0xff]
        %v739 = vld [vmem:[%s387 + $0x5f0] sm:$0xf]
        %v740 = vld [vmem:[%s387 + $0x5f4] sm:$0xff]
        %v741 = vld [vmem:[%s387 + $0x5fc] sm:$0xf]
        %v742 = vld [vmem:[%s387 + $0x600] sm:$0xff]
        %v743 = vld [vmem:[%s387 + $0x608] sm:$0xf]
        %v744 = vld [vmem:[%s387 + $0x60c] sm:$0xff]
        %v745 = vld [vmem:[%s387 + $0x614] sm:$0xf]
        %v746 = vld [vmem:[%s387 + $0x618] sm:$0xff]
        %v747 = vld [vmem:[%s387 + $0x620] sm:$0xf]
        %v748 = vld [vmem:[%s387 + $0x624] sm:$0xff]
        %v749 = vld [vmem:[%s387 + $0x62c] sm:$0xf]
        %v750 = vld [vmem:[%s387 + $0x630] sm:$0xff]
        %v751 = vld [vmem:[%s387 + $0x638] sm:$0xf]
        %v752 = vld [vmem:[%s387 + $0x63c] sm:$0xff]
        %v753 = vld [vmem:[%s387 + $0x644] sm:$0xf]
        %v754 = vld [vmem:[%s387 + $0x648] sm:$0xff]
        %v755 = vld [vmem:[%s387 + $0x650] sm:$0xf]
        %v756 = vld [vmem:[%s387 + $0x654] sm:$0xff]
        %v757 = vld [vmem:[%s387 + $0x65c] sm:$0xf]
        %v758 = vld [vmem:[%s387 + $0x660] sm:$0xff]
        %v759 = vld [vmem:[%s387 + $0x668] sm:$0xf]
        %v760 = vld [vmem:[%s387 + $0x66c] sm:$0xff]
        %v761 = vld [vmem:[%s387 + $0x674] sm:$0xf]
        %v762 = vld [vmem:[%s387 + $0x678] sm:$0xff]
        %v763 = vld [vmem:[%s387 + $0x680] sm:$0xf]
        %v764 = vld [vmem:[%s387 + $0x684] sm:$0xff]
        %v765 = vld [vmem:[%s387 + $0x68c] sm:$0xf]
        %v766 = vld [vmem:[%s387 + $0x690] sm:$0xff]
        %v767 = vld [vmem:[%s387 + $0x698] sm:$0xf]
        %v768 = vld [vmem:[%s387 + $0x69c] sm:$0xff]
        %v769 = vld [vmem:[%s387 + $0x6a4] sm:$0xf]
        %v770 = vld [vmem:[%s387 + $0x6a8] sm:$0xff]
        %v771 = vld [vmem:[%s387 + $0x6b0] sm:$0xf]
        %v772 = vld [vmem:[%s387 + $0x6b4] sm:$0xff]
        %v773 = vld [vmem:[%s387 + $0x6bc] sm:$0xf]
        %v774 = vld [vmem:[%s387 + $0x6c0] sm:$0xff]
        %v775 = vld [vmem:[%s387 + $0x6c8] sm:$0xf]
        %v776 = vld [vmem:[%s387 + $0x6cc] sm:$0xff]
        %v777 = vld [vmem:[%s387 + $0x6d4] sm:$0xf]
        %v778 = vld [vmem:[%s387 + $0x6d8] sm:$0xff]
        %v779 = vld [vmem:[%s387 + $0x6e0] sm:$0xf]
        %v780 = vld [vmem:[%s387 + $0x6e4] sm:$0xff]
        %v781 = vld [vmem:[%s387 + $0x6ec] sm:$0xf]
        %v782 = vld [vmem:[%s387 + $0x6f0] sm:$0xff]
        %v783 = vld [vmem:[%s387 + $0x6f8] sm:$0xf]
        %v784 = vld [vmem:[%s387 + $0x6fc] sm:$0xff]
        %v785 = vld [vmem:[%s387 + $0x704] sm:$0xf]
        %v786 = vld [vmem:[%s387 + $0x708] sm:$0xff]
        %v787 = vld [vmem:[%s387 + $0x710] sm:$0xf]
        %v788 = vld [vmem:[%s387 + $0x714] sm:$0xff]
        %v789 = vld [vmem:[%s387 + $0x71c] sm:$0xf]
        %v790 = vld [vmem:[%s387 + $0x720] sm:$0xff]
        %v791 = vld [vmem:[%s387 + $0x728] sm:$0xf]
        %v792 = vld [vmem:[%s387 + $0x72c] sm:$0xff]
        %v793 = vld [vmem:[%s387 + $0x734] sm:$0xf]
        %v794 = vld [vmem:[%s387 + $0x738] sm:$0xff]
        %v795 = vld [vmem:[%s387 + $0x740] sm:$0xf]
        %v796 = vld [vmem:[%s387 + $0x744] sm:$0xff]
        %v797 = vld [vmem:[%s387 + $0x74c] sm:$0xf]
        %v798 = vld [vmem:[%s387 + $0x750] sm:$0xff]
        %v799 = vld [vmem:[%s387 + $0x758] sm:$0xf]
        %v800 = vld [vmem:[%s387 + $0x75c] sm:$0xff]
        %v801 = vld [vmem:[%s387 + $0x764] sm:$0xf]
        %v802 = vld [vmem:[%s387 + $0x768] sm:$0xff]
        %v803 = vld [vmem:[%s387 + $0x770] sm:$0xf]
        %v804 = vld [vmem:[%s387 + $0x774] sm:$0xff]
        %v805 = vld [vmem:[%s387 + $0x77c] sm:$0xf]
        %v806 = vld [vmem:[%s387 + $0x780] sm:$0xff]
        %v807 = vld [vmem:[%s387 + $0x788] sm:$0xf]
        %v808 = vld [vmem:[%s387 + $0x78c] sm:$0xff]
        %v809 = vld [vmem:[%s387 + $0x794] sm:$0xf]
        %v810 = vld [vmem:[%s387 + $0x798] sm:$0xff]
        %v811 = vld [vmem:[%s387 + $0x7a0] sm:$0xf]
        %v812 = vld [vmem:[%s387 + $0x7a4] sm:$0xff]
        %v813 = vld [vmem:[%s387 + $0x7ac] sm:$0xf]
        %v814 = vld [vmem:[%s387 + $0x7b0] sm:$0xff]
        %v815 = vld [vmem:[%s387 + $0x7b8] sm:$0xf]
        %v816 = vld [vmem:[%s387 + $0x7bc] sm:$0xff]
        %v817 = vld [vmem:[%s387 + $0x7c4] sm:$0xf]
        %v818 = vld [vmem:[%s387 + $0x7c8] sm:$0xff]
        %v819 = vld [vmem:[%s387 + $0x7d0] sm:$0xf]
        %v820 = vld [vmem:[%s387 + $0x7d4] sm:$0xff]
        %v821 = vld [vmem:[%s387 + $0x7dc] sm:$0xf]
        %v822 = vld [vmem:[%s387 + $0x7e0] sm:$0xff]
        %v823 = vld [vmem:[%s387 + $0x7e8] sm:$0xf]
        %v824 = vld [vmem:[%s387 + $0x7ec] sm:$0xff]
        %v825 = vld [vmem:[%s387 + $0x7f4] sm:$0xf]
        %v826 = vld [vmem:[%s387 + $0x7f8] sm:$0xff]
        %v827 = vld [vmem:[%s387 + $0x800] sm:$0xf]
        %v828 = vld [vmem:[%s387 + $0x804] sm:$0xff]
        %v829 = vld [vmem:[%s387 + $0x80c] sm:$0xf]
        %v830 = vld [vmem:[%s387 + $0x810] sm:$0xff]
        %v831 = vld [vmem:[%s387 + $0x818] sm:$0xf]
        %v832 = vld [vmem:[%s387 + $0x81c] sm:$0xff]
        %v833 = vld [vmem:[%s387 + $0x824] sm:$0xf]
        %v834 = vld [vmem:[%s387 + $0x828] sm:$0xff]
        %v835 = vld [vmem:[%s387 + $0x830] sm:$0xf]
        %v836 = vld [vmem:[%s387 + $0x834] sm:$0xff]
        %v837 = vld [vmem:[%s387 + $0x83c] sm:$0xf]
        %v838 = vld [vmem:[%s387 + $0x840] sm:$0xff]
        %v839 = vld [vmem:[%s387 + $0x848] sm:$0xf]
        %v840 = vld [vmem:[%s387 + $0x84c] sm:$0xff]
        %v841 = vld [vmem:[%s387 + $0x854] sm:$0xf]
        %v842 = vld [vmem:[%s387 + $0x858] sm:$0xff]
        %v843 = vld [vmem:[%s387 + $0x860] sm:$0xf]
        %v844 = vld [vmem:[%s387 + $0x864] sm:$0xff]
        %v845 = vld [vmem:[%s387 + $0x86c] sm:$0xf]
        %v846 = vld [vmem:[%s387 + $0x870] sm:$0xff]
        %v847 = vld [vmem:[%s387 + $0x878] sm:$0xf]
        %v848 = vld [vmem:[%s387 + $0x87c] sm:$0xff]
        %v849 = vld [vmem:[%s387 + $0x884] sm:$0xf]
        %v850 = vld [vmem:[%s387 + $0x888] sm:$0xff]
        %v851 = vld [vmem:[%s387 + $0x890] sm:$0xf]
        %v852 = vld [vmem:[%s387 + $0x894] sm:$0xff]
        %v853 = vld [vmem:[%s387 + $0x89c] sm:$0xf]
        %v854 = vld [vmem:[%s387 + $0x8a0] sm:$0xff]
        %v855 = vld [vmem:[%s387 + $0x8a8] sm:$0xf]
        %v856 = vld [vmem:[%s387 + $0x8ac] sm:$0xff]
        %v857 = vld [vmem:[%s387 + $0x8b4] sm:$0xf]
        %v858 = vld [vmem:[%s387 + $0x8b8] sm:$0xff]
        %v859 = vld [vmem:[%s387 + $0x8c0] sm:$0xf]
        %v860 = vld [vmem:[%s387 + $0x8c4] sm:$0xff]
        %v861 = vld [vmem:[%s387 + $0x8cc] sm:$0xf]
        %v862 = vld [vmem:[%s387 + $0x8d0] sm:$0xff]
        %v863 = vld [vmem:[%s387 + $0x8d8] sm:$0xf]
        %v864 = vld [vmem:[%s387 + $0x8dc] sm:$0xff]
        %v865 = vld [vmem:[%s387 + $0x8e4] sm:$0xf]
        %v866 = vld [vmem:[%s387 + $0x8e8] sm:$0xff]
        %v867 = vld [vmem:[%s387 + $0x8f0] sm:$0xf]
        %v868 = vld [vmem:[%s387 + $0x8f4] sm:$0xff]
        %v869 = vld [vmem:[%s387 + $0x8fc] sm:$0xf]
        %v870 = vld [vmem:[%s387 + $0x900] sm:$0xff]
        %v871 = vld [vmem:[%s387 + $0x908] sm:$0xf]
        %v872 = vld [vmem:[%s387 + $0x90c] sm:$0xff]
        %v873 = vld [vmem:[%s387 + $0x914] sm:$0xf]
        %v874 = vld [vmem:[%s387 + $0x918] sm:$0xff]
        %v875 = vld [vmem:[%s387 + $0x920] sm:$0xf]
        %v876 = vld [vmem:[%s387 + $0x924] sm:$0xff]
        %v877 = vld [vmem:[%s387 + $0x92c] sm:$0xf]
        %v878 = vld [vmem:[%s387 + $0x930] sm:$0xff]
        %v879 = vld [vmem:[%s387 + $0x938] sm:$0xf]
        %v880 = vld [vmem:[%s387 + $0x93c] sm:$0xff]
        %v881 = vld [vmem:[%s387 + $0x944] sm:$0xf]
        %v882 = vld [vmem:[%s387 + $0x948] sm:$0xff]
        %v883 = vld [vmem:[%s387 + $0x950] sm:$0xf]
        %v884 = vld [vmem:[%s387 + $0x954] sm:$0xff]
        %v885 = vld [vmem:[%s387 + $0x95c] sm:$0xf]
        %v886 = vld [vmem:[%s387 + $0x960] sm:$0xff]
        %v887 = vld [vmem:[%s387 + $0x968] sm:$0xf]
        %v888 = vld [vmem:[%s387 + $0x96c] sm:$0xff]
        %v889 = vld [vmem:[%s387 + $0x974] sm:$0xf]
        %v890 = vld [vmem:[%s387 + $0x978] sm:$0xff]
        %v891 = vld [vmem:[%s387 + $0x980] sm:$0xf]
        %v892 = vld [vmem:[%s387 + $0x984] sm:$0xff]
        %v893 = vld [vmem:[%s387 + $0x98c] sm:$0xf]
        %v894 = vld [vmem:[%s387 + $0x990] sm:$0xff]
        %v895 = vld [vmem:[%s387 + $0x998] sm:$0xf]
        %v896 = vld [vmem:[%s387 + $0x99c] sm:$0xff]
        %v897 = vld [vmem:[%s387 + $0x9a4] sm:$0xf]
        %v898 = vld [vmem:[%s387 + $0x9a8] sm:$0xff]
        %v899 = vld [vmem:[%s387 + $0x9b0] sm:$0xf]
        %v900 = vld [vmem:[%s387 + $0x9b4] sm:$0xff]
        %v901 = vld [vmem:[%s387 + $0x9bc] sm:$0xf]
        %v902 = vld [vmem:[%s387 + $0x9c0] sm:$0xff]
        %v903 = vld [vmem:[%s387 + $0x9c8] sm:$0xf]
        %v904 = vld [vmem:[%s387 + $0x9cc] sm:$0xff]
        %v905 = vld [vmem:[%s387 + $0x9d4] sm:$0xf]
        %v906 = vld [vmem:[%s387 + $0x9d8] sm:$0xff]
        %v907 = vld [vmem:[%s387 + $0x9e0] sm:$0xf]
        %v908 = vld [vmem:[%s387 + $0x9e4] sm:$0xff]
        %v909 = vld [vmem:[%s387 + $0x9ec] sm:$0xf]
        %v910 = vld [vmem:[%s387 + $0x9f0] sm:$0xff]
        %v911 = vld [vmem:[%s387 + $0x9f8] sm:$0xf]
        %v912 = vld [vmem:[%s387 + $0x9fc] sm:$0xff]
        %v913 = vld [vmem:[%s387 + $0xa04] sm:$0xf]
        %v914 = vld [vmem:[%s387 + $0xa08] sm:$0xff]
        %v915 = vld [vmem:[%s387 + $0xa10] sm:$0xf]
        %v916 = vld [vmem:[%s387 + $0xa14] sm:$0xff]
        %v917 = vld [vmem:[%s387 + $0xa1c] sm:$0xf]
        %v918 = vld [vmem:[%s387 + $0xa20] sm:$0xff]
        %v919 = vld [vmem:[%s387 + $0xa28] sm:$0xf]
        %v920 = vld [vmem:[%s387 + $0xa2c] sm:$0xff]
        %v921 = vld [vmem:[%s387 + $0xa34] sm:$0xf]
        %v922 = vld [vmem:[%s387 + $0xa38] sm:$0xff]
        %v923 = vld [vmem:[%s387 + $0xa40] sm:$0xf]
        %v924 = vld [vmem:[%s387 + $0xa44] sm:$0xff]
        %v925 = vld [vmem:[%s387 + $0xa4c] sm:$0xf]
        %v926 = vld [vmem:[%s387 + $0xa50] sm:$0xff]
        %v927 = vld [vmem:[%s387 + $0xa58] sm:$0xf]
        %v928 = vld [vmem:[%s387 + $0xa5c] sm:$0xff]
        %v929 = vld [vmem:[%s387 + $0xa64] sm:$0xf]
        %v930 = vld [vmem:[%s387 + $0xa68] sm:$0xff]
        %v931 = vld [vmem:[%s387 + $0xa70] sm:$0xf]
        %v932 = vld [vmem:[%s387 + $0xa74] sm:$0xff]
        %v933 = vld [vmem:[%s387 + $0xa7c] sm:$0xf]
        %v934 = vld [vmem:[%s387 + $0xa80] sm:$0xff]
        %v935 = vld [vmem:[%s387 + $0xa88] sm:$0xf]
        %v936 = vld [vmem:[%s387 + $0xa8c] sm:$0xff]
        %v937 = vld [vmem:[%s387 + $0xa94] sm:$0xf]
        %v938 = vld [vmem:[%s387 + $0xa98] sm:$0xff]
        %v939 = vld [vmem:[%s387 + $0xaa0] sm:$0xf]
        %v940 = vld [vmem:[%s387 + $0xaa4] sm:$0xff]
        %v941 = vld [vmem:[%s387 + $0xaac] sm:$0xf]
        %v942 = vld [vmem:[%s387 + $0xab0] sm:$0xff]
        %v943 = vld [vmem:[%s387 + $0xab8] sm:$0xf]
        %v944 = vld [vmem:[%s387 + $0xabc] sm:$0xff]
        %v945 = vld [vmem:[%s387 + $0xac4] sm:$0xf]
        %v946 = vld [vmem:[%s387 + $0xac8] sm:$0xff]
        %v947 = vld [vmem:[%s387 + $0xad0] sm:$0xf]
        %v948 = vld [vmem:[%s387 + $0xad4] sm:$0xff]
        %v949 = vld [vmem:[%s387 + $0xadc] sm:$0xf]
        %v950 = vld [vmem:[%s387 + $0xae0] sm:$0xff]
        %v951 = vld [vmem:[%s387 + $0xae8] sm:$0xf]
        %v952 = vld [vmem:[%s387 + $0xaec] sm:$0xff]
        %v953 = vld [vmem:[%s387 + $0xaf4] sm:$0xf]
        %v954 = vld [vmem:[%s387 + $0xaf8] sm:$0xff]
        %v955 = vld [vmem:[%s387 + $0xb00] sm:$0xf]
        %v956 = vld [vmem:[%s387 + $0xb04] sm:$0xff]
        %v957 = vld [vmem:[%s387 + $0xb0c] sm:$0xf]
        %v958 = vld [vmem:[%s387 + $0xb10] sm:$0xff]
        %v959 = vld [vmem:[%s387 + $0xb18] sm:$0xf]
        %v960 = vld [vmem:[%s387 + $0xb1c] sm:$0xff]
        %v961 = vld [vmem:[%s387 + $0xb24] sm:$0xf]
        %v962 = vld [vmem:[%s387 + $0xb28] sm:$0xff]
        %v963 = vld [vmem:[%s387 + $0xb30] sm:$0xf]
        %v964 = vld [vmem:[%s387 + $0xb34] sm:$0xff]
        %v965 = vld [vmem:[%s387 + $0xb3c] sm:$0xf]
        %v966 = vld [vmem:[%s387 + $0xb40] sm:$0xff]
        %v967 = vld [vmem:[%s387 + $0xb48] sm:$0xf]
        %v968 = vld [vmem:[%s387 + $0xb4c] sm:$0xff]
        %v969 = vld [vmem:[%s387 + $0xb54] sm:$0xf]
        %v970 = vld [vmem:[%s387 + $0xb58] sm:$0xff]
        %v971 = vld [vmem:[%s387 + $0xb60] sm:$0xf]
        %v972 = vld [vmem:[%s387 + $0xb64] sm:$0xff]
        %v973 = vld [vmem:[%s387 + $0xb6c] sm:$0xf]
        %v974 = vld [vmem:[%s387 + $0xb70] sm:$0xff]
        %v975 = vld [vmem:[%s387 + $0xb78] sm:$0xf]
        %v976 = vld [vmem:[%s387 + $0xb7c] sm:$0xff]
        %v977 = vld [vmem:[%s387 + $0xb84] sm:$0xf]
        %v978 = vld [vmem:[%s387 + $0xb88] sm:$0xff]
        %v979 = vld [vmem:[%s387 + $0xb90] sm:$0xf]
        %v980 = vld [vmem:[%s387 + $0xb94] sm:$0xff]
        %v981 = vld [vmem:[%s387 + $0xb9c] sm:$0xf]
        %v982 = vld [vmem:[%s387 + $0xba0] sm:$0xff]
        %v983 = vld [vmem:[%s387 + $0xba8] sm:$0xf]
        %v984 = vld [vmem:[%s387 + $0xbac] sm:$0xff]
        %v985 = vld [vmem:[%s387 + $0xbb4] sm:$0xf]
        %v986 = vld [vmem:[%s387 + $0xbb8] sm:$0xff]
        %v987 = vld [vmem:[%s387 + $0xbc0] sm:$0xf]
        %v988 = vld [vmem:[%s387 + $0xbc4] sm:$0xff]
        %v989 = vld [vmem:[%s387 + $0xbcc] sm:$0xf]
        %v990 = vld [vmem:[%s387 + $0xbd0] sm:$0xff]
        %v991 = vld [vmem:[%s387 + $0xbd8] sm:$0xf]
        %v992 = vld [vmem:[%s387 + $0xbdc] sm:$0xff]
        %v993 = vld [vmem:[%s387 + $0xbe4] sm:$0xf]
        %v994 = vld [vmem:[%s387 + $0xbe8] sm:$0xff]
        %v995 = vld [vmem:[%s387 + $0xbf0] sm:$0xf]
        %v996 = vld [vmem:[%s387 + $0xbf4] sm:$0xff]
        %v997 = vld [vmem:[%s387 + $0xbfc] sm:$0xf]
        %v998 = vld [vmem:[%s387 + $0xc00] sm:$0xff]
        %v999 = vld [vmem:[%s387 + $0xc08] sm:$0xf]
        %v1000 = vld [vmem:[%s387 + $0xc0c] sm:$0xff]
        %v1001 = vld [vmem:[%s387 + $0xc14] sm:$0xf]
        %v1002 = vld [vmem:[%s387 + $0xc18] sm:$0xff]
        %v1003 = vld [vmem:[%s387 + $0xc20] sm:$0xf]
        %v1004 = vld [vmem:[%s387 + $0xc24] sm:$0xff]
        %v1005 = vld [vmem:[%s387 + $0xc2c] sm:$0xf]
        %v1006 = vld [vmem:[%s387 + $0xc30] sm:$0xff]
        %v1007 = vld [vmem:[%s387 + $0xc38] sm:$0xf]
        %v1008 = vld [vmem:[%s387 + $0xc3c] sm:$0xff]
        %v1009 = vld [vmem:[%s387 + $0xc44] sm:$0xf]
        %v1010 = vld [vmem:[%s387 + $0xc48] sm:$0xff]
        %v1011 = vld [vmem:[%s387 + $0xc50] sm:$0xf]
        %v1012 = vld [vmem:[%s387 + $0xc54] sm:$0xff]
        %v1013 = vld [vmem:[%s387 + $0xc5c] sm:$0xf]
        %v1014 = vld [vmem:[%s387 + $0xc60] sm:$0xff]
        %v1015 = vld [vmem:[%s387 + $0xc68] sm:$0xf]
        %v1016 = vld [vmem:[%s387 + $0xc6c] sm:$0xff]
        %v1017 = vld [vmem:[%s387 + $0xc74] sm:$0xf]
        %v1018 = vld [vmem:[%s387 + $0xc78] sm:$0xff]
        %v1019 = vld [vmem:[%s387 + $0xc80] sm:$0xf]
        %v1020 = vld [vmem:[%s387 + $0xc84] sm:$0xff]
        %v1021 = vld [vmem:[%s387 + $0xc8c] sm:$0xf]
        %v1022 = vld [vmem:[%s387 + $0xc90] sm:$0xff]
        %v1023 = vld [vmem:[%s387 + $0xc98] sm:$0xf]
        %v1024 = vld [vmem:[%s387 + $0xc9c] sm:$0xff]
        %v1025 = vld [vmem:[%s387 + $0xca4] sm:$0xf]
        %v1026 = vld [vmem:[%s387 + $0xca8] sm:$0xff]
        %v1027 = vld [vmem:[%s387 + $0xcb0] sm:$0xf]
        %v1028 = vld [vmem:[%s387 + $0xcb4] sm:$0xff]
        %v1029 = vld [vmem:[%s387 + $0xcbc] sm:$0xf]
        %v1030 = vld [vmem:[%s387 + $0xcc0] sm:$0xff]
        %v1031 = vld [vmem:[%s387 + $0xcc8] sm:$0xf]
        %v1032 = vld [vmem:[%s387 + $0xccc] sm:$0xff]
        %v1033 = vld [vmem:[%s387 + $0xcd4] sm:$0xf]
        %v1034 = vld [vmem:[%s387 + $0xcd8] sm:$0xff]
        %v1035 = vld [vmem:[%s387 + $0xce0] sm:$0xf]
        %v1036 = vld [vmem:[%s387 + $0xce4] sm:$0xff]
        %v1037 = vld [vmem:[%s387 + $0xcec] sm:$0xf]
        %v1038 = vld [vmem:[%s387 + $0xcf0] sm:$0xff]
        %v1039 = vld [vmem:[%s387 + $0xcf8] sm:$0xf]
        %v1040 = vld [vmem:[%s387 + $0xcfc] sm:$0xff]
        %v1041 = vld [vmem:[%s387 + $0xd04] sm:$0xf]
        %v1042 = vld [vmem:[%s387 + $0xd08] sm:$0xff]
        %v1043 = vld [vmem:[%s387 + $0xd10] sm:$0xf]
        %v1044 = vld [vmem:[%s387 + $0xd14] sm:$0xff]
        %v1045 = vld [vmem:[%s387 + $0xd1c] sm:$0xf]
        %v1046 = vld [vmem:[%s387 + $0xd20] sm:$0xff]
        %v1047 = vld [vmem:[%s387 + $0xd28] sm:$0xf]
        %v1048 = vld [vmem:[%s387 + $0xd2c] sm:$0xff]
        %v1049 = vld [vmem:[%s387 + $0xd34] sm:$0xf]
        %v1050 = vld [vmem:[%s387 + $0xd38] sm:$0xff]
        %v1051 = vld [vmem:[%s387 + $0xd40] sm:$0xf]
        %v1052 = vld [vmem:[%s387 + $0xd44] sm:$0xff]
        %v1053 = vld [vmem:[%s387 + $0xd4c] sm:$0xf]
        %v1054 = vld [vmem:[%s387 + $0xd50] sm:$0xff]
        %v1055 = vld [vmem:[%s387 + $0xd58] sm:$0xf]
        %v1056 = vld [vmem:[%s387 + $0xd5c] sm:$0xff]
        %v1057 = vld [vmem:[%s387 + $0xd64] sm:$0xf]
        %v1058 = vld [vmem:[%s387 + $0xd68] sm:$0xff]
        %v1059 = vld [vmem:[%s387 + $0xd70] sm:$0xf]
        %v1060 = vld [vmem:[%s387 + $0xd74] sm:$0xff]
        %v1061 = vld [vmem:[%s387 + $0xd7c] sm:$0xf]
        %v1062 = vld [vmem:[%s387 + $0xd80] sm:$0xff]
        %v1063 = vld [vmem:[%s387 + $0xd88] sm:$0xf]
        %v1064 = vld [vmem:[%s387 + $0xd8c] sm:$0xff]
        %v1065 = vld [vmem:[%s387 + $0xd94] sm:$0xf]
        %v1066 = vld [vmem:[%s387 + $0xd98] sm:$0xff]
        %v1067 = vld [vmem:[%s387 + $0xda0] sm:$0xf]
        %v1068 = vld [vmem:[%s387 + $0xda4] sm:$0xff]
        %v1069 = vld [vmem:[%s387 + $0xdac] sm:$0xf]
        %v1070 = vld [vmem:[%s387 + $0xdb0] sm:$0xff]
        %v1071 = vld [vmem:[%s387 + $0xdb8] sm:$0xf]
        %v1072 = vld [vmem:[%s387 + $0xdbc] sm:$0xff]
        %v1073 = vld [vmem:[%s387 + $0xdc4] sm:$0xf]
        %v1074 = vld [vmem:[%s387 + $0xdc8] sm:$0xff]
        %v1075 = vld [vmem:[%s387 + $0xdd0] sm:$0xf]
        %v1076 = vld [vmem:[%s387 + $0xdd4] sm:$0xff]
        %v1077 = vld [vmem:[%s387 + $0xddc] sm:$0xf]
        %v1078 = vld [vmem:[%s387 + $0xde0] sm:$0xff]
        %v1079 = vld [vmem:[%s387 + $0xde8] sm:$0xf]
        %v1080 = vld [vmem:[%s387 + $0xdec] sm:$0xff]
        %v1081 = vld [vmem:[%s387 + $0xdf4] sm:$0xf]
        %v1082 = vld [vmem:[%s387 + $0xdf8] sm:$0xff]
        %v1083 = vld [vmem:[%s387 + $0xe00] sm:$0xf]
        %v1084 = vld [vmem:[%s387 + $0xe04] sm:$0xff]
        %v1085 = vld [vmem:[%s387 + $0xe0c] sm:$0xf]
        %v1086 = vld [vmem:[%s387 + $0xe10] sm:$0xff]
        %v1087 = vld [vmem:[%s387 + $0xe18] sm:$0xf]
        %v1088 = vld [vmem:[%s387 + $0xe1c] sm:$0xff]
        %v1089 = vld [vmem:[%s387 + $0xe24] sm:$0xf]
        %v1090 = vld [vmem:[%s387 + $0xe28] sm:$0xff]
        %v1091 = vld [vmem:[%s387 + $0xe30] sm:$0xf]
        %v1092 = vld [vmem:[%s387 + $0xe34] sm:$0xff]
        %v1093 = vld [vmem:[%s387 + $0xe3c] sm:$0xf]
        %v1094 = vld [vmem:[%s387 + $0xe40] sm:$0xff]
        %v1095 = vld [vmem:[%s387 + $0xe48] sm:$0xf]
        %v1096 = vld [vmem:[%s387 + $0xe4c] sm:$0xff]
        %v1097 = vld [vmem:[%s387 + $0xe54] sm:$0xf]
        %v1098 = vld [vmem:[%s387 + $0xe58] sm:$0xff]
        %v1099 = vld [vmem:[%s387 + $0xe60] sm:$0xf]
        %v1100 = vld [vmem:[%s387 + $0xe64] sm:$0xff]
        %v1101 = vld [vmem:[%s387 + $0xe6c] sm:$0xf]
        %v1102 = vld [vmem:[%s387 + $0xe70] sm:$0xff]
        %v1103 = vld [vmem:[%s387 + $0xe78] sm:$0xf]
        %v1104 = vld [vmem:[%s387 + $0xe7c] sm:$0xff]
        %v1105 = vld [vmem:[%s387 + $0xe84] sm:$0xf]
        %v1106 = vld [vmem:[%s387 + $0xe88] sm:$0xff]
        %v1107 = vld [vmem:[%s387 + $0xe90] sm:$0xf]
        %v1108 = vld [vmem:[%s387 + $0xe94] sm:$0xff]
        %v1109 = vld [vmem:[%s387 + $0xe9c] sm:$0xf]
        %v1110 = vld [vmem:[%s387 + $0xea0] sm:$0xff]
        %v1111 = vld [vmem:[%s387 + $0xea8] sm:$0xf]
        %v1112 = vld [vmem:[%s387 + $0xeac] sm:$0xff]
        %v1113 = vld [vmem:[%s387 + $0xeb4] sm:$0xf]
        %v1114 = vld [vmem:[%s387 + $0xeb8] sm:$0xff]
        %v1115 = vld [vmem:[%s387 + $0xec0] sm:$0xf]
        %v1116 = vld [vmem:[%s387 + $0xec4] sm:$0xff]
        %v1117 = vld [vmem:[%s387 + $0xecc] sm:$0xf]
        %v1118 = vld [vmem:[%s387 + $0xed0] sm:$0xff]
        %v1119 = vld [vmem:[%s387 + $0xed8] sm:$0xf]
        %v1120 = vld [vmem:[%s387 + $0xedc] sm:$0xff]
        %v1121 = vld [vmem:[%s387 + $0xee4] sm:$0xf]
        %v1122 = vld [vmem:[%s387 + $0xee8] sm:$0xff]
        %v1123 = vld [vmem:[%s387 + $0xef0] sm:$0xf]
        %v1124 = vld [vmem:[%s387 + $0xef4] sm:$0xff]
        %v1125 = vld [vmem:[%s387 + $0xefc] sm:$0xf]
        %v1126 = vld [vmem:[%s387 + $0xf00] sm:$0xff]
        %v1127 = vld [vmem:[%s387 + $0xf08] sm:$0xf]
        %v1128 = vld [vmem:[%s387 + $0xf0c] sm:$0xff]
        %v1129 = vld [vmem:[%s387 + $0xf14] sm:$0xf]
        %v1130 = vld [vmem:[%s387 + $0xf18] sm:$0xff]
        %v1131 = vld [vmem:[%s387 + $0xf20] sm:$0xf]
        %v1132 = vld [vmem:[%s387 + $0xf24] sm:$0xff]
        %v1133 = vld [vmem:[%s387 + $0xf2c] sm:$0xf]
        %v1134 = vld [vmem:[%s387 + $0xf30] sm:$0xff]
        %v1135 = vld [vmem:[%s387 + $0xf38] sm:$0xf]
        %v1136 = vld [vmem:[%s387 + $0xf3c] sm:$0xff]
        %v1137 = vld [vmem:[%s387 + $0xf44] sm:$0xf]
        %v1138 = vld [vmem:[%s387 + $0xf48] sm:$0xff]
        %v1139 = vld [vmem:[%s387 + $0xf50] sm:$0xf]
        %v1140 = vld [vmem:[%s387 + $0xf54] sm:$0xff]
        %v1141 = vld [vmem:[%s387 + $0xf5c] sm:$0xf]
        %v1142 = vld [vmem:[%s387 + $0xf60] sm:$0xff]
        %v1143 = vld [vmem:[%s387 + $0xf68] sm:$0xf]
        %v1144 = vld [vmem:[%s387 + $0xf6c] sm:$0xff]
        %v1145 = vld [vmem:[%s387 + $0xf74] sm:$0xf]
        %v1146 = vld [vmem:[%s387 + $0xf78] sm:$0xff]
        %v1147 = vld [vmem:[%s387 + $0xf80] sm:$0xf]
        %v1148 = vld [vmem:[%s387 + $0xf84] sm:$0xff]
        %v1149 = vld [vmem:[%s387 + $0xf8c] sm:$0xf]
        %v1150 = vld [vmem:[%s387 + $0xf90] sm:$0xff]
        %v1151 = vld [vmem:[%s387 + $0xf98] sm:$0xf]
        %v1152 = vld [vmem:[%s387 + $0xf9c] sm:$0xff]
        %v1153 = vld [vmem:[%s387 + $0xfa4] sm:$0xf]
        %v1154 = vld [vmem:[%s387 + $0xfa8] sm:$0xff]
        %v1155 = vld [vmem:[%s387 + $0xfb0] sm:$0xf]
        %v1156 = vld [vmem:[%s387 + $0xfb4] sm:$0xff]
        %v1157 = vld [vmem:[%s387 + $0xfbc] sm:$0xf]
        %v1158 = vld [vmem:[%s387 + $0xfc0] sm:$0xff]
        %v1159 = vld [vmem:[%s387 + $0xfc8] sm:$0xf]
        %v1160 = vld [vmem:[%s387 + $0xfcc] sm:$0xff]
        %v1161 = vld [vmem:[%s387 + $0xfd4] sm:$0xf]
        %v1162 = vld [vmem:[%s387 + $0xfd8] sm:$0xff]
        %v1163 = vld [vmem:[%s387 + $0xfe0] sm:$0xf]
        %v1164 = vld [vmem:[%s387 + $0xfe4] sm:$0xff]
        %v1165 = vld [vmem:[%s387 + $0xfec] sm:$0xf]
        %v1166 = vld [vmem:[%s387 + $0xff0] sm:$0xff]
        %v1167 = vld [vmem:[%s387 + $0xff8] sm:$0xf]
        %v1168 = vld [vmem:[%s387 + $0xffc] sm:$0xff]
        %v1169 = vld [vmem:[%s387 + $0x1004] sm:$0xf]
        %v1170 = vld [vmem:[%s387 + $0x1008] sm:$0xff]
        %v1171 = vld [vmem:[%s387 + $0x1010] sm:$0xf]
        %v1172 = vld [vmem:[%s387 + $0x1014] sm:$0xff]
        %v1173 = vld [vmem:[%s387 + $0x101c] sm:$0xf]
        %v1174 = vld [vmem:[%s387 + $0x1020] sm:$0xff]
        %v1175 = vld [vmem:[%s387 + $0x1028] sm:$0xf]
        %v1176 = vld [vmem:[%s387 + $0x102c] sm:$0xff]
        %v1177 = vld [vmem:[%s387 + $0x1034] sm:$0xf]
        %v1178 = vld [vmem:[%s387 + $0x1038] sm:$0xff]
        %v1179 = vld [vmem:[%s387 + $0x1040] sm:$0xf]
        %v1180 = vld [vmem:[%s387 + $0x1044] sm:$0xff]
        %v1181 = vld [vmem:[%s387 + $0x104c] sm:$0xf]
        %v1182 = vld [vmem:[%s387 + $0x1050] sm:$0xff]
        %v1183 = vld [vmem:[%s387 + $0x1058] sm:$0xf]
        %v1184 = vld [vmem:[%s387 + $0x105c] sm:$0xff]
        %v1185 = vld [vmem:[%s387 + $0x1064] sm:$0xf]
        %v1186 = vld [vmem:[%s387 + $0x1068] sm:$0xff]
        %v1187 = vld [vmem:[%s387 + $0x1070] sm:$0xf]
        %v1188 = vld [vmem:[%s387 + $0x1074] sm:$0xff]
        %v1189 = vld [vmem:[%s387 + $0x107c] sm:$0xf]
        %v1190 = vld [vmem:[%s387 + $0x1080] sm:$0xff]
        %v1191 = vld [vmem:[%s387 + $0x1088] sm:$0xf]
        %v1192 = vld [vmem:[%s387 + $0x108c] sm:$0xff]
        %v1193 = vld [vmem:[%s387 + $0x1094] sm:$0xf]
        %v1194 = vld [vmem:[%s387 + $0x1098] sm:$0xff]
        %v1195 = vld [vmem:[%s387 + $0x10a0] sm:$0xf]
        %v1196 = vld [vmem:[%s387 + $0x10a4] sm:$0xff]
        %v1197 = vld [vmem:[%s387 + $0x10ac] sm:$0xf]
        %v1198 = vld [vmem:[%s387 + $0x10b0] sm:$0xff]
        %v1199 = vld [vmem:[%s387 + $0x10b8] sm:$0xf]
        %v1200 = vld [vmem:[%s387 + $0x10bc] sm:$0xff]
        %v1201 = vld [vmem:[%s387 + $0x10c4] sm:$0xf]
        %v1202 = vld [vmem:[%s387 + $0x10c8] sm:$0xff]
        %v1203 = vld [vmem:[%s387 + $0x10d0] sm:$0xf]
        %v1204 = vld [vmem:[%s387 + $0x10d4] sm:$0xff]
        %v1205 = vld [vmem:[%s387 + $0x10dc] sm:$0xf]
        %v1206 = vld [vmem:[%s387 + $0x10e0] sm:$0xff]
        %v1207 = vld [vmem:[%s387 + $0x10e8] sm:$0xf]
        %v1208 = vld [vmem:[%s387 + $0x10ec] sm:$0xff]
        %v1209 = vld [vmem:[%s387 + $0x10f4] sm:$0xf]
        %v1210 = vld [vmem:[%s387 + $0x10f8] sm:$0xff]
        %v1211 = vld [vmem:[%s387 + $0x1100] sm:$0xf]
        %v1212 = vld [vmem:[%s387 + $0x1104] sm:$0xff]
        %v1213 = vld [vmem:[%s387 + $0x110c] sm:$0xf]
        %v1214 = vld [vmem:[%s387 + $0x1110] sm:$0xff]
        %v1215 = vld [vmem:[%s387 + $0x1118] sm:$0xf]
        %v1216 = vld [vmem:[%s387 + $0x111c] sm:$0xff]
        %v1217 = vld [vmem:[%s387 + $0x1124] sm:$0xf]
        %v1218 = vld [vmem:[%s387 + $0x1128] sm:$0xff]
        %v1219 = vld [vmem:[%s387 + $0x1130] sm:$0xf]
        %v1220 = vld [vmem:[%s387 + $0x1134] sm:$0xff]
        %v1221 = vld [vmem:[%s387 + $0x113c] sm:$0xf]
        %v1222 = vld [vmem:[%s387 + $0x1140] sm:$0xff]
        %v1223 = vld [vmem:[%s387 + $0x1148] sm:$0xf]
        %v1224 = vld [vmem:[%s387 + $0x114c] sm:$0xff]
        %v1225 = vld [vmem:[%s387 + $0x1154] sm:$0xf]
        %v1226 = vld [vmem:[%s387 + $0x1158] sm:$0xff]
        %v1227 = vld [vmem:[%s387 + $0x1160] sm:$0xf]
        %v1228 = vld [vmem:[%s387 + $0x1164] sm:$0xff]
        %v1229 = vld [vmem:[%s387 + $0x116c] sm:$0xf]
        %v1230 = vld [vmem:[%s387 + $0x1170] sm:$0xff]
        %v1231 = vld [vmem:[%s387 + $0x1178] sm:$0xf]
        %v1232 = vld [vmem:[%s387 + $0x117c] sm:$0xff]
        %v1233 = vld [vmem:[%s387 + $0x1184] sm:$0xf]
        %v1234 = vld [vmem:[%s387 + $0x1188] sm:$0xff]
        %v1235 = vld [vmem:[%s387 + $0x1190] sm:$0xf]
        %v1236 = vld [vmem:[%s387 + $0x1194] sm:$0xff]
        %v1237 = vld [vmem:[%s387 + $0x119c] sm:$0xf]
        %v1238 = vld [vmem:[%s387 + $0x11a0] sm:$0xff]
        %v1239 = vld [vmem:[%s387 + $0x11a8] sm:$0xf]
        %v1240 = vld [vmem:[%s387 + $0x11ac] sm:$0xff]
        %v1241 = vld [vmem:[%s387 + $0x11b4] sm:$0xf]
        %v1242 = vld [vmem:[%s387 + $0x11b8] sm:$0xff]
        %v1243 = vld [vmem:[%s387 + $0x11c0] sm:$0xf]
        %v1244 = vld [vmem:[%s387 + $0x11c4] sm:$0xff]
        %v1245 = vld [vmem:[%s387 + $0x11cc] sm:$0xf]
        %v1246 = vld [vmem:[%s387 + $0x11d0] sm:$0xff]
        %v1247 = vld [vmem:[%s387 + $0x11d8] sm:$0xf]
        %v1248 = vld [vmem:[%s387 + $0x11dc] sm:$0xff]
        %v1249 = vld [vmem:[%s387 + $0x11e4] sm:$0xf]
        %v1250 = vld [vmem:[%s387 + $0x11e8] sm:$0xff]
        %v1251 = vld [vmem:[%s387 + $0x11f0] sm:$0xf]
        %v1252 = vld [vmem:[%s387 + $0x11f4] sm:$0xff]
        %v1253 = vld [vmem:[%s387 + $0x11fc] sm:$0xf]
        %v1254 = vld [vmem:[%s387 + $0x1200] sm:$0xff]
        %v1255 = vld [vmem:[%s387 + $0x1208] sm:$0xf]
        %v1256 = vld [vmem:[%s387 + $0x120c] sm:$0xff]
        %v1257 = vld [vmem:[%s387 + $0x1214] sm:$0xf]
        %v1258 = vld [vmem:[%s387 + $0x1218] sm:$0xff]
        %v1259 = vld [vmem:[%s387 + $0x1220] sm:$0xf]
        %v1260 = vld [vmem:[%s387 + $0x1224] sm:$0xff]
        %v1261 = vld [vmem:[%s387 + $0x122c] sm:$0xf]
        %v1262 = vld [vmem:[%s387 + $0x1230] sm:$0xff]
        %v1263 = vld [vmem:[%s387 + $0x1238] sm:$0xf]
        %v1264 = vld [vmem:[%s387 + $0x123c] sm:$0xff]
        %v1265 = vld [vmem:[%s387 + $0x1244] sm:$0xf]
        %v1266 = vld [vmem:[%s387 + $0x1248] sm:$0xff]
        %v1267 = vld [vmem:[%s387 + $0x1250] sm:$0xf]
        %v1268 = vld [vmem:[%s387 + $0x1254] sm:$0xff]
        %v1269 = vld [vmem:[%s387 + $0x125c] sm:$0xf]
        %v1270 = vld [vmem:[%s387 + $0x1260] sm:$0xff]
        %v1271 = vld [vmem:[%s387 + $0x1268] sm:$0xf]
        %v1272 = vld [vmem:[%s387 + $0x126c] sm:$0xff]
        %v1273 = vld [vmem:[%s387 + $0x1274] sm:$0xf]
        %v1274 = vld [vmem:[%s387 + $0x1278] sm:$0xff]
        %v1275 = vld [vmem:[%s387 + $0x1280] sm:$0xf]
        %v1276 = vld [vmem:[%s387 + $0x1284] sm:$0xff]
        %v1277 = vld [vmem:[%s387 + $0x128c] sm:$0xf]
        %v1278 = vld [vmem:[%s387 + $0x1290] sm:$0xff]
        %v1279 = vld [vmem:[%s387 + $0x1298] sm:$0xf]
        %v1280 = vld [vmem:[%s387 + $0x129c] sm:$0xff]
        %v1281 = vld [vmem:[%s387 + $0x12a4] sm:$0xf]
        %v1282 = vld [vmem:[%s387 + $0x12a8] sm:$0xff]
        %v1283 = vld [vmem:[%s387 + $0x12b0] sm:$0xf]
        %v1284 = vld [vmem:[%s387 + $0x12b4] sm:$0xff]
        %v1285 = vld [vmem:[%s387 + $0x12bc] sm:$0xf]
        %v1286 = vld [vmem:[%s387 + $0x12c0] sm:$0xff]
        %v1287 = vld [vmem:[%s387 + $0x12c8] sm:$0xf]
        %v1288 = vld [vmem:[%s387 + $0x12cc] sm:$0xff]
        %v1289 = vld [vmem:[%s387 + $0x12d4] sm:$0xf]
        %v1290 = vld [vmem:[%s387 + $0x12d8] sm:$0xff]
        %v1291 = vld [vmem:[%s387 + $0x12e0] sm:$0xf]
        %v1292 = vld [vmem:[%s387 + $0x12e4] sm:$0xff]
        %v1293 = vld [vmem:[%s387 + $0x12ec] sm:$0xf]
        %v1294 = vld [vmem:[%s387 + $0x12f0] sm:$0xff]
        %v1295 = vld [vmem:[%s387 + $0x12f8] sm:$0xf]
        %v1296 = vld [vmem:[%s387 + $0x12fc] sm:$0xff]
        %v1297 = vld [vmem:[%s387 + $0x1304] sm:$0xf]
        %v1298 = vld [vmem:[%s387 + $0x1308] sm:$0xff]
        %v1299 = vld [vmem:[%s387 + $0x1310] sm:$0xf]
        %v1300 = vld [vmem:[%s387 + $0x1314] sm:$0xff]
        %v1301 = vld [vmem:[%s387 + $0x131c] sm:$0xf]
        %v1302 = vld [vmem:[%s387 + $0x1320] sm:$0xff]
        %v1303 = vld [vmem:[%s387 + $0x1328] sm:$0xf]
        %v1304 = vld [vmem:[%s387 + $0x132c] sm:$0xff]
        %v1305 = vld [vmem:[%s387 + $0x1334] sm:$0xf]
        %v1306 = vld [vmem:[%s387 + $0x1338] sm:$0xff]
        %v1307 = vld [vmem:[%s387 + $0x1340] sm:$0xf]
        %v1308 = vld [vmem:[%s387 + $0x1344] sm:$0xff]
        %v1309 = vld [vmem:[%s387 + $0x134c] sm:$0xf]
        %v1310 = vld [vmem:[%s387 + $0x1350] sm:$0xff]
        %v1311 = vld [vmem:[%s387 + $0x1358] sm:$0xf]
        %v1312 = vld [vmem:[%s387 + $0x135c] sm:$0xff]
        %v1313 = vld [vmem:[%s387 + $0x1364] sm:$0xf]
        %v1314 = vld [vmem:[%s387 + $0x1368] sm:$0xff]
        %v1315 = vld [vmem:[%s387 + $0x1370] sm:$0xf]
        %v1316 = vld [vmem:[%s387 + $0x1374] sm:$0xff]
        %v1317 = vld [vmem:[%s387 + $0x137c] sm:$0xf]
        %v1318 = vld [vmem:[%s387 + $0x1380] sm:$0xff]
        %v1319 = vld [vmem:[%s387 + $0x1388] sm:$0xf]
        %v1320 = vld [vmem:[%s387 + $0x138c] sm:$0xff]
        %v1321 = vld [vmem:[%s387 + $0x1394] sm:$0xf]
        %v1322 = vld [vmem:[%s387 + $0x1398] sm:$0xff]
        %v1323 = vld [vmem:[%s387 + $0x13a0] sm:$0xf]
        %v1324 = vld [vmem:[%s387 + $0x13a4] sm:$0xff]
        %v1325 = vld [vmem:[%s387 + $0x13ac] sm:$0xf]
        %v1326 = vld [vmem:[%s387 + $0x13b0] sm:$0xff]
        %v1327 = vld [vmem:[%s387 + $0x13b8] sm:$0xf]
        %v1328 = vld [vmem:[%s387 + $0x13bc] sm:$0xff]
        %v1329 = vld [vmem:[%s387 + $0x13c4] sm:$0xf]
        %v1330 = vld [vmem:[%s387 + $0x13c8] sm:$0xff]
        %v1331 = vld [vmem:[%s387 + $0x13d0] sm:$0xf]
        %v1332 = vld [vmem:[%s387 + $0x13d4] sm:$0xff]
        %v1333 = vld [vmem:[%s387 + $0x13dc] sm:$0xf]
        %v1334 = vld [vmem:[%s387 + $0x13e0] sm:$0xff]
        %v1335 = vld [vmem:[%s387 + $0x13e8] sm:$0xf]
        %v1336 = vld [vmem:[%s387 + $0x13ec] sm:$0xff]
        %v1337 = vld [vmem:[%s387 + $0x13f4] sm:$0xf]
        %v1338 = vld [vmem:[%s387 + $0x13f8] sm:$0xff]
        %v1339 = vld [vmem:[%s387 + $0x1400] sm:$0xf]
        %v1340 = vld [vmem:[%s387 + $0x1404] sm:$0xff]
        %v1341 = vld [vmem:[%s387 + $0x140c] sm:$0xf]
        %v1342 = vld [vmem:[%s387 + $0x1410] sm:$0xff]
        %v1343 = vld [vmem:[%s387 + $0x1418] sm:$0xf]
        %v1344 = vld [vmem:[%s387 + $0x141c] sm:$0xff]
        %v1345 = vld [vmem:[%s387 + $0x1424] sm:$0xf]
        %v1346 = vld [vmem:[%s387 + $0x1428] sm:$0xff]
        %v1347 = vld [vmem:[%s387 + $0x1430] sm:$0xf]
        %v1348 = vld [vmem:[%s387 + $0x1434] sm:$0xff]
        %v1349 = vld [vmem:[%s387 + $0x143c] sm:$0xf]
        %v1350 = vld [vmem:[%s387 + $0x1440] sm:$0xff]
        %v1351 = vld [vmem:[%s387 + $0x1448] sm:$0xf]
        %v1352 = vld [vmem:[%s387 + $0x144c] sm:$0xff]
        %v1353 = vld [vmem:[%s387 + $0x1454] sm:$0xf]
        %v1354 = vld [vmem:[%s387 + $0x1458] sm:$0xff]
        %v1355 = vld [vmem:[%s387 + $0x1460] sm:$0xf]
        %v1356 = vld [vmem:[%s387 + $0x1464] sm:$0xff]
        %v1357 = vld [vmem:[%s387 + $0x146c] sm:$0xf]
        %v1358 = vld [vmem:[%s387 + $0x1470] sm:$0xff]
        %v1359 = vld [vmem:[%s387 + $0x1478] sm:$0xf]
        %v1360 = vld [vmem:[%s387 + $0x147c] sm:$0xff]
        %v1361 = vld [vmem:[%s387 + $0x1484] sm:$0xf]
        %v1362 = vld [vmem:[%s387 + $0x1488] sm:$0xff]
        %v1363 = vld [vmem:[%s387 + $0x1490] sm:$0xf]
        %v1364 = vld [vmem:[%s387 + $0x1494] sm:$0xff]
        %v1365 = vld [vmem:[%s387 + $0x149c] sm:$0xf]
        %v1366 = vld [vmem:[%s387 + $0x14a0] sm:$0xff]
        %v1367 = vld [vmem:[%s387 + $0x14a8] sm:$0xf]
        %v1368 = vld [vmem:[%s387 + $0x14ac] sm:$0xff]
        %v1369 = vld [vmem:[%s387 + $0x14b4] sm:$0xf]
        %v1370 = vld [vmem:[%s387 + $0x14b8] sm:$0xff]
        %v1371 = vld [vmem:[%s387 + $0x14c0] sm:$0xf]
        %v1372 = vld [vmem:[%s387 + $0x14c4] sm:$0xff]
        %v1373 = vld [vmem:[%s387 + $0x14cc] sm:$0xf]
        %v1374 = vld [vmem:[%s387 + $0x14d0] sm:$0xff]
        %v1375 = vld [vmem:[%s387 + $0x14d8] sm:$0xf]
        %v1376 = vld [vmem:[%s387 + $0x14dc] sm:$0xff]
        %v1377 = vld [vmem:[%s387 + $0x14e4] sm:$0xf]
        %v1378 = vld [vmem:[%s387 + $0x14e8] sm:$0xff]
        %v1379 = vld [vmem:[%s387 + $0x14f0] sm:$0xf]
        %v1380 = vld [vmem:[%s387 + $0x14f4] sm:$0xff]
        %v1381 = vld [vmem:[%s387 + $0x14fc] sm:$0xf]
        %v1396 = vunpack.c.l.b16 %v472
        %v1397 = vunpack.c.h.b16 %v472
        %v1398 = vunpack.c.l.b16 %v473
        %v1399 = vunpack.c.h.b16 %v473
        %v1400 = vunpack.c.l.b16 %v474
        %v1401 = vunpack.c.h.b16 %v474
        %v1402 = vunpack.c.l.b16 %v475
        %v1403 = vunpack.c.h.b16 %v475
        %v1404 = vunpack.c.l.b16 %v476
        %v1405 = vunpack.c.h.b16 %v476
        %v1406 = vunpack.c.l.b16 %v477
        %v1407 = vunpack.c.h.b16 %v477
        %v1408 = vunpack.c.l.b16 %v478
        %v1409 = vunpack.c.h.b16 %v478
        %v1410 = vunpack.c.l.b16 %v479
        %v1411 = vunpack.c.h.b16 %v479
        %v1412 = vunpack.c.l.b16 %v480
        %v1413 = vunpack.c.h.b16 %v480
        %v1414 = vunpack.c.l.b16 %v481
        %v1415 = vunpack.c.h.b16 %v481
        %v1416 = vunpack.c.l.b16 %v482
        %v1417 = vunpack.c.h.b16 %v482
        %v1418 = vunpack.c.l.b16 %v483
        %v1419 = vunpack.c.h.b16 %v483
        %v1420 = vunpack.c.l.b16 %v484
        %v1421 = vunpack.c.h.b16 %v484
        %v1422 = vunpack.c.l.b16 %v485
        %v1423 = vunpack.c.h.b16 %v485
        %v1424 = vpack.c.b16 %v1396, %v1396
        %v1425 = vpack.c.b16 %v1397, %v1397
        %v1426 = vpack.c.b16 %v1398, %v1398
        %v1427 = vpack.c.b16 %v1399, %v1399
        %v1428 = vpack.c.b16 %v1400, %v1400
        %v1429 = vpack.c.b16 %v1401, %v1401
        %v1430 = vpack.c.b16 %v1402, %v1402
        %v1431 = vpack.c.b16 %v1403, %v1403
        %v1432 = vpack.c.b16 %v1404, %v1404
        %v1433 = vpack.c.b16 %v1405, %v1405
        %v1434 = vpack.c.b16 %v1406, %v1406
        %v1435 = vpack.c.b16 %v1407, %v1407
        %v1436 = vpack.c.b16 %v1408, %v1408
        %v1437 = vpack.c.b16 %v1409, %v1409
        %v1438 = vpack.c.b16 %v1410, %v1410
        %v1439 = vpack.c.b16 %v1411, %v1411
        %v1440 = vpack.c.b16 %v1412, %v1412
        %v1441 = vpack.c.b16 %v1413, %v1413
        %v1442 = vpack.c.b16 %v1414, %v1414
        %v1443 = vpack.c.b16 %v1415, %v1415
        %v1444 = vpack.c.b16 %v1416, %v1416
        %v1445 = vpack.c.b16 %v1417, %v1417
        %v1446 = vpack.c.b16 %v1418, %v1418
        %v1447 = vpack.c.b16 %v1419, %v1419
        %v1448 = vpack.c.b16 %v1420, %v1420
        %v1449 = vpack.c.b16 %v1421, %v1421
        %v1450 = vpack.c.b16 %v1422, %v1422
        %v1451 = vpack.c.b16 %v1423, %v1423
        %v2376 = vunpack.c.l.b16 %v486
        %v2377 = vunpack.c.h.b16 %v486
        %v2378 = vunpack.c.l.b16 %v487
        %v2379 = vunpack.c.l.b16 %v488
        %v2380 = vunpack.c.h.b16 %v488
        %v2381 = vunpack.c.l.b16 %v489
        %v2382 = vunpack.c.l.b16 %v490
        %v2383 = vunpack.c.h.b16 %v490
        %v2384 = vunpack.c.l.b16 %v491
        %v2385 = vunpack.c.l.b16 %v492
        %v2386 = vunpack.c.h.b16 %v492
        %v2387 = vunpack.c.l.b16 %v493
        %v2388 = vunpack.c.l.b16 %v494
        %v2389 = vunpack.c.h.b16 %v494
        %v2390 = vunpack.c.l.b16 %v495
        %v2391 = vunpack.c.l.b16 %v496
        %v2392 = vunpack.c.h.b16 %v496
        %v2393 = vunpack.c.l.b16 %v497
        %v2394 = vunpack.c.l.b16 %v498
        %v2395 = vunpack.c.h.b16 %v498
        %v2396 = vunpack.c.l.b16 %v499
        %v2397 = vunpack.c.l.b16 %v500
        %v2398 = vunpack.c.h.b16 %v500
        %v2399 = vunpack.c.l.b16 %v501
        %v2400 = vunpack.c.l.b16 %v502
        %v2401 = vunpack.c.h.b16 %v502
        %v2402 = vunpack.c.l.b16 %v503
        %v2403 = vunpack.c.l.b16 %v504
        %v2404 = vunpack.c.h.b16 %v504
        %v2405 = vunpack.c.l.b16 %v505
        %v2406 = vunpack.c.l.b16 %v506
        %v2407 = vunpack.c.h.b16 %v506
        %v2408 = vunpack.c.l.b16 %v507
        %v2409 = vunpack.c.l.b16 %v508
        %v2410 = vunpack.c.h.b16 %v508
        %v2411 = vunpack.c.l.b16 %v509
        %v2412 = vunpack.c.l.b16 %v510
        %v2413 = vunpack.c.h.b16 %v510
        %v2414 = vunpack.c.l.b16 %v511
        %v2415 = vunpack.c.l.b16 %v512
        %v2416 = vunpack.c.h.b16 %v512
        %v2417 = vunpack.c.l.b16 %v513
        %v2418 = vunpack.c.l.b16 %v514
        %v2419 = vunpack.c.h.b16 %v514
        %v2420 = vunpack.c.l.b16 %v515
        %v2421 = vunpack.c.l.b16 %v516
        %v2422 = vunpack.c.h.b16 %v516
        %v2423 = vunpack.c.l.b16 %v517
        %v2424 = vunpack.c.l.b16 %v518
        %v2425 = vunpack.c.h.b16 %v518
        %v2426 = vunpack.c.l.b16 %v519
        %v2427 = vunpack.c.l.b16 %v520
        %v2428 = vunpack.c.h.b16 %v520
        %v2429 = vunpack.c.l.b16 %v521
        %v2430 = vunpack.c.l.b16 %v522
        %v2431 = vunpack.c.h.b16 %v522
        %v2432 = vunpack.c.l.b16 %v523
        %v2433 = vunpack.c.l.b16 %v524
        %v2434 = vunpack.c.h.b16 %v524
        %v2435 = vunpack.c.l.b16 %v525
        %v2436 = vunpack.c.l.b16 %v526
        %v2437 = vunpack.c.h.b16 %v526
        %v2438 = vunpack.c.l.b16 %v527
        %v2439 = vunpack.c.l.b16 %v528
        %v2440 = vunpack.c.h.b16 %v528
        %v2441 = vunpack.c.l.b16 %v529
        %v2442 = vunpack.c.l.b16 %v530
        %v2443 = vunpack.c.h.b16 %v530
        %v2444 = vunpack.c.l.b16 %v531
        %v2445 = vunpack.c.l.b16 %v532
        %v2446 = vunpack.c.h.b16 %v532
        %v2447 = vunpack.c.l.b16 %v533
        %v2448 = vunpack.c.l.b16 %v534
        %v2449 = vunpack.c.h.b16 %v534
        %v2450 = vunpack.c.l.b16 %v535
        %v2451 = vunpack.c.l.b16 %v536
        %v2452 = vunpack.c.h.b16 %v536
        %v2453 = vunpack.c.l.b16 %v537
        %v2454 = vunpack.c.l.b16 %v538
        %v2455 = vunpack.c.h.b16 %v538
        %v2456 = vunpack.c.l.b16 %v539
        %v2457 = vunpack.c.l.b16 %v540
        %v2458 = vunpack.c.h.b16 %v540
        %v2459 = vunpack.c.l.b16 %v541
        %v2460 = vunpack.c.l.b16 %v542
        %v2461 = vunpack.c.h.b16 %v542
        %v2462 = vunpack.c.l.b16 %v543
        %v2463 = vunpack.c.l.b16 %v544
        %v2464 = vunpack.c.h.b16 %v544
        %v2465 = vunpack.c.l.b16 %v545
        %v2466 = vunpack.c.l.b16 %v546
        %v2467 = vunpack.c.h.b16 %v546
        %v2468 = vunpack.c.l.b16 %v547
        %v2469 = vunpack.c.l.b16 %v548
        %v2470 = vunpack.c.h.b16 %v548
        %v2471 = vunpack.c.l.b16 %v549
        %v2472 = vunpack.c.l.b16 %v550
        %v2473 = vunpack.c.h.b16 %v550
        %v2474 = vunpack.c.l.b16 %v551
        %v2475 = vunpack.c.l.b16 %v552
        %v2476 = vunpack.c.h.b16 %v552
        %v2477 = vunpack.c.l.b16 %v553
        %v2478 = vunpack.c.l.b16 %v554
        %v2479 = vunpack.c.h.b16 %v554
        %v2480 = vunpack.c.l.b16 %v555
        %v2481 = vunpack.c.l.b16 %v556
        %v2482 = vunpack.c.h.b16 %v556
        %v2483 = vunpack.c.l.b16 %v557
        %v2484 = vunpack.c.l.b16 %v558
        %v2485 = vunpack.c.h.b16 %v558
        %v2486 = vunpack.c.l.b16 %v559
        %v2487 = vunpack.c.l.b16 %v560
        %v2488 = vunpack.c.h.b16 %v560
        %v2489 = vunpack.c.l.b16 %v561
        %v2490 = vunpack.c.l.b16 %v562
        %v2491 = vunpack.c.h.b16 %v562
        %v2492 = vunpack.c.l.b16 %v563
        %v2493 = vunpack.c.l.b16 %v564
        %v2494 = vunpack.c.h.b16 %v564
        %v2495 = vunpack.c.l.b16 %v565
        %v2496 = vunpack.c.l.b16 %v566
        %v2497 = vunpack.c.h.b16 %v566
        %v2498 = vunpack.c.l.b16 %v567
        %v2499 = vunpack.c.l.b16 %v568
        %v2500 = vunpack.c.h.b16 %v568
        %v2501 = vunpack.c.l.b16 %v569
        %v2502 = vunpack.c.l.b16 %v570
        %v2503 = vunpack.c.h.b16 %v570
        %v2504 = vunpack.c.l.b16 %v571
        %v2505 = vunpack.c.l.b16 %v572
        %v2506 = vunpack.c.h.b16 %v572
        %v2507 = vunpack.c.l.b16 %v573
        %v2508 = vunpack.c.l.b16 %v574
        %v2509 = vunpack.c.h.b16 %v574
        %v2510 = vunpack.c.l.b16 %v575
        %v2511 = vunpack.c.l.b16 %v576
        %v2512 = vunpack.c.h.b16 %v576
        %v2513 = vunpack.c.l.b16 %v577
        %v2514 = vunpack.c.l.b16 %v578
        %v2515 = vunpack.c.h.b16 %v578
        %v2516 = vunpack.c.l.b16 %v579
        %v2517 = vunpack.c.l.b16 %v580
        %v2518 = vunpack.c.h.b16 %v580
        %v2519 = vunpack.c.l.b16 %v581
        %v2520 = vunpack.c.l.b16 %v582
        %v2521 = vunpack.c.h.b16 %v582
        %v2522 = vunpack.c.l.b16 %v583
        %v2523 = vunpack.c.l.b16 %v584
        %v2524 = vunpack.c.h.b16 %v584
        %v2525 = vunpack.c.l.b16 %v585
        %v2526 = vunpack.c.l.b16 %v586
        %v2527 = vunpack.c.h.b16 %v586
        %v2528 = vunpack.c.l.b16 %v587
        %v2529 = vunpack.c.l.b16 %v588
        %v2530 = vunpack.c.h.b16 %v588
        %v2531 = vunpack.c.l.b16 %v589
        %v2532 = vunpack.c.l.b16 %v590
        %v2533 = vunpack.c.h.b16 %v590
        %v2534 = vunpack.c.l.b16 %v591
        %v2535 = vunpack.c.l.b16 %v592
        %v2536 = vunpack.c.h.b16 %v592
        %v2537 = vunpack.c.l.b16 %v593
        %v2538 = vunpack.c.l.b16 %v594
        %v2539 = vunpack.c.h.b16 %v594
        %v2540 = vunpack.c.l.b16 %v595
        %v2541 = vunpack.c.l.b16 %v596
        %v2542 = vunpack.c.h.b16 %v596
        %v2543 = vunpack.c.l.b16 %v597
        %v2544 = vunpack.c.l.b16 %v598
        %v2545 = vunpack.c.h.b16 %v598
        %v2546 = vunpack.c.l.b16 %v599
        %v2547 = vunpack.c.l.b16 %v600
        %v2548 = vunpack.c.h.b16 %v600
        %v2549 = vunpack.c.l.b16 %v601
        %v2550 = vunpack.c.l.b16 %v602
        %v2551 = vunpack.c.h.b16 %v602
        %v2552 = vunpack.c.l.b16 %v603
        %v2553 = vunpack.c.l.b16 %v604
        %v2554 = vunpack.c.h.b16 %v604
        %v2555 = vunpack.c.l.b16 %v605
        %v2556 = vunpack.c.l.b16 %v606
        %v2557 = vunpack.c.h.b16 %v606
        %v2558 = vunpack.c.l.b16 %v607
        %v2559 = vunpack.c.l.b16 %v608
        %v2560 = vunpack.c.h.b16 %v608
        %v2561 = vunpack.c.l.b16 %v609
        %v2562 = vunpack.c.l.b16 %v610
        %v2563 = vunpack.c.h.b16 %v610
        %v2564 = vunpack.c.l.b16 %v611
        %v2565 = vunpack.c.l.b16 %v612
        %v2566 = vunpack.c.h.b16 %v612
        %v2567 = vunpack.c.l.b16 %v613
        %v2568 = vunpack.c.l.b16 %v614
        %v2569 = vunpack.c.h.b16 %v614
        %v2570 = vunpack.c.l.b16 %v615
        %v2571 = vunpack.c.l.b16 %v616
        %v2572 = vunpack.c.h.b16 %v616
        %v2573 = vunpack.c.l.b16 %v617
        %v2574 = vunpack.c.l.b16 %v618
        %v2575 = vunpack.c.h.b16 %v618
        %v2576 = vunpack.c.l.b16 %v619
        %v2577 = vunpack.c.l.b16 %v620
        %v2578 = vunpack.c.h.b16 %v620
        %v2579 = vunpack.c.l.b16 %v621
        %v2580 = vunpack.c.l.b16 %v622
        %v2581 = vunpack.c.h.b16 %v622
        %v2582 = vunpack.c.l.b16 %v623
        %v2583 = vunpack.c.l.b16 %v624
        %v2584 = vunpack.c.h.b16 %v624
        %v2585 = vunpack.c.l.b16 %v625
        %v2586 = vunpack.c.l.b16 %v626
        %v2587 = vunpack.c.h.b16 %v626
        %v2588 = vunpack.c.l.b16 %v627
        %v2589 = vunpack.c.l.b16 %v628
        %v2590 = vunpack.c.h.b16 %v628
        %v2591 = vunpack.c.l.b16 %v629
        %v2592 = vunpack.c.l.b16 %v630
        %v2593 = vunpack.c.h.b16 %v630
        %v2594 = vunpack.c.l.b16 %v631
        %v2595 = vunpack.c.l.b16 %v632
        %v2596 = vunpack.c.h.b16 %v632
        %v2597 = vunpack.c.l.b16 %v633
        %v2598 = vunpack.c.l.b16 %v634
        %v2599 = vunpack.c.h.b16 %v634
        %v2600 = vunpack.c.l.b16 %v635
        %v2601 = vunpack.c.l.b16 %v636
        %v2602 = vunpack.c.h.b16 %v636
        %v2603 = vunpack.c.l.b16 %v637
        %v2604 = vunpack.c.l.b16 %v638
        %v2605 = vunpack.c.h.b16 %v638
        %v2606 = vunpack.c.l.b16 %v639
        %v2607 = vunpack.c.l.b16 %v640
        %v2608 = vunpack.c.h.b16 %v640
        %v2609 = vunpack.c.l.b16 %v641
        %v2610 = vunpack.c.l.b16 %v642
        %v2611 = vunpack.c.h.b16 %v642
        %v2612 = vunpack.c.l.b16 %v643
        %v2613 = vunpack.c.l.b16 %v644
        %v2614 = vunpack.c.h.b16 %v644
        %v2615 = vunpack.c.l.b16 %v645
        %v2616 = vunpack.c.l.b16 %v646
        %v2617 = vunpack.c.h.b16 %v646
        %v2618 = vunpack.c.l.b16 %v647
        %v2619 = vunpack.c.l.b16 %v648
        %v2620 = vunpack.c.h.b16 %v648
        %v2621 = vunpack.c.l.b16 %v649
        %v2622 = vunpack.c.l.b16 %v650
        %v2623 = vunpack.c.h.b16 %v650
        %v2624 = vunpack.c.l.b16 %v651
        %v2625 = vunpack.c.l.b16 %v652
        %v2626 = vunpack.c.h.b16 %v652
        %v2627 = vunpack.c.l.b16 %v653
        %v2628 = vunpack.c.l.b16 %v654
        %v2629 = vunpack.c.h.b16 %v654
        %v2630 = vunpack.c.l.b16 %v655
        %v2631 = vunpack.c.l.b16 %v656
        %v2632 = vunpack.c.h.b16 %v656
        %v2633 = vunpack.c.l.b16 %v657
        %v2634 = vunpack.c.l.b16 %v658
        %v2635 = vunpack.c.h.b16 %v658
        %v2636 = vunpack.c.l.b16 %v659
        %v2637 = vunpack.c.l.b16 %v660
        %v2638 = vunpack.c.h.b16 %v660
        %v2639 = vunpack.c.l.b16 %v661
        %v2640 = vunpack.c.l.b16 %v662
        %v2641 = vunpack.c.h.b16 %v662
        %v2642 = vunpack.c.l.b16 %v663
        %v2643 = vunpack.c.l.b16 %v664
        %v2644 = vunpack.c.h.b16 %v664
        %v2645 = vunpack.c.l.b16 %v665
        %v2646 = vunpack.c.l.b16 %v666
        %v2647 = vunpack.c.h.b16 %v666
        %v2648 = vunpack.c.l.b16 %v667
        %v2649 = vunpack.c.l.b16 %v668
        %v2650 = vunpack.c.h.b16 %v668
        %v2651 = vunpack.c.l.b16 %v669
        %v2652 = vunpack.c.l.b16 %v670
        %v2653 = vunpack.c.h.b16 %v670
        %v2654 = vunpack.c.l.b16 %v671
        %v2655 = vunpack.c.l.b16 %v672
        %v2656 = vunpack.c.h.b16 %v672
        %v2657 = vunpack.c.l.b16 %v673
        %v2658 = vunpack.c.l.b16 %v674
        %v2659 = vunpack.c.h.b16 %v674
        %v2660 = vunpack.c.l.b16 %v675
        %v2661 = vunpack.c.l.b16 %v676
        %v2662 = vunpack.c.h.b16 %v676
        %v2663 = vunpack.c.l.b16 %v677
        %v2664 = vunpack.c.l.b16 %v678
        %v2665 = vunpack.c.h.b16 %v678
        %v2666 = vunpack.c.l.b16 %v679
        %v2667 = vunpack.c.l.b16 %v680
        %v2668 = vunpack.c.h.b16 %v680
        %v2669 = vunpack.c.l.b16 %v681
        %v2670 = vunpack.c.l.b16 %v682
        %v2671 = vunpack.c.h.b16 %v682
        %v2672 = vunpack.c.l.b16 %v683
        %v2673 = vunpack.c.l.b16 %v684
        %v2674 = vunpack.c.h.b16 %v684
        %v2675 = vunpack.c.l.b16 %v685
        %v2676 = vunpack.c.l.b16 %v686
        %v2677 = vunpack.c.h.b16 %v686
        %v2678 = vunpack.c.l.b16 %v687
        %v2679 = vunpack.c.l.b16 %v688
        %v2680 = vunpack.c.h.b16 %v688
        %v2681 = vunpack.c.l.b16 %v689
        %v2682 = vunpack.c.l.b16 %v690
        %v2683 = vunpack.c.h.b16 %v690
        %v2684 = vunpack.c.l.b16 %v691
        %v2685 = vunpack.c.l.b16 %v692
        %v2686 = vunpack.c.h.b16 %v692
        %v2687 = vunpack.c.l.b16 %v693
        %v2688 = vunpack.c.l.b16 %v694
        %v2689 = vunpack.c.h.b16 %v694
        %v2690 = vunpack.c.l.b16 %v695
        %v2691 = vunpack.c.l.b16 %v696
        %v2692 = vunpack.c.h.b16 %v696
        %v2693 = vunpack.c.l.b16 %v697
        %v2694 = vunpack.c.l.b16 %v698
        %v2695 = vunpack.c.h.b16 %v698
        %v2696 = vunpack.c.l.b16 %v699
        %v2697 = vunpack.c.l.b16 %v700
        %v2698 = vunpack.c.h.b16 %v700
        %v2699 = vunpack.c.l.b16 %v701
        %v2700 = vunpack.c.l.b16 %v702
        %v2701 = vunpack.c.h.b16 %v702
        %v2702 = vunpack.c.l.b16 %v703
        %v2703 = vunpack.c.l.b16 %v704
        %v2704 = vunpack.c.h.b16 %v704
        %v2705 = vunpack.c.l.b16 %v705
        %v2706 = vunpack.c.l.b16 %v706
        %v2707 = vunpack.c.h.b16 %v706
        %v2708 = vunpack.c.l.b16 %v707
        %v2709 = vunpack.c.l.b16 %v708
        %v2710 = vunpack.c.h.b16 %v708
        %v2711 = vunpack.c.l.b16 %v709
        %v2712 = vunpack.c.l.b16 %v710
        %v2713 = vunpack.c.h.b16 %v710
        %v2714 = vunpack.c.l.b16 %v711
        %v2715 = vunpack.c.l.b16 %v712
        %v2716 = vunpack.c.h.b16 %v712
        %v2717 = vunpack.c.l.b16 %v713
        %v2718 = vunpack.c.l.b16 %v714
        %v2719 = vunpack.c.h.b16 %v714
        %v2720 = vunpack.c.l.b16 %v715
        %v2721 = vunpack.c.l.b16 %v716
        %v2722 = vunpack.c.h.b16 %v716
        %v2723 = vunpack.c.l.b16 %v717
        %v2724 = vunpack.c.l.b16 %v718
        %v2725 = vunpack.c.h.b16 %v718
        %v2726 = vunpack.c.l.b16 %v719
        %v2727 = vunpack.c.l.b16 %v720
        %v2728 = vunpack.c.h.b16 %v720
        %v2729 = vunpack.c.l.b16 %v721
        %v2730 = vunpack.c.l.b16 %v722
        %v2731 = vunpack.c.h.b16 %v722
        %v2732 = vunpack.c.l.b16 %v723
        %v2733 = vunpack.c.l.b16 %v724
        %v2734 = vunpack.c.h.b16 %v724
        %v2735 = vunpack.c.l.b16 %v725
        %v2736 = vunpack.c.l.b16 %v726
        %v2737 = vunpack.c.h.b16 %v726
        %v2738 = vunpack.c.l.b16 %v727
        %v2739 = vunpack.c.l.b16 %v728
        %v2740 = vunpack.c.h.b16 %v728
        %v2741 = vunpack.c.l.b16 %v729
        %v2742 = vunpack.c.l.b16 %v730
        %v2743 = vunpack.c.h.b16 %v730
        %v2744 = vunpack.c.l.b16 %v731
        %v2745 = vunpack.c.l.b16 %v732
        %v2746 = vunpack.c.h.b16 %v732
        %v2747 = vunpack.c.l.b16 %v733
        %v2748 = vunpack.c.l.b16 %v734
        %v2749 = vunpack.c.h.b16 %v734
        %v2750 = vunpack.c.l.b16 %v735
        %v2751 = vunpack.c.l.b16 %v736
        %v2752 = vunpack.c.h.b16 %v736
        %v2753 = vunpack.c.l.b16 %v737
        %v2754 = vunpack.c.l.b16 %v738
        %v2755 = vunpack.c.h.b16 %v738
        %v2756 = vunpack.c.l.b16 %v739
        %v2757 = vunpack.c.l.b16 %v740
        %v2758 = vunpack.c.h.b16 %v740
        %v2759 = vunpack.c.l.b16 %v741
        %v2760 = vunpack.c.l.b16 %v742
        %v2761 = vunpack.c.h.b16 %v742
        %v2762 = vunpack.c.l.b16 %v743
        %v2763 = vunpack.c.l.b16 %v744
        %v2764 = vunpack.c.h.b16 %v744
        %v2765 = vunpack.c.l.b16 %v745
        %v2766 = vunpack.c.l.b16 %v746
        %v2767 = vunpack.c.h.b16 %v746
        %v2768 = vunpack.c.l.b16 %v747
        %v2769 = vunpack.c.l.b16 %v748
        %v2770 = vunpack.c.h.b16 %v748
        %v2771 = vunpack.c.l.b16 %v749
        %v2772 = vunpack.c.l.b16 %v750
        %v2773 = vunpack.c.h.b16 %v750
        %v2774 = vunpack.c.l.b16 %v751
        %v2775 = vunpack.c.l.b16 %v752
        %v2776 = vunpack.c.h.b16 %v752
        %v2777 = vunpack.c.l.b16 %v753
        %v2778 = vunpack.c.l.b16 %v754
        %v2779 = vunpack.c.h.b16 %v754
        %v2780 = vunpack.c.l.b16 %v755
        %v2781 = vunpack.c.l.b16 %v756
        %v2782 = vunpack.c.h.b16 %v756
        %v2783 = vunpack.c.l.b16 %v757
        %v2784 = vunpack.c.l.b16 %v758
        %v2785 = vunpack.c.h.b16 %v758
        %v2786 = vunpack.c.l.b16 %v759
        %v2787 = vunpack.c.l.b16 %v760
        %v2788 = vunpack.c.h.b16 %v760
        %v2789 = vunpack.c.l.b16 %v761
        %v2790 = vunpack.c.l.b16 %v762
        %v2791 = vunpack.c.h.b16 %v762
        %v2792 = vunpack.c.l.b16 %v763
        %v2793 = vunpack.c.l.b16 %v764
        %v2794 = vunpack.c.h.b16 %v764
        %v2795 = vunpack.c.l.b16 %v765
        %v2796 = vunpack.c.l.b16 %v766
        %v2797 = vunpack.c.h.b16 %v766
        %v2798 = vunpack.c.l.b16 %v767
        %v2799 = vunpack.c.l.b16 %v768
        %v2800 = vunpack.c.h.b16 %v768
        %v2801 = vunpack.c.l.b16 %v769
        %v2802 = vunpack.c.l.b16 %v770
        %v2803 = vunpack.c.h.b16 %v770
        %v2804 = vunpack.c.l.b16 %v771
        %v2805 = vunpack.c.l.b16 %v772
        %v2806 = vunpack.c.h.b16 %v772
        %v2807 = vunpack.c.l.b16 %v773
        %v2808 = vunpack.c.l.b16 %v774
        %v2809 = vunpack.c.h.b16 %v774
        %v2810 = vunpack.c.l.b16 %v775
        %v2811 = vunpack.c.l.b16 %v776
        %v2812 = vunpack.c.h.b16 %v776
        %v2813 = vunpack.c.l.b16 %v777
        %v2814 = vunpack.c.l.b16 %v778
        %v2815 = vunpack.c.h.b16 %v778
        %v2816 = vunpack.c.l.b16 %v779
        %v2817 = vunpack.c.l.b16 %v780
        %v2818 = vunpack.c.h.b16 %v780
        %v2819 = vunpack.c.l.b16 %v781
        %v2820 = vunpack.c.l.b16 %v782
        %v2821 = vunpack.c.h.b16 %v782
        %v2822 = vunpack.c.l.b16 %v783
        %v2823 = vunpack.c.l.b16 %v784
        %v2824 = vunpack.c.h.b16 %v784
        %v2825 = vunpack.c.l.b16 %v785
        %v2826 = vunpack.c.l.b16 %v786
        %v2827 = vunpack.c.h.b16 %v786
        %v2828 = vunpack.c.l.b16 %v787
        %v2829 = vunpack.c.l.b16 %v788
        %v2830 = vunpack.c.h.b16 %v788
        %v2831 = vunpack.c.l.b16 %v789
        %v2832 = vunpack.c.l.b16 %v790
        %v2833 = vunpack.c.h.b16 %v790
        %v2834 = vunpack.c.l.b16 %v791
        %v2835 = vunpack.c.l.b16 %v792
        %v2836 = vunpack.c.h.b16 %v792
        %v2837 = vunpack.c.l.b16 %v793
        %v2838 = vunpack.c.l.b16 %v794
        %v2839 = vunpack.c.h.b16 %v794
        %v2840 = vunpack.c.l.b16 %v795
        %v2841 = vunpack.c.l.b16 %v796
        %v2842 = vunpack.c.h.b16 %v796
        %v2843 = vunpack.c.l.b16 %v797
        %v2844 = vunpack.c.l.b16 %v798
        %v2845 = vunpack.c.h.b16 %v798
        %v2846 = vunpack.c.l.b16 %v799
        %v2847 = vunpack.c.l.b16 %v800
        %v2848 = vunpack.c.h.b16 %v800
        %v2849 = vunpack.c.l.b16 %v801
        %v2850 = vunpack.c.l.b16 %v802
        %v2851 = vunpack.c.h.b16 %v802
        %v2852 = vunpack.c.l.b16 %v803
        %v2853 = vunpack.c.l.b16 %v804
        %v2854 = vunpack.c.h.b16 %v804
        %v2855 = vunpack.c.l.b16 %v805
        %v2856 = vunpack.c.l.b16 %v806
        %v2857 = vunpack.c.h.b16 %v806
        %v2858 = vunpack.c.l.b16 %v807
        %v2859 = vunpack.c.l.b16 %v808
        %v2860 = vunpack.c.h.b16 %v808
        %v2861 = vunpack.c.l.b16 %v809
        %v2862 = vunpack.c.l.b16 %v810
        %v2863 = vunpack.c.h.b16 %v810
        %v2864 = vunpack.c.l.b16 %v811
        %v2865 = vunpack.c.l.b16 %v812
        %v2866 = vunpack.c.h.b16 %v812
        %v2867 = vunpack.c.l.b16 %v813
        %v2868 = vunpack.c.l.b16 %v814
        %v2869 = vunpack.c.h.b16 %v814
        %v2870 = vunpack.c.l.b16 %v815
        %v2871 = vunpack.c.l.b16 %v816
        %v2872 = vunpack.c.h.b16 %v816
        %v2873 = vunpack.c.l.b16 %v817
        %v2874 = vunpack.c.l.b16 %v818
        %v2875 = vunpack.c.h.b16 %v818
        %v2876 = vunpack.c.l.b16 %v819
        %v2877 = vunpack.c.l.b16 %v820
        %v2878 = vunpack.c.h.b16 %v820
        %v2879 = vunpack.c.l.b16 %v821
        %v2880 = vunpack.c.l.b16 %v822
        %v2881 = vunpack.c.h.b16 %v822
        %v2882 = vunpack.c.l.b16 %v823
        %v2883 = vunpack.c.l.b16 %v824
        %v2884 = vunpack.c.h.b16 %v824
        %v2885 = vunpack.c.l.b16 %v825
        %v2886 = vunpack.c.l.b16 %v826
        %v2887 = vunpack.c.h.b16 %v826
        %v2888 = vunpack.c.l.b16 %v827
        %v2889 = vunpack.c.l.b16 %v828
        %v2890 = vunpack.c.h.b16 %v828
        %v2891 = vunpack.c.l.b16 %v829
        %v2892 = vunpack.c.l.b16 %v830
        %v2893 = vunpack.c.h.b16 %v830
        %v2894 = vunpack.c.l.b16 %v831
        %v2895 = vunpack.c.l.b16 %v832
        %v2896 = vunpack.c.h.b16 %v832
        %v2897 = vunpack.c.l.b16 %v833
        %v2898 = vunpack.c.l.b16 %v834
        %v2899 = vunpack.c.h.b16 %v834
        %v2900 = vunpack.c.l.b16 %v835
        %v2901 = vunpack.c.l.b16 %v836
        %v2902 = vunpack.c.h.b16 %v836
        %v2903 = vunpack.c.l.b16 %v837
        %v2904 = vunpack.c.l.b16 %v838
        %v2905 = vunpack.c.h.b16 %v838
        %v2906 = vunpack.c.l.b16 %v839
        %v2907 = vunpack.c.l.b16 %v840
        %v2908 = vunpack.c.h.b16 %v840
        %v2909 = vunpack.c.l.b16 %v841
        %v2910 = vunpack.c.l.b16 %v842
        %v2911 = vunpack.c.h.b16 %v842
        %v2912 = vunpack.c.l.b16 %v843
        %v2913 = vunpack.c.l.b16 %v844
        %v2914 = vunpack.c.h.b16 %v844
        %v2915 = vunpack.c.l.b16 %v845
        %v2916 = vunpack.c.l.b16 %v846
        %v2917 = vunpack.c.h.b16 %v846
        %v2918 = vunpack.c.l.b16 %v847
        %v2919 = vunpack.c.l.b16 %v848
        %v2920 = vunpack.c.h.b16 %v848
        %v2921 = vunpack.c.l.b16 %v849
        %v2922 = vunpack.c.l.b16 %v850
        %v2923 = vunpack.c.h.b16 %v850
        %v2924 = vunpack.c.l.b16 %v851
        %v2925 = vunpack.c.l.b16 %v852
        %v2926 = vunpack.c.h.b16 %v852
        %v2927 = vunpack.c.l.b16 %v853
        %v2928 = vunpack.c.l.b16 %v854
        %v2929 = vunpack.c.h.b16 %v854
        %v2930 = vunpack.c.l.b16 %v855
        %v2931 = vunpack.c.l.b16 %v856
        %v2932 = vunpack.c.h.b16 %v856
        %v2933 = vunpack.c.l.b16 %v857
        %v2934 = vunpack.c.l.b16 %v858
        %v2935 = vunpack.c.h.b16 %v858
        %v2936 = vunpack.c.l.b16 %v859
        %v2937 = vunpack.c.l.b16 %v860
        %v2938 = vunpack.c.h.b16 %v860
        %v2939 = vunpack.c.l.b16 %v861
        %v2940 = vunpack.c.l.b16 %v862
        %v2941 = vunpack.c.h.b16 %v862
        %v2942 = vunpack.c.l.b16 %v863
        %v2943 = vunpack.c.l.b16 %v864
        %v2944 = vunpack.c.h.b16 %v864
        %v2945 = vunpack.c.l.b16 %v865
        %v2946 = vunpack.c.l.b16 %v866
        %v2947 = vunpack.c.h.b16 %v866
        %v2948 = vunpack.c.l.b16 %v867
        %v2949 = vunpack.c.l.b16 %v868
        %v2950 = vunpack.c.h.b16 %v868
        %v2951 = vunpack.c.l.b16 %v869
        %v2952 = vunpack.c.l.b16 %v870
        %v2953 = vunpack.c.h.b16 %v870
        %v2954 = vunpack.c.l.b16 %v871
        %v2955 = vunpack.c.l.b16 %v872
        %v2956 = vunpack.c.h.b16 %v872
        %v2957 = vunpack.c.l.b16 %v873
        %v2958 = vunpack.c.l.b16 %v874
        %v2959 = vunpack.c.h.b16 %v874
        %v2960 = vunpack.c.l.b16 %v875
        %v2961 = vunpack.c.l.b16 %v876
        %v2962 = vunpack.c.h.b16 %v876
        %v2963 = vunpack.c.l.b16 %v877
        %v2964 = vunpack.c.l.b16 %v878
        %v2965 = vunpack.c.h.b16 %v878
        %v2966 = vunpack.c.l.b16 %v879
        %v2967 = vunpack.c.l.b16 %v880
        %v2968 = vunpack.c.h.b16 %v880
        %v2969 = vunpack.c.l.b16 %v881
        %v2970 = vunpack.c.l.b16 %v882
        %v2971 = vunpack.c.h.b16 %v882
        %v2972 = vunpack.c.l.b16 %v883
        %v2973 = vunpack.c.l.b16 %v884
        %v2974 = vunpack.c.h.b16 %v884
        %v2975 = vunpack.c.l.b16 %v885
        %v2976 = vunpack.c.l.b16 %v886
        %v2977 = vunpack.c.h.b16 %v886
        %v2978 = vunpack.c.l.b16 %v887
        %v2979 = vunpack.c.l.b16 %v888
        %v2980 = vunpack.c.h.b16 %v888
        %v2981 = vunpack.c.l.b16 %v889
        %v2982 = vunpack.c.l.b16 %v890
        %v2983 = vunpack.c.h.b16 %v890
        %v2984 = vunpack.c.l.b16 %v891
        %v2985 = vunpack.c.l.b16 %v892
        %v2986 = vunpack.c.h.b16 %v892
        %v2987 = vunpack.c.l.b16 %v893
        %v2988 = vunpack.c.l.b16 %v894
        %v2989 = vunpack.c.h.b16 %v894
        %v2990 = vunpack.c.l.b16 %v895
        %v2991 = vunpack.c.l.b16 %v896
        %v2992 = vunpack.c.h.b16 %v896
        %v2993 = vunpack.c.l.b16 %v897
        %v2994 = vunpack.c.l.b16 %v898
        %v2995 = vunpack.c.h.b16 %v898
        %v2996 = vunpack.c.l.b16 %v899
        %v2997 = vunpack.c.l.b16 %v900
        %v2998 = vunpack.c.h.b16 %v900
        %v2999 = vunpack.c.l.b16 %v901
        %v3000 = vunpack.c.l.b16 %v902
        %v3001 = vunpack.c.h.b16 %v902
        %v3002 = vunpack.c.l.b16 %v903
        %v3003 = vunpack.c.l.b16 %v904
        %v3004 = vunpack.c.h.b16 %v904
        %v3005 = vunpack.c.l.b16 %v905
        %v3006 = vunpack.c.l.b16 %v906
        %v3007 = vunpack.c.h.b16 %v906
        %v3008 = vunpack.c.l.b16 %v907
        %v3009 = vunpack.c.l.b16 %v908
        %v3010 = vunpack.c.h.b16 %v908
        %v3011 = vunpack.c.l.b16 %v909
        %v3012 = vunpack.c.l.b16 %v910
        %v3013 = vunpack.c.h.b16 %v910
        %v3014 = vunpack.c.l.b16 %v911
        %v3015 = vunpack.c.l.b16 %v912
        %v3016 = vunpack.c.h.b16 %v912
        %v3017 = vunpack.c.l.b16 %v913
        %v3018 = vunpack.c.l.b16 %v914
        %v3019 = vunpack.c.h.b16 %v914
        %v3020 = vunpack.c.l.b16 %v915
        %v3021 = vunpack.c.l.b16 %v916
        %v3022 = vunpack.c.h.b16 %v916
        %v3023 = vunpack.c.l.b16 %v917
        %v3024 = vunpack.c.l.b16 %v918
        %v3025 = vunpack.c.h.b16 %v918
        %v3026 = vunpack.c.l.b16 %v919
        %v3027 = vunpack.c.l.b16 %v920
        %v3028 = vunpack.c.h.b16 %v920
        %v3029 = vunpack.c.l.b16 %v921
        %v3030 = vunpack.c.l.b16 %v922
        %v3031 = vunpack.c.h.b16 %v922
        %v3032 = vunpack.c.l.b16 %v923
        %v3033 = vunpack.c.l.b16 %v924
        %v3034 = vunpack.c.h.b16 %v924
        %v3035 = vunpack.c.l.b16 %v925
        %v3036 = vunpack.c.l.b16 %v926
        %v3037 = vunpack.c.h.b16 %v926
        %v3038 = vunpack.c.l.b16 %v927
        %v3039 = vunpack.c.l.b16 %v928
        %v3040 = vunpack.c.h.b16 %v928
        %v3041 = vunpack.c.l.b16 %v929
        %v3042 = vunpack.c.l.b16 %v930
        %v3043 = vunpack.c.h.b16 %v930
        %v3044 = vunpack.c.l.b16 %v931
        %v3045 = vunpack.c.l.b16 %v932
        %v3046 = vunpack.c.h.b16 %v932
        %v3047 = vunpack.c.l.b16 %v933
        %v3048 = vunpack.c.l.b16 %v934
        %v3049 = vunpack.c.h.b16 %v934
        %v3050 = vunpack.c.l.b16 %v935
        %v3051 = vunpack.c.l.b16 %v936
        %v3052 = vunpack.c.h.b16 %v936
        %v3053 = vunpack.c.l.b16 %v937
        %v3054 = vunpack.c.l.b16 %v938
        %v3055 = vunpack.c.h.b16 %v938
        %v3056 = vunpack.c.l.b16 %v939
        %v3057 = vunpack.c.l.b16 %v940
        %v3058 = vunpack.c.h.b16 %v940
        %v3059 = vunpack.c.l.b16 %v941
        %v3060 = vunpack.c.l.b16 %v942
        %v3061 = vunpack.c.h.b16 %v942
        %v3062 = vunpack.c.l.b16 %v943
        %v3063 = vunpack.c.l.b16 %v944
        %v3064 = vunpack.c.h.b16 %v944
        %v3065 = vunpack.c.l.b16 %v945
        %v3066 = vunpack.c.l.b16 %v946
        %v3067 = vunpack.c.h.b16 %v946
        %v3068 = vunpack.c.l.b16 %v947
        %v3069 = vunpack.c.l.b16 %v948
        %v3070 = vunpack.c.h.b16 %v948
        %v3071 = vunpack.c.l.b16 %v949
        %v3072 = vunpack.c.l.b16 %v950
        %v3073 = vunpack.c.h.b16 %v950
        %v3074 = vunpack.c.l.b16 %v951
        %v3075 = vunpack.c.l.b16 %v952
        %v3076 = vunpack.c.h.b16 %v952
        %v3077 = vunpack.c.l.b16 %v953
        %v3078 = vunpack.c.l.b16 %v954
        %v3079 = vunpack.c.h.b16 %v954
        %v3080 = vunpack.c.l.b16 %v955
        %v3081 = vunpack.c.l.b16 %v956
        %v3082 = vunpack.c.h.b16 %v956
        %v3083 = vunpack.c.l.b16 %v957
        %v3084 = vunpack.c.l.b16 %v958
        %v3085 = vunpack.c.h.b16 %v958
        %v3086 = vunpack.c.l.b16 %v959
        %v3087 = vunpack.c.l.b16 %v960
        %v3088 = vunpack.c.h.b16 %v960
        %v3089 = vunpack.c.l.b16 %v961
        %v3090 = vunpack.c.l.b16 %v962
        %v3091 = vunpack.c.h.b16 %v962
        %v3092 = vunpack.c.l.b16 %v963
        %v3093 = vunpack.c.l.b16 %v964
        %v3094 = vunpack.c.h.b16 %v964
        %v3095 = vunpack.c.l.b16 %v965
        %v3096 = vunpack.c.l.b16 %v966
        %v3097 = vunpack.c.h.b16 %v966
        %v3098 = vunpack.c.l.b16 %v967
        %v3099 = vunpack.c.l.b16 %v968
        %v3100 = vunpack.c.h.b16 %v968
        %v3101 = vunpack.c.l.b16 %v969
        %v3102 = vunpack.c.l.b16 %v970
        %v3103 = vunpack.c.h.b16 %v970
        %v3104 = vunpack.c.l.b16 %v971
        %v3105 = vunpack.c.l.b16 %v972
        %v3106 = vunpack.c.h.b16 %v972
        %v3107 = vunpack.c.l.b16 %v973
        %v3108 = vunpack.c.l.b16 %v974
        %v3109 = vunpack.c.h.b16 %v974
        %v3110 = vunpack.c.l.b16 %v975
        %v3111 = vunpack.c.l.b16 %v976
        %v3112 = vunpack.c.h.b16 %v976
        %v3113 = vunpack.c.l.b16 %v977
        %v3114 = vunpack.c.l.b16 %v978
        %v3115 = vunpack.c.h.b16 %v978
        %v3116 = vunpack.c.l.b16 %v979
        %v3117 = vunpack.c.l.b16 %v980
        %v3118 = vunpack.c.h.b16 %v980
        %v3119 = vunpack.c.l.b16 %v981
        %v3120 = vunpack.c.l.b16 %v982
        %v3121 = vunpack.c.h.b16 %v982
        %v3122 = vunpack.c.l.b16 %v983
        %v3123 = vunpack.c.l.b16 %v984
        %v3124 = vunpack.c.h.b16 %v984
        %v3125 = vunpack.c.l.b16 %v985
        %v3126 = vunpack.c.l.b16 %v986
        %v3127 = vunpack.c.h.b16 %v986
        %v3128 = vunpack.c.l.b16 %v987
        %v3129 = vunpack.c.l.b16 %v988
        %v3130 = vunpack.c.h.b16 %v988
        %v3131 = vunpack.c.l.b16 %v989
        %v3132 = vunpack.c.l.b16 %v990
        %v3133 = vunpack.c.h.b16 %v990
        %v3134 = vunpack.c.l.b16 %v991
        %v3135 = vunpack.c.l.b16 %v992
        %v3136 = vunpack.c.h.b16 %v992
        %v3137 = vunpack.c.l.b16 %v993
        %v3138 = vunpack.c.l.b16 %v994
        %v3139 = vunpack.c.h.b16 %v994
        %v3140 = vunpack.c.l.b16 %v995
        %v3141 = vunpack.c.l.b16 %v996
        %v3142 = vunpack.c.h.b16 %v996
        %v3143 = vunpack.c.l.b16 %v997
        %v3144 = vunpack.c.l.b16 %v998
        %v3145 = vunpack.c.h.b16 %v998
        %v3146 = vunpack.c.l.b16 %v999
        %v3147 = vunpack.c.l.b16 %v1000
        %v3148 = vunpack.c.h.b16 %v1000
        %v3149 = vunpack.c.l.b16 %v1001
        %v3150 = vunpack.c.l.b16 %v1002
        %v3151 = vunpack.c.h.b16 %v1002
        %v3152 = vunpack.c.l.b16 %v1003
        %v3153 = vunpack.c.l.b16 %v1004
        %v3154 = vunpack.c.h.b16 %v1004
        %v3155 = vunpack.c.l.b16 %v1005
        %v3156 = vunpack.c.l.b16 %v1006
        %v3157 = vunpack.c.h.b16 %v1006
        %v3158 = vunpack.c.l.b16 %v1007
        %v3159 = vunpack.c.l.b16 %v1008
        %v3160 = vunpack.c.h.b16 %v1008
        %v3161 = vunpack.c.l.b16 %v1009
        %v3162 = vunpack.c.l.b16 %v1010
        %v3163 = vunpack.c.h.b16 %v1010
        %v3164 = vunpack.c.l.b16 %v1011
        %v3165 = vunpack.c.l.b16 %v1012
        %v3166 = vunpack.c.h.b16 %v1012
        %v3167 = vunpack.c.l.b16 %v1013
        %v3168 = vunpack.c.l.b16 %v1014
        %v3169 = vunpack.c.h.b16 %v1014
        %v3170 = vunpack.c.l.b16 %v1015
        %v3171 = vunpack.c.l.b16 %v1016
        %v3172 = vunpack.c.h.b16 %v1016
        %v3173 = vunpack.c.l.b16 %v1017
        %v3174 = vunpack.c.l.b16 %v1018
        %v3175 = vunpack.c.h.b16 %v1018
        %v3176 = vunpack.c.l.b16 %v1019
        %v3177 = vunpack.c.l.b16 %v1020
        %v3178 = vunpack.c.h.b16 %v1020
        %v3179 = vunpack.c.l.b16 %v1021
        %v3180 = vunpack.c.l.b16 %v1022
        %v3181 = vunpack.c.h.b16 %v1022
        %v3182 = vunpack.c.l.b16 %v1023
        %v3183 = vunpack.c.l.b16 %v1024
        %v3184 = vunpack.c.h.b16 %v1024
        %v3185 = vunpack.c.l.b16 %v1025
        %v3186 = vunpack.c.l.b16 %v1026
        %v3187 = vunpack.c.h.b16 %v1026
        %v3188 = vunpack.c.l.b16 %v1027
        %v3189 = vunpack.c.l.b16 %v1028
        %v3190 = vunpack.c.h.b16 %v1028
        %v3191 = vunpack.c.l.b16 %v1029
        %v3192 = vunpack.c.l.b16 %v1030
        %v3193 = vunpack.c.h.b16 %v1030
        %v3194 = vunpack.c.l.b16 %v1031
        %v3195 = vunpack.c.l.b16 %v1032
        %v3196 = vunpack.c.h.b16 %v1032
        %v3197 = vunpack.c.l.b16 %v1033
        %v3198 = vunpack.c.l.b16 %v1034
        %v3199 = vunpack.c.h.b16 %v1034
        %v3200 = vunpack.c.l.b16 %v1035
        %v3201 = vunpack.c.l.b16 %v1036
        %v3202 = vunpack.c.h.b16 %v1036
        %v3203 = vunpack.c.l.b16 %v1037
        %v3204 = vunpack.c.l.b16 %v1038
        %v3205 = vunpack.c.h.b16 %v1038
        %v3206 = vunpack.c.l.b16 %v1039
        %v3207 = vunpack.c.l.b16 %v1040
        %v3208 = vunpack.c.h.b16 %v1040
        %v3209 = vunpack.c.l.b16 %v1041
        %v3210 = vunpack.c.l.b16 %v1042
        %v3211 = vunpack.c.h.b16 %v1042
        %v3212 = vunpack.c.l.b16 %v1043
        %v3213 = vunpack.c.l.b16 %v1044
        %v3214 = vunpack.c.h.b16 %v1044
        %v3215 = vunpack.c.l.b16 %v1045
        %v3216 = vunpack.c.l.b16 %v1046
        %v3217 = vunpack.c.h.b16 %v1046
        %v3218 = vunpack.c.l.b16 %v1047
        %v3219 = vunpack.c.l.b16 %v1048
        %v3220 = vunpack.c.h.b16 %v1048
        %v3221 = vunpack.c.l.b16 %v1049
        %v3222 = vunpack.c.l.b16 %v1050
        %v3223 = vunpack.c.h.b16 %v1050
        %v3224 = vunpack.c.l.b16 %v1051
        %v3225 = vunpack.c.l.b16 %v1052
        %v3226 = vunpack.c.h.b16 %v1052
        %v3227 = vunpack.c.l.b16 %v1053
        %v3228 = vunpack.c.l.b16 %v1054
        %v3229 = vunpack.c.h.b16 %v1054
        %v3230 = vunpack.c.l.b16 %v1055
        %v3231 = vunpack.c.l.b16 %v1056
        %v3232 = vunpack.c.h.b16 %v1056
        %v3233 = vunpack.c.l.b16 %v1057
        %v3234 = vunpack.c.l.b16 %v1058
        %v3235 = vunpack.c.h.b16 %v1058
        %v3236 = vunpack.c.l.b16 %v1059
        %v3237 = vunpack.c.l.b16 %v1060
        %v3238 = vunpack.c.h.b16 %v1060
        %v3239 = vunpack.c.l.b16 %v1061
        %v3240 = vunpack.c.l.b16 %v1062
        %v3241 = vunpack.c.h.b16 %v1062
        %v3242 = vunpack.c.l.b16 %v1063
        %v3243 = vunpack.c.l.b16 %v1064
        %v3244 = vunpack.c.h.b16 %v1064
        %v3245 = vunpack.c.l.b16 %v1065
        %v3246 = vunpack.c.l.b16 %v1066
        %v3247 = vunpack.c.h.b16 %v1066
        %v3248 = vunpack.c.l.b16 %v1067
        %v3249 = vunpack.c.l.b16 %v1068
        %v3250 = vunpack.c.h.b16 %v1068
        %v3251 = vunpack.c.l.b16 %v1069
        %v3252 = vunpack.c.l.b16 %v1070
        %v3253 = vunpack.c.h.b16 %v1070
        %v3254 = vunpack.c.l.b16 %v1071
        %v3255 = vunpack.c.l.b16 %v1072
        %v3256 = vunpack.c.h.b16 %v1072
        %v3257 = vunpack.c.l.b16 %v1073
        %v3258 = vunpack.c.l.b16 %v1074
        %v3259 = vunpack.c.h.b16 %v1074
        %v3260 = vunpack.c.l.b16 %v1075
        %v3261 = vunpack.c.l.b16 %v1076
        %v3262 = vunpack.c.h.b16 %v1076
        %v3263 = vunpack.c.l.b16 %v1077
        %v3264 = vunpack.c.l.b16 %v1078
        %v3265 = vunpack.c.h.b16 %v1078
        %v3266 = vunpack.c.l.b16 %v1079
        %v3267 = vunpack.c.l.b16 %v1080
        %v3268 = vunpack.c.h.b16 %v1080
        %v3269 = vunpack.c.l.b16 %v1081
        %v3270 = vunpack.c.l.b16 %v1082
        %v3271 = vunpack.c.h.b16 %v1082
        %v3272 = vunpack.c.l.b16 %v1083
        %v3273 = vunpack.c.l.b16 %v1084
        %v3274 = vunpack.c.h.b16 %v1084
        %v3275 = vunpack.c.l.b16 %v1085
        %v3276 = vunpack.c.l.b16 %v1086
        %v3277 = vunpack.c.h.b16 %v1086
        %v3278 = vunpack.c.l.b16 %v1087
        %v3279 = vunpack.c.l.b16 %v1088
        %v3280 = vunpack.c.h.b16 %v1088
        %v3281 = vunpack.c.l.b16 %v1089
        %v3282 = vunpack.c.l.b16 %v1090
        %v3283 = vunpack.c.h.b16 %v1090
        %v3284 = vunpack.c.l.b16 %v1091
        %v3285 = vunpack.c.l.b16 %v1092
        %v3286 = vunpack.c.h.b16 %v1092
        %v3287 = vunpack.c.l.b16 %v1093
        %v3288 = vunpack.c.l.b16 %v1094
        %v3289 = vunpack.c.h.b16 %v1094
        %v3290 = vunpack.c.l.b16 %v1095
        %v3291 = vunpack.c.l.b16 %v1096
        %v3292 = vunpack.c.h.b16 %v1096
        %v3293 = vunpack.c.l.b16 %v1097
        %v3294 = vunpack.c.l.b16 %v1098
        %v3295 = vunpack.c.h.b16 %v1098
        %v3296 = vunpack.c.l.b16 %v1099
        %v3297 = vunpack.c.l.b16 %v1100
        %v3298 = vunpack.c.h.b16 %v1100
        %v3299 = vunpack.c.l.b16 %v1101
        %v3300 = vunpack.c.l.b16 %v1102
        %v3301 = vunpack.c.h.b16 %v1102
        %v3302 = vunpack.c.l.b16 %v1103
        %v3303 = vunpack.c.l.b16 %v1104
        %v3304 = vunpack.c.h.b16 %v1104
        %v3305 = vunpack.c.l.b16 %v1105
        %v3306 = vunpack.c.l.b16 %v1106
        %v3307 = vunpack.c.h.b16 %v1106
        %v3308 = vunpack.c.l.b16 %v1107
        %v3309 = vunpack.c.l.b16 %v1108
        %v3310 = vunpack.c.h.b16 %v1108
        %v3311 = vunpack.c.l.b16 %v1109
        %v3312 = vunpack.c.l.b16 %v1110
        %v3313 = vunpack.c.h.b16 %v1110
        %v3314 = vunpack.c.l.b16 %v1111
        %v3315 = vunpack.c.l.b16 %v1112
        %v3316 = vunpack.c.h.b16 %v1112
        %v3317 = vunpack.c.l.b16 %v1113
        %v3318 = vunpack.c.l.b16 %v1114
        %v3319 = vunpack.c.h.b16 %v1114
        %v3320 = vunpack.c.l.b16 %v1115
        %v3321 = vunpack.c.l.b16 %v1116
        %v3322 = vunpack.c.h.b16 %v1116
        %v3323 = vunpack.c.l.b16 %v1117
        %v3324 = vunpack.c.l.b16 %v1118
        %v3325 = vunpack.c.h.b16 %v1118
        %v3326 = vunpack.c.l.b16 %v1119
        %v3327 = vunpack.c.l.b16 %v1120
        %v3328 = vunpack.c.h.b16 %v1120
        %v3329 = vunpack.c.l.b16 %v1121
        %v3330 = vunpack.c.l.b16 %v1122
        %v3331 = vunpack.c.h.b16 %v1122
        %v3332 = vunpack.c.l.b16 %v1123
        %v3333 = vunpack.c.l.b16 %v1124
        %v3334 = vunpack.c.h.b16 %v1124
        %v3335 = vunpack.c.l.b16 %v1125
        %v3336 = vunpack.c.l.b16 %v1126
        %v3337 = vunpack.c.h.b16 %v1126
        %v3338 = vunpack.c.l.b16 %v1127
        %v3339 = vunpack.c.l.b16 %v1128
        %v3340 = vunpack.c.h.b16 %v1128
        %v3341 = vunpack.c.l.b16 %v1129
        %v3342 = vunpack.c.l.b16 %v1130
        %v3343 = vunpack.c.h.b16 %v1130
        %v3344 = vunpack.c.l.b16 %v1131
        %v3345 = vunpack.c.l.b16 %v1132
        %v3346 = vunpack.c.h.b16 %v1132
        %v3347 = vunpack.c.l.b16 %v1133
        %v3348 = vunpack.c.l.b16 %v1134
        %v3349 = vunpack.c.h.b16 %v1134
        %v3350 = vunpack.c.l.b16 %v1135
        %v3351 = vunpack.c.l.b16 %v1136
        %v3352 = vunpack.c.h.b16 %v1136
        %v3353 = vunpack.c.l.b16 %v1137
        %v3354 = vunpack.c.l.b16 %v1138
        %v3355 = vunpack.c.h.b16 %v1138
        %v3356 = vunpack.c.l.b16 %v1139
        %v3357 = vunpack.c.l.b16 %v1140
        %v3358 = vunpack.c.h.b16 %v1140
        %v3359 = vunpack.c.l.b16 %v1141
        %v3360 = vunpack.c.l.b16 %v1142
        %v3361 = vunpack.c.h.b16 %v1142
        %v3362 = vunpack.c.l.b16 %v1143
        %v3363 = vunpack.c.l.b16 %v1144
        %v3364 = vunpack.c.h.b16 %v1144
        %v3365 = vunpack.c.l.b16 %v1145
        %v3366 = vunpack.c.l.b16 %v1146
        %v3367 = vunpack.c.h.b16 %v1146
        %v3368 = vunpack.c.l.b16 %v1147
        %v3369 = vunpack.c.l.b16 %v1148
        %v3370 = vunpack.c.h.b16 %v1148
        %v3371 = vunpack.c.l.b16 %v1149
        %v3372 = vunpack.c.l.b16 %v1150
        %v3373 = vunpack.c.h.b16 %v1150
        %v3374 = vunpack.c.l.b16 %v1151
        %v3375 = vunpack.c.l.b16 %v1152
        %v3376 = vunpack.c.h.b16 %v1152
        %v3377 = vunpack.c.l.b16 %v1153
        %v3378 = vunpack.c.l.b16 %v1154
        %v3379 = vunpack.c.h.b16 %v1154
        %v3380 = vunpack.c.l.b16 %v1155
        %v3381 = vunpack.c.l.b16 %v1156
        %v3382 = vunpack.c.h.b16 %v1156
        %v3383 = vunpack.c.l.b16 %v1157
        %v3384 = vunpack.c.l.b16 %v1158
        %v3385 = vunpack.c.h.b16 %v1158
        %v3386 = vunpack.c.l.b16 %v1159
        %v3387 = vunpack.c.l.b16 %v1160
        %v3388 = vunpack.c.h.b16 %v1160
        %v3389 = vunpack.c.l.b16 %v1161
        %v3390 = vunpack.c.l.b16 %v1162
        %v3391 = vunpack.c.h.b16 %v1162
        %v3392 = vunpack.c.l.b16 %v1163
        %v3393 = vunpack.c.l.b16 %v1164
        %v3394 = vunpack.c.h.b16 %v1164
        %v3395 = vunpack.c.l.b16 %v1165
        %v3396 = vunpack.c.l.b16 %v1166
        %v3397 = vunpack.c.h.b16 %v1166
        %v3398 = vunpack.c.l.b16 %v1167
        %v3399 = vunpack.c.l.b16 %v1168
        %v3400 = vunpack.c.h.b16 %v1168
        %v3401 = vunpack.c.l.b16 %v1169
        %v3402 = vunpack.c.l.b16 %v1170
        %v3403 = vunpack.c.h.b16 %v1170
        %v3404 = vunpack.c.l.b16 %v1171
        %v3405 = vunpack.c.l.b16 %v1172
        %v3406 = vunpack.c.h.b16 %v1172
        %v3407 = vunpack.c.l.b16 %v1173
        %v3408 = vunpack.c.l.b16 %v1174
        %v3409 = vunpack.c.h.b16 %v1174
        %v3410 = vunpack.c.l.b16 %v1175
        %v3411 = vunpack.c.l.b16 %v1176
        %v3412 = vunpack.c.h.b16 %v1176
        %v3413 = vunpack.c.l.b16 %v1177
        %v3414 = vunpack.c.l.b16 %v1178
        %v3415 = vunpack.c.h.b16 %v1178
        %v3416 = vunpack.c.l.b16 %v1179
        %v3417 = vunpack.c.l.b16 %v1180
        %v3418 = vunpack.c.h.b16 %v1180
        %v3419 = vunpack.c.l.b16 %v1181
        %v3420 = vunpack.c.l.b16 %v1182
        %v3421 = vunpack.c.h.b16 %v1182
        %v3422 = vunpack.c.l.b16 %v1183
        %v3423 = vunpack.c.l.b16 %v1184
        %v3424 = vunpack.c.h.b16 %v1184
        %v3425 = vunpack.c.l.b16 %v1185
        %v3426 = vunpack.c.l.b16 %v1186
        %v3427 = vunpack.c.h.b16 %v1186
        %v3428 = vunpack.c.l.b16 %v1187
        %v3429 = vunpack.c.l.b16 %v1188
        %v3430 = vunpack.c.h.b16 %v1188
        %v3431 = vunpack.c.l.b16 %v1189
        %v3432 = vunpack.c.l.b16 %v1190
        %v3433 = vunpack.c.h.b16 %v1190
        %v3434 = vunpack.c.l.b16 %v1191
        %v3435 = vunpack.c.l.b16 %v1192
        %v3436 = vunpack.c.h.b16 %v1192
        %v3437 = vunpack.c.l.b16 %v1193
        %v3438 = vunpack.c.l.b16 %v1194
        %v3439 = vunpack.c.h.b16 %v1194
        %v3440 = vunpack.c.l.b16 %v1195
        %v3441 = vunpack.c.l.b16 %v1196
        %v3442 = vunpack.c.h.b16 %v1196
        %v3443 = vunpack.c.l.b16 %v1197
        %v3444 = vunpack.c.l.b16 %v1198
        %v3445 = vunpack.c.h.b16 %v1198
        %v3446 = vunpack.c.l.b16 %v1199
        %v3447 = vunpack.c.l.b16 %v1200
        %v3448 = vunpack.c.h.b16 %v1200
        %v3449 = vunpack.c.l.b16 %v1201
        %v3450 = vunpack.c.l.b16 %v1202
        %v3451 = vunpack.c.h.b16 %v1202
        %v3452 = vunpack.c.l.b16 %v1203
        %v3453 = vunpack.c.l.b16 %v1204
        %v3454 = vunpack.c.h.b16 %v1204
        %v3455 = vunpack.c.l.b16 %v1205
        %v3456 = vunpack.c.l.b16 %v1206
        %v3457 = vunpack.c.h.b16 %v1206
        %v3458 = vunpack.c.l.b16 %v1207
        %v3459 = vunpack.c.l.b16 %v1208
        %v3460 = vunpack.c.h.b16 %v1208
        %v3461 = vunpack.c.l.b16 %v1209
        %v3462 = vunpack.c.l.b16 %v1210
        %v3463 = vunpack.c.h.b16 %v1210
        %v3464 = vunpack.c.l.b16 %v1211
        %v3465 = vunpack.c.l.b16 %v1212
        %v3466 = vunpack.c.h.b16 %v1212
        %v3467 = vunpack.c.l.b16 %v1213
        %v3468 = vunpack.c.l.b16 %v1214
        %v3469 = vunpack.c.h.b16 %v1214
        %v3470 = vunpack.c.l.b16 %v1215
        %v3471 = vunpack.c.l.b16 %v1216
        %v3472 = vunpack.c.h.b16 %v1216
        %v3473 = vunpack.c.l.b16 %v1217
        %v3474 = vunpack.c.l.b16 %v1218
        %v3475 = vunpack.c.h.b16 %v1218
        %v3476 = vunpack.c.l.b16 %v1219
        %v3477 = vunpack.c.l.b16 %v1220
        %v3478 = vunpack.c.h.b16 %v1220
        %v3479 = vunpack.c.l.b16 %v1221
        %v3480 = vunpack.c.l.b16 %v1222
        %v3481 = vunpack.c.h.b16 %v1222
        %v3482 = vunpack.c.l.b16 %v1223
        %v3483 = vunpack.c.l.b16 %v1224
        %v3484 = vunpack.c.h.b16 %v1224
        %v3485 = vunpack.c.l.b16 %v1225
        %v3486 = vunpack.c.l.b16 %v1226
        %v3487 = vunpack.c.h.b16 %v1226
        %v3488 = vunpack.c.l.b16 %v1227
        %v3489 = vunpack.c.l.b16 %v1228
        %v3490 = vunpack.c.h.b16 %v1228
        %v3491 = vunpack.c.l.b16 %v1229
        %v3492 = vunpack.c.l.b16 %v1230
        %v3493 = vunpack.c.h.b16 %v1230
        %v3494 = vunpack.c.l.b16 %v1231
        %v3495 = vunpack.c.l.b16 %v1232
        %v3496 = vunpack.c.h.b16 %v1232
        %v3497 = vunpack.c.l.b16 %v1233
        %v3498 = vunpack.c.l.b16 %v1234
        %v3499 = vunpack.c.h.b16 %v1234
        %v3500 = vunpack.c.l.b16 %v1235
        %v3501 = vunpack.c.l.b16 %v1236
        %v3502 = vunpack.c.h.b16 %v1236
        %v3503 = vunpack.c.l.b16 %v1237
        %v3504 = vunpack.c.l.b16 %v1238
        %v3505 = vunpack.c.h.b16 %v1238
        %v3506 = vunpack.c.l.b16 %v1239
        %v3507 = vunpack.c.l.b16 %v1240
        %v3508 = vunpack.c.h.b16 %v1240
        %v3509 = vunpack.c.l.b16 %v1241
        %v3510 = vunpack.c.l.b16 %v1242
        %v3511 = vunpack.c.h.b16 %v1242
        %v3512 = vunpack.c.l.b16 %v1243
        %v3513 = vunpack.c.l.b16 %v1244
        %v3514 = vunpack.c.h.b16 %v1244
        %v3515 = vunpack.c.l.b16 %v1245
        %v3516 = vunpack.c.l.b16 %v1246
        %v3517 = vunpack.c.h.b16 %v1246
        %v3518 = vunpack.c.l.b16 %v1247
        %v3519 = vunpack.c.l.b16 %v1248
        %v3520 = vunpack.c.h.b16 %v1248
        %v3521 = vunpack.c.l.b16 %v1249
        %v3522 = vunpack.c.l.b16 %v1250
        %v3523 = vunpack.c.h.b16 %v1250
        %v3524 = vunpack.c.l.b16 %v1251
        %v3525 = vunpack.c.l.b16 %v1252
        %v3526 = vunpack.c.h.b16 %v1252
        %v3527 = vunpack.c.l.b16 %v1253
        %v3528 = vunpack.c.l.b16 %v1254
        %v3529 = vunpack.c.h.b16 %v1254
        %v3530 = vunpack.c.l.b16 %v1255
        %v3531 = vunpack.c.l.b16 %v1256
        %v3532 = vunpack.c.h.b16 %v1256
        %v3533 = vunpack.c.l.b16 %v1257
        %v3534 = vunpack.c.l.b16 %v1258
        %v3535 = vunpack.c.h.b16 %v1258
        %v3536 = vunpack.c.l.b16 %v1259
        %v3537 = vunpack.c.l.b16 %v1260
        %v3538 = vunpack.c.h.b16 %v1260
        %v3539 = vunpack.c.l.b16 %v1261
        %v3540 = vunpack.c.l.b16 %v1262
        %v3541 = vunpack.c.h.b16 %v1262
        %v3542 = vunpack.c.l.b16 %v1263
        %v3543 = vunpack.c.l.b16 %v1264
        %v3544 = vunpack.c.h.b16 %v1264
        %v3545 = vunpack.c.l.b16 %v1265
        %v3546 = vunpack.c.l.b16 %v1266
        %v3547 = vunpack.c.h.b16 %v1266
        %v3548 = vunpack.c.l.b16 %v1267
        %v3549 = vunpack.c.l.b16 %v1268
        %v3550 = vunpack.c.h.b16 %v1268
        %v3551 = vunpack.c.l.b16 %v1269
        %v3552 = vunpack.c.l.b16 %v1270
        %v3553 = vunpack.c.h.b16 %v1270
        %v3554 = vunpack.c.l.b16 %v1271
        %v3555 = vunpack.c.l.b16 %v1272
        %v3556 = vunpack.c.h.b16 %v1272
        %v3557 = vunpack.c.l.b16 %v1273
        %v3558 = vunpack.c.l.b16 %v1274
        %v3559 = vunpack.c.h.b16 %v1274
        %v3560 = vunpack.c.l.b16 %v1275
        %v3561 = vunpack.c.l.b16 %v1276
        %v3562 = vunpack.c.h.b16 %v1276
        %v3563 = vunpack.c.l.b16 %v1277
        %v3564 = vunpack.c.l.b16 %v1278
        %v3565 = vunpack.c.h.b16 %v1278
        %v3566 = vunpack.c.l.b16 %v1279
        %v3567 = vunpack.c.l.b16 %v1280
        %v3568 = vunpack.c.h.b16 %v1280
        %v3569 = vunpack.c.l.b16 %v1281
        %v3570 = vunpack.c.l.b16 %v1282
        %v3571 = vunpack.c.h.b16 %v1282
        %v3572 = vunpack.c.l.b16 %v1283
        %v3573 = vunpack.c.l.b16 %v1284
        %v3574 = vunpack.c.h.b16 %v1284
        %v3575 = vunpack.c.l.b16 %v1285
        %v3576 = vunpack.c.l.b16 %v1286
        %v3577 = vunpack.c.h.b16 %v1286
        %v3578 = vunpack.c.l.b16 %v1287
        %v3579 = vunpack.c.l.b16 %v1288
        %v3580 = vunpack.c.h.b16 %v1288
        %v3581 = vunpack.c.l.b16 %v1289
        %v3582 = vunpack.c.l.b16 %v1290
        %v3583 = vunpack.c.h.b16 %v1290
        %v3584 = vunpack.c.l.b16 %v1291
        %v3585 = vunpack.c.l.b16 %v1292
        %v3586 = vunpack.c.h.b16 %v1292
        %v3587 = vunpack.c.l.b16 %v1293
        %v3588 = vunpack.c.l.b16 %v1294
        %v3589 = vunpack.c.h.b16 %v1294
        %v3590 = vunpack.c.l.b16 %v1295
        %v3591 = vunpack.c.l.b16 %v1296
        %v3592 = vunpack.c.h.b16 %v1296
        %v3593 = vunpack.c.l.b16 %v1297
        %v3594 = vunpack.c.l.b16 %v1298
        %v3595 = vunpack.c.h.b16 %v1298
        %v3596 = vunpack.c.l.b16 %v1299
        %v3597 = vunpack.c.l.b16 %v1300
        %v3598 = vunpack.c.h.b16 %v1300
        %v3599 = vunpack.c.l.b16 %v1301
        %v3600 = vunpack.c.l.b16 %v1302
        %v3601 = vunpack.c.h.b16 %v1302
        %v3602 = vunpack.c.l.b16 %v1303
        %v3603 = vunpack.c.l.b16 %v1304
        %v3604 = vunpack.c.h.b16 %v1304
        %v3605 = vunpack.c.l.b16 %v1305
        %v3606 = vunpack.c.l.b16 %v1306
        %v3607 = vunpack.c.h.b16 %v1306
        %v3608 = vunpack.c.l.b16 %v1307
        %v3609 = vunpack.c.l.b16 %v1308
        %v3610 = vunpack.c.h.b16 %v1308
        %v3611 = vunpack.c.l.b16 %v1309
        %v3612 = vunpack.c.l.b16 %v1310
        %v3613 = vunpack.c.h.b16 %v1310
        %v3614 = vunpack.c.l.b16 %v1311
        %v3615 = vunpack.c.l.b16 %v1312
        %v3616 = vunpack.c.h.b16 %v1312
        %v3617 = vunpack.c.l.b16 %v1313
        %v3618 = vunpack.c.l.b16 %v1314
        %v3619 = vunpack.c.h.b16 %v1314
        %v3620 = vunpack.c.l.b16 %v1315
        %v3621 = vunpack.c.l.b16 %v1316
        %v3622 = vunpack.c.h.b16 %v1316
        %v3623 = vunpack.c.l.b16 %v1317
        %v3624 = vunpack.c.l.b16 %v1318
        %v3625 = vunpack.c.h.b16 %v1318
        %v3626 = vunpack.c.l.b16 %v1319
        %v3627 = vunpack.c.l.b16 %v1320
        %v3628 = vunpack.c.h.b16 %v1320
        %v3629 = vunpack.c.l.b16 %v1321
        %v3630 = vunpack.c.l.b16 %v1322
        %v3631 = vunpack.c.h.b16 %v1322
        %v3632 = vunpack.c.l.b16 %v1323
        %v3633 = vunpack.c.l.b16 %v1324
        %v3634 = vunpack.c.h.b16 %v1324
        %v3635 = vunpack.c.l.b16 %v1325
        %v3636 = vunpack.c.l.b16 %v1326
        %v3637 = vunpack.c.h.b16 %v1326
        %v3638 = vunpack.c.l.b16 %v1327
        %v3639 = vunpack.c.l.b16 %v1328
        %v3640 = vunpack.c.h.b16 %v1328
        %v3641 = vunpack.c.l.b16 %v1329
        %v3642 = vunpack.c.l.b16 %v1330
        %v3643 = vunpack.c.h.b16 %v1330
        %v3644 = vunpack.c.l.b16 %v1331
        %v3645 = vunpack.c.l.b16 %v1332
        %v3646 = vunpack.c.h.b16 %v1332
        %v3647 = vunpack.c.l.b16 %v1333
        %v3648 = vunpack.c.l.b16 %v1334
        %v3649 = vunpack.c.h.b16 %v1334
        %v3650 = vunpack.c.l.b16 %v1335
        %v3651 = vunpack.c.l.b16 %v1336
        %v3652 = vunpack.c.h.b16 %v1336
        %v3653 = vunpack.c.l.b16 %v1337
        %v3654 = vunpack.c.l.b16 %v1338
        %v3655 = vunpack.c.h.b16 %v1338
        %v3656 = vunpack.c.l.b16 %v1339
        %v3657 = vunpack.c.l.b16 %v1340
        %v3658 = vunpack.c.h.b16 %v1340
        %v3659 = vunpack.c.l.b16 %v1341
        %v3660 = vunpack.c.l.b16 %v1342
        %v3661 = vunpack.c.h.b16 %v1342
        %v3662 = vunpack.c.l.b16 %v1343
        %v3663 = vunpack.c.l.b16 %v1344
        %v3664 = vunpack.c.h.b16 %v1344
        %v3665 = vunpack.c.l.b16 %v1345
        %v3666 = vunpack.c.l.b16 %v1346
        %v3667 = vunpack.c.h.b16 %v1346
        %v3668 = vunpack.c.l.b16 %v1347
        %v3669 = vunpack.c.l.b16 %v1348
        %v3670 = vunpack.c.h.b16 %v1348
        %v3671 = vunpack.c.l.b16 %v1349
        %v3672 = vunpack.c.l.b16 %v1350
        %v3673 = vunpack.c.h.b16 %v1350
        %v3674 = vunpack.c.l.b16 %v1351
        %v3675 = vunpack.c.l.b16 %v1352
        %v3676 = vunpack.c.h.b16 %v1352
        %v3677 = vunpack.c.l.b16 %v1353
        %v3678 = vunpack.c.l.b16 %v1354
        %v3679 = vunpack.c.h.b16 %v1354
        %v3680 = vunpack.c.l.b16 %v1355
        %v3681 = vunpack.c.l.b16 %v1356
        %v3682 = vunpack.c.h.b16 %v1356
        %v3683 = vunpack.c.l.b16 %v1357
        %v3684 = vunpack.c.l.b16 %v1358
        %v3685 = vunpack.c.h.b16 %v1358
        %v3686 = vunpack.c.l.b16 %v1359
        %v3687 = vunpack.c.l.b16 %v1360
        %v3688 = vunpack.c.h.b16 %v1360
        %v3689 = vunpack.c.l.b16 %v1361
        %v3690 = vunpack.c.l.b16 %v1362
        %v3691 = vunpack.c.h.b16 %v1362
        %v3692 = vunpack.c.l.b16 %v1363
        %v3693 = vunpack.c.l.b16 %v1364
        %v3694 = vunpack.c.h.b16 %v1364
        %v3695 = vunpack.c.l.b16 %v1365
        %v3696 = vunpack.c.l.b16 %v1366
        %v3697 = vunpack.c.h.b16 %v1366
        %v3698 = vunpack.c.l.b16 %v1367
        %v3699 = vunpack.c.l.b16 %v1368
        %v3700 = vunpack.c.h.b16 %v1368
        %v3701 = vunpack.c.l.b16 %v1369
        %v3702 = vunpack.c.l.b16 %v1370
        %v3703 = vunpack.c.h.b16 %v1370
        %v3704 = vunpack.c.l.b16 %v1371
        %v3705 = vunpack.c.l.b16 %v1372
        %v3706 = vunpack.c.h.b16 %v1372
        %v3707 = vunpack.c.l.b16 %v1373
        %v3708 = vunpack.c.l.b16 %v1374
        %v3709 = vunpack.c.h.b16 %v1374
        %v3710 = vunpack.c.l.b16 %v1375
        %v3711 = vunpack.c.l.b16 %v1376
        %v3712 = vunpack.c.h.b16 %v1376
        %v3713 = vunpack.c.l.b16 %v1377
        %v3714 = vunpack.c.l.b16 %v1378
        %v3715 = vunpack.c.h.b16 %v1378
        %v3716 = vunpack.c.l.b16 %v1379
        %v3717 = vunpack.c.l.b16 %v1380
        %v3718 = vunpack.c.h.b16 %v1380
        %v3719 = vunpack.c.l.b16 %v1381
        %v3720 = vpack.c.b16 %v2379, %v2376
        %v3721 = vpack.c.b16 %v2380, %v2377
        %v3722 = vpack.c.b16 %v2381, %v2378
        %v3723 = vpack.c.b16 %v2385, %v2382
        %v3724 = vpack.c.b16 %v2386, %v2383
        %v3725 = vpack.c.b16 %v2387, %v2384
        %v3726 = vpack.c.b16 %v2391, %v2388
        %v3727 = vpack.c.b16 %v2392, %v2389
        %v3728 = vpack.c.b16 %v2393, %v2390
        %v3729 = vpack.c.b16 %v2397, %v2394
        %v3730 = vpack.c.b16 %v2398, %v2395
        %v3731 = vpack.c.b16 %v2399, %v2396
        %v3732 = vpack.c.b16 %v2403, %v2400
        %v3733 = vpack.c.b16 %v2404, %v2401
        %v3734 = vpack.c.b16 %v2405, %v2402
        %v3735 = vpack.c.b16 %v2409, %v2406
        %v3736 = vpack.c.b16 %v2410, %v2407
        %v3737 = vpack.c.b16 %v2411, %v2408
        %v3738 = vpack.c.b16 %v2415, %v2412
        %v3739 = vpack.c.b16 %v2416, %v2413
        %v3740 = vpack.c.b16 %v2417, %v2414
        %v3741 = vpack.c.b16 %v2421, %v2418
        %v3742 = vpack.c.b16 %v2422, %v2419
        %v3743 = vpack.c.b16 %v2423, %v2420
        %v3744 = vpack.c.b16 %v2427, %v2424
        %v3745 = vpack.c.b16 %v2428, %v2425
        %v3746 = vpack.c.b16 %v2429, %v2426
        %v3747 = vpack.c.b16 %v2433, %v2430
        %v3748 = vpack.c.b16 %v2434, %v2431
        %v3749 = vpack.c.b16 %v2435, %v2432
        %v3750 = vpack.c.b16 %v2439, %v2436
        %v3751 = vpack.c.b16 %v2440, %v2437
        %v3752 = vpack.c.b16 %v2441, %v2438
        %v3753 = vpack.c.b16 %v2445, %v2442
        %v3754 = vpack.c.b16 %v2446, %v2443
        %v3755 = vpack.c.b16 %v2447, %v2444
        %v3756 = vpack.c.b16 %v2451, %v2448
        %v3757 = vpack.c.b16 %v2452, %v2449
        %v3758 = vpack.c.b16 %v2453, %v2450
        %v3759 = vpack.c.b16 %v2457, %v2454
        %v3760 = vpack.c.b16 %v2458, %v2455
        %v3761 = vpack.c.b16 %v2459, %v2456
        %v3762 = vpack.c.b16 %v2463, %v2460
        %v3763 = vpack.c.b16 %v2464, %v2461
        %v3764 = vpack.c.b16 %v2465, %v2462
        %v3765 = vpack.c.b16 %v2469, %v2466
        %v3766 = vpack.c.b16 %v2470, %v2467
        %v3767 = vpack.c.b16 %v2471, %v2468
        %v3768 = vpack.c.b16 %v2475, %v2472
        %v3769 = vpack.c.b16 %v2476, %v2473
        %v3770 = vpack.c.b16 %v2477, %v2474
        %v3771 = vpack.c.b16 %v2481, %v2478
        %v3772 = vpack.c.b16 %v2482, %v2479
        %v3773 = vpack.c.b16 %v2483, %v2480
        %v3774 = vpack.c.b16 %v2487, %v2484
        %v3775 = vpack.c.b16 %v2488, %v2485
        %v3776 = vpack.c.b16 %v2489, %v2486
        %v3777 = vpack.c.b16 %v2493, %v2490
        %v3778 = vpack.c.b16 %v2494, %v2491
        %v3779 = vpack.c.b16 %v2495, %v2492
        %v3780 = vpack.c.b16 %v2499, %v2496
        %v3781 = vpack.c.b16 %v2500, %v2497
        %v3782 = vpack.c.b16 %v2501, %v2498
        %v3783 = vpack.c.b16 %v2505, %v2502
        %v3784 = vpack.c.b16 %v2506, %v2503
        %v3785 = vpack.c.b16 %v2507, %v2504
        %v3786 = vpack.c.b16 %v2511, %v2508
        %v3787 = vpack.c.b16 %v2512, %v2509
        %v3788 = vpack.c.b16 %v2513, %v2510
        %v3789 = vpack.c.b16 %v2517, %v2514
        %v3790 = vpack.c.b16 %v2518, %v2515
        %v3791 = vpack.c.b16 %v2519, %v2516
        %v3792 = vpack.c.b16 %v2523, %v2520
        %v3793 = vpack.c.b16 %v2524, %v2521
        %v3794 = vpack.c.b16 %v2525, %v2522
        %v3795 = vpack.c.b16 %v2529, %v2526
        %v3796 = vpack.c.b16 %v2530, %v2527
        %v3797 = vpack.c.b16 %v2531, %v2528
        %v3798 = vpack.c.b16 %v2535, %v2532
        %v3799 = vpack.c.b16 %v2536, %v2533
        %v3800 = vpack.c.b16 %v2537, %v2534
        %v3801 = vpack.c.b16 %v2541, %v2538
        %v3802 = vpack.c.b16 %v2542, %v2539
        %v3803 = vpack.c.b16 %v2543, %v2540
        %v3804 = vpack.c.b16 %v2547, %v2544
        %v3805 = vpack.c.b16 %v2548, %v2545
        %v3806 = vpack.c.b16 %v2549, %v2546
        %v3807 = vpack.c.b16 %v2553, %v2550
        %v3808 = vpack.c.b16 %v2554, %v2551
        %v3809 = vpack.c.b16 %v2555, %v2552
        %v3810 = vpack.c.b16 %v2559, %v2556
        %v3811 = vpack.c.b16 %v2560, %v2557
        %v3812 = vpack.c.b16 %v2561, %v2558
        %v3813 = vpack.c.b16 %v2565, %v2562
        %v3814 = vpack.c.b16 %v2566, %v2563
        %v3815 = vpack.c.b16 %v2567, %v2564
        %v3816 = vpack.c.b16 %v2571, %v2568
        %v3817 = vpack.c.b16 %v2572, %v2569
        %v3818 = vpack.c.b16 %v2573, %v2570
        %v3819 = vpack.c.b16 %v2577, %v2574
        %v3820 = vpack.c.b16 %v2578, %v2575
        %v3821 = vpack.c.b16 %v2579, %v2576
        %v3822 = vpack.c.b16 %v2583, %v2580
        %v3823 = vpack.c.b16 %v2584, %v2581
        %v3824 = vpack.c.b16 %v2585, %v2582
        %v3825 = vpack.c.b16 %v2589, %v2586
        %v3826 = vpack.c.b16 %v2590, %v2587
        %v3827 = vpack.c.b16 %v2591, %v2588
        %v3828 = vpack.c.b16 %v2595, %v2592
        %v3829 = vpack.c.b16 %v2596, %v2593
        %v3830 = vpack.c.b16 %v2597, %v2594
        %v3831 = vpack.c.b16 %v2601, %v2598
        %v3832 = vpack.c.b16 %v2602, %v2599
        %v3833 = vpack.c.b16 %v2603, %v2600
        %v3834 = vpack.c.b16 %v2607, %v2604
        %v3835 = vpack.c.b16 %v2608, %v2605
        %v3836 = vpack.c.b16 %v2609, %v2606
        %v3837 = vpack.c.b16 %v2613, %v2610
        %v3838 = vpack.c.b16 %v2614, %v2611
        %v3839 = vpack.c.b16 %v2615, %v2612
        %v3840 = vpack.c.b16 %v2619, %v2616
        %v3841 = vpack.c.b16 %v2620, %v2617
        %v3842 = vpack.c.b16 %v2621, %v2618
        %v3843 = vpack.c.b16 %v2625, %v2622
        %v3844 = vpack.c.b16 %v2626, %v2623
        %v3845 = vpack.c.b16 %v2627, %v2624
        %v3846 = vpack.c.b16 %v2631, %v2628
        %v3847 = vpack.c.b16 %v2632, %v2629
        %v3848 = vpack.c.b16 %v2633, %v2630
        %v3849 = vpack.c.b16 %v2637, %v2634
        %v3850 = vpack.c.b16 %v2638, %v2635
        %v3851 = vpack.c.b16 %v2639, %v2636
        %v3852 = vpack.c.b16 %v2643, %v2640
        %v3853 = vpack.c.b16 %v2644, %v2641
        %v3854 = vpack.c.b16 %v2645, %v2642
        %v3855 = vpack.c.b16 %v2649, %v2646
        %v3856 = vpack.c.b16 %v2650, %v2647
        %v3857 = vpack.c.b16 %v2651, %v2648
        %v3858 = vpack.c.b16 %v2655, %v2652
        %v3859 = vpack.c.b16 %v2656, %v2653
        %v3860 = vpack.c.b16 %v2657, %v2654
        %v3861 = vpack.c.b16 %v2661, %v2658
        %v3862 = vpack.c.b16 %v2662, %v2659
        %v3863 = vpack.c.b16 %v2663, %v2660
        %v3864 = vpack.c.b16 %v2667, %v2664
        %v3865 = vpack.c.b16 %v2668, %v2665
        %v3866 = vpack.c.b16 %v2669, %v2666
        %v3867 = vpack.c.b16 %v2673, %v2670
        %v3868 = vpack.c.b16 %v2674, %v2671
        %v3869 = vpack.c.b16 %v2675, %v2672
        %v3870 = vpack.c.b16 %v2679, %v2676
        %v3871 = vpack.c.b16 %v2680, %v2677
        %v3872 = vpack.c.b16 %v2681, %v2678
        %v3873 = vpack.c.b16 %v2685, %v2682
        %v3874 = vpack.c.b16 %v2686, %v2683
        %v3875 = vpack.c.b16 %v2687, %v2684
        %v3876 = vpack.c.b16 %v2691, %v2688
        %v3877 = vpack.c.b16 %v2692, %v2689
        %v3878 = vpack.c.b16 %v2693, %v2690
        %v3879 = vpack.c.b16 %v2697, %v2694
        %v3880 = vpack.c.b16 %v2698, %v2695
        %v3881 = vpack.c.b16 %v2699, %v2696
        %v3882 = vpack.c.b16 %v2703, %v2700
        %v3883 = vpack.c.b16 %v2704, %v2701
        %v3884 = vpack.c.b16 %v2705, %v2702
        %v3885 = vpack.c.b16 %v2709, %v2706
        %v3886 = vpack.c.b16 %v2710, %v2707
        %v3887 = vpack.c.b16 %v2711, %v2708
        %v3888 = vpack.c.b16 %v2715, %v2712
        %v3889 = vpack.c.b16 %v2716, %v2713
        %v3890 = vpack.c.b16 %v2717, %v2714
        %v3891 = vpack.c.b16 %v2721, %v2718
        %v3892 = vpack.c.b16 %v2722, %v2719
        %v3893 = vpack.c.b16 %v2723, %v2720
        %v3894 = vpack.c.b16 %v2727, %v2724
        %v3895 = vpack.c.b16 %v2728, %v2725
        %v3896 = vpack.c.b16 %v2729, %v2726
        %v3897 = vpack.c.b16 %v2733, %v2730
        %v3898 = vpack.c.b16 %v2734, %v2731
        %v3899 = vpack.c.b16 %v2735, %v2732
        %v3900 = vpack.c.b16 %v2739, %v2736
        %v3901 = vpack.c.b16 %v2740, %v2737
        %v3902 = vpack.c.b16 %v2741, %v2738
        %v3903 = vpack.c.b16 %v2745, %v2742
        %v3904 = vpack.c.b16 %v2746, %v2743
        %v3905 = vpack.c.b16 %v2747, %v2744
        %v3906 = vpack.c.b16 %v2751, %v2748
        %v3907 = vpack.c.b16 %v2752, %v2749
        %v3908 = vpack.c.b16 %v2753, %v2750
        %v3909 = vpack.c.b16 %v2757, %v2754
        %v3910 = vpack.c.b16 %v2758, %v2755
        %v3911 = vpack.c.b16 %v2759, %v2756
        %v3912 = vpack.c.b16 %v2763, %v2760
        %v3913 = vpack.c.b16 %v2764, %v2761
        %v3914 = vpack.c.b16 %v2765, %v2762
        %v3915 = vpack.c.b16 %v2769, %v2766
        %v3916 = vpack.c.b16 %v2770, %v2767
        %v3917 = vpack.c.b16 %v2771, %v2768
        %v3918 = vpack.c.b16 %v2775, %v2772
        %v3919 = vpack.c.b16 %v2776, %v2773
        %v3920 = vpack.c.b16 %v2777, %v2774
        %v3921 = vpack.c.b16 %v2781, %v2778
        %v3922 = vpack.c.b16 %v2782, %v2779
        %v3923 = vpack.c.b16 %v2783, %v2780
        %v3924 = vpack.c.b16 %v2787, %v2784
        %v3925 = vpack.c.b16 %v2788, %v2785
        %v3926 = vpack.c.b16 %v2789, %v2786
        %v3927 = vpack.c.b16 %v2793, %v2790
        %v3928 = vpack.c.b16 %v2794, %v2791
        %v3929 = vpack.c.b16 %v2795, %v2792
        %v3930 = vpack.c.b16 %v2799, %v2796
        %v3931 = vpack.c.b16 %v2800, %v2797
        %v3932 = vpack.c.b16 %v2801, %v2798
        %v3933 = vpack.c.b16 %v2805, %v2802
        %v3934 = vpack.c.b16 %v2806, %v2803
        %v3935 = vpack.c.b16 %v2807, %v2804
        %v3936 = vpack.c.b16 %v2811, %v2808
        %v3937 = vpack.c.b16 %v2812, %v2809
        %v3938 = vpack.c.b16 %v2813, %v2810
        %v3939 = vpack.c.b16 %v2817, %v2814
        %v3940 = vpack.c.b16 %v2818, %v2815
        %v3941 = vpack.c.b16 %v2819, %v2816
        %v3942 = vpack.c.b16 %v2823, %v2820
        %v3943 = vpack.c.b16 %v2824, %v2821
        %v3944 = vpack.c.b16 %v2825, %v2822
        %v3945 = vpack.c.b16 %v2829, %v2826
        %v3946 = vpack.c.b16 %v2830, %v2827
        %v3947 = vpack.c.b16 %v2831, %v2828
        %v3948 = vpack.c.b16 %v2835, %v2832
        %v3949 = vpack.c.b16 %v2836, %v2833
        %v3950 = vpack.c.b16 %v2837, %v2834
        %v3951 = vpack.c.b16 %v2841, %v2838
        %v3952 = vpack.c.b16 %v2842, %v2839
        %v3953 = vpack.c.b16 %v2843, %v2840
        %v3954 = vpack.c.b16 %v2847, %v2844
        %v3955 = vpack.c.b16 %v2848, %v2845
        %v3956 = vpack.c.b16 %v2849, %v2846
        %v3957 = vpack.c.b16 %v2853, %v2850
        %v3958 = vpack.c.b16 %v2854, %v2851
        %v3959 = vpack.c.b16 %v2855, %v2852
        %v3960 = vpack.c.b16 %v2859, %v2856
        %v3961 = vpack.c.b16 %v2860, %v2857
        %v3962 = vpack.c.b16 %v2861, %v2858
        %v3963 = vpack.c.b16 %v2865, %v2862
        %v3964 = vpack.c.b16 %v2866, %v2863
        %v3965 = vpack.c.b16 %v2867, %v2864
        %v3966 = vpack.c.b16 %v2871, %v2868
        %v3967 = vpack.c.b16 %v2872, %v2869
        %v3968 = vpack.c.b16 %v2873, %v2870
        %v3969 = vpack.c.b16 %v2877, %v2874
        %v3970 = vpack.c.b16 %v2878, %v2875
        %v3971 = vpack.c.b16 %v2879, %v2876
        %v3972 = vpack.c.b16 %v2883, %v2880
        %v3973 = vpack.c.b16 %v2884, %v2881
        %v3974 = vpack.c.b16 %v2885, %v2882
        %v3975 = vpack.c.b16 %v2889, %v2886
        %v3976 = vpack.c.b16 %v2890, %v2887
        %v3977 = vpack.c.b16 %v2891, %v2888
        %v3978 = vpack.c.b16 %v2895, %v2892
        %v3979 = vpack.c.b16 %v2896, %v2893
        %v3980 = vpack.c.b16 %v2897, %v2894
        %v3981 = vpack.c.b16 %v2901, %v2898
        %v3982 = vpack.c.b16 %v2902, %v2899
        %v3983 = vpack.c.b16 %v2903, %v2900
        %v3984 = vpack.c.b16 %v2907, %v2904
        %v3985 = vpack.c.b16 %v2908, %v2905
        %v3986 = vpack.c.b16 %v2909, %v2906
        %v3987 = vpack.c.b16 %v2913, %v2910
        %v3988 = vpack.c.b16 %v2914, %v2911
        %v3989 = vpack.c.b16 %v2915, %v2912
        %v3990 = vpack.c.b16 %v2919, %v2916
        %v3991 = vpack.c.b16 %v2920, %v2917
        %v3992 = vpack.c.b16 %v2921, %v2918
        %v3993 = vpack.c.b16 %v2925, %v2922
        %v3994 = vpack.c.b16 %v2926, %v2923
        %v3995 = vpack.c.b16 %v2927, %v2924
        %v3996 = vpack.c.b16 %v2931, %v2928
        %v3997 = vpack.c.b16 %v2932, %v2929
        %v3998 = vpack.c.b16 %v2933, %v2930
        %v3999 = vpack.c.b16 %v2937, %v2934
        %v4000 = vpack.c.b16 %v2938, %v2935
        %v4001 = vpack.c.b16 %v2939, %v2936
        %v4002 = vpack.c.b16 %v2943, %v2940
        %v4003 = vpack.c.b16 %v2944, %v2941
        %v4004 = vpack.c.b16 %v2945, %v2942
        %v4005 = vpack.c.b16 %v2949, %v2946
        %v4006 = vpack.c.b16 %v2950, %v2947
        %v4007 = vpack.c.b16 %v2951, %v2948
        %v4008 = vpack.c.b16 %v2955, %v2952
        %v4009 = vpack.c.b16 %v2956, %v2953
        %v4010 = vpack.c.b16 %v2957, %v2954
        %v4011 = vpack.c.b16 %v2961, %v2958
        %v4012 = vpack.c.b16 %v2962, %v2959
        %v4013 = vpack.c.b16 %v2963, %v2960
        %v4014 = vpack.c.b16 %v2967, %v2964
        %v4015 = vpack.c.b16 %v2968, %v2965
        %v4016 = vpack.c.b16 %v2969, %v2966
        %v4017 = vpack.c.b16 %v2973, %v2970
        %v4018 = vpack.c.b16 %v2974, %v2971
        %v4019 = vpack.c.b16 %v2975, %v2972
        %v4020 = vpack.c.b16 %v2979, %v2976
        %v4021 = vpack.c.b16 %v2980, %v2977
        %v4022 = vpack.c.b16 %v2981, %v2978
        %v4023 = vpack.c.b16 %v2985, %v2982
        %v4024 = vpack.c.b16 %v2986, %v2983
        %v4025 = vpack.c.b16 %v2987, %v2984
        %v4026 = vpack.c.b16 %v2991, %v2988
        %v4027 = vpack.c.b16 %v2992, %v2989
        %v4028 = vpack.c.b16 %v2993, %v2990
        %v4029 = vpack.c.b16 %v2997, %v2994
        %v4030 = vpack.c.b16 %v2998, %v2995
        %v4031 = vpack.c.b16 %v2999, %v2996
        %v4032 = vpack.c.b16 %v3003, %v3000
        %v4033 = vpack.c.b16 %v3004, %v3001
        %v4034 = vpack.c.b16 %v3005, %v3002
        %v4035 = vpack.c.b16 %v3009, %v3006
        %v4036 = vpack.c.b16 %v3010, %v3007
        %v4037 = vpack.c.b16 %v3011, %v3008
        %v4038 = vpack.c.b16 %v3015, %v3012
        %v4039 = vpack.c.b16 %v3016, %v3013
        %v4040 = vpack.c.b16 %v3017, %v3014
        %v4041 = vpack.c.b16 %v3021, %v3018
        %v4042 = vpack.c.b16 %v3022, %v3019
        %v4043 = vpack.c.b16 %v3023, %v3020
        %v4044 = vpack.c.b16 %v3027, %v3024
        %v4045 = vpack.c.b16 %v3028, %v3025
        %v4046 = vpack.c.b16 %v3029, %v3026
        %v4047 = vpack.c.b16 %v3033, %v3030
        %v4048 = vpack.c.b16 %v3034, %v3031
        %v4049 = vpack.c.b16 %v3035, %v3032
        %v4050 = vpack.c.b16 %v3039, %v3036
        %v4051 = vpack.c.b16 %v3040, %v3037
        %v4052 = vpack.c.b16 %v3041, %v3038
        %v4053 = vpack.c.b16 %v3045, %v3042
        %v4054 = vpack.c.b16 %v3046, %v3043
        %v4055 = vpack.c.b16 %v3047, %v3044
        %v4056 = vpack.c.b16 %v3051, %v3048
        %v4057 = vpack.c.b16 %v3052, %v3049
        %v4058 = vpack.c.b16 %v3053, %v3050
        %v4059 = vpack.c.b16 %v3057, %v3054
        %v4060 = vpack.c.b16 %v3058, %v3055
        %v4061 = vpack.c.b16 %v3059, %v3056
        %v4062 = vpack.c.b16 %v3063, %v3060
        %v4063 = vpack.c.b16 %v3064, %v3061
        %v4064 = vpack.c.b16 %v3065, %v3062
        %v4065 = vpack.c.b16 %v3069, %v3066
        %v4066 = vpack.c.b16 %v3070, %v3067
        %v4067 = vpack.c.b16 %v3071, %v3068
        %v4068 = vpack.c.b16 %v3075, %v3072
        %v4069 = vpack.c.b16 %v3076, %v3073
        %v4070 = vpack.c.b16 %v3077, %v3074
        %v4071 = vpack.c.b16 %v3081, %v3078
        %v4072 = vpack.c.b16 %v3082, %v3079
        %v4073 = vpack.c.b16 %v3083, %v3080
        %v4074 = vpack.c.b16 %v3087, %v3084
        %v4075 = vpack.c.b16 %v3088, %v3085
        %v4076 = vpack.c.b16 %v3089, %v3086
        %v4077 = vpack.c.b16 %v3093, %v3090
        %v4078 = vpack.c.b16 %v3094, %v3091
        %v4079 = vpack.c.b16 %v3095, %v3092
        %v4080 = vpack.c.b16 %v3099, %v3096
        %v4081 = vpack.c.b16 %v3100, %v3097
        %v4082 = vpack.c.b16 %v3101, %v3098
        %v4083 = vpack.c.b16 %v3105, %v3102
        %v4084 = vpack.c.b16 %v3106, %v3103
        %v4085 = vpack.c.b16 %v3107, %v3104
        %v4086 = vpack.c.b16 %v3111, %v3108
        %v4087 = vpack.c.b16 %v3112, %v3109
        %v4088 = vpack.c.b16 %v3113, %v3110
        %v4089 = vpack.c.b16 %v3117, %v3114
        %v4090 = vpack.c.b16 %v3118, %v3115
        %v4091 = vpack.c.b16 %v3119, %v3116
        %v4092 = vpack.c.b16 %v3123, %v3120
        %v4093 = vpack.c.b16 %v3124, %v3121
        %v4094 = vpack.c.b16 %v3125, %v3122
        %v4095 = vpack.c.b16 %v3129, %v3126
        %v4096 = vpack.c.b16 %v3130, %v3127
        %v4097 = vpack.c.b16 %v3131, %v3128
        %v4098 = vpack.c.b16 %v3135, %v3132
        %v4099 = vpack.c.b16 %v3136, %v3133
        %v4100 = vpack.c.b16 %v3137, %v3134
        %v4101 = vpack.c.b16 %v3141, %v3138
        %v4102 = vpack.c.b16 %v3142, %v3139
        %v4103 = vpack.c.b16 %v3143, %v3140
        %v4104 = vpack.c.b16 %v3147, %v3144
        %v4105 = vpack.c.b16 %v3148, %v3145
        %v4106 = vpack.c.b16 %v3149, %v3146
        %v4107 = vpack.c.b16 %v3153, %v3150
        %v4108 = vpack.c.b16 %v3154, %v3151
        %v4109 = vpack.c.b16 %v3155, %v3152
        %v4110 = vpack.c.b16 %v3159, %v3156
        %v4111 = vpack.c.b16 %v3160, %v3157
        %v4112 = vpack.c.b16 %v3161, %v3158
        %v4113 = vpack.c.b16 %v3165, %v3162
        %v4114 = vpack.c.b16 %v3166, %v3163
        %v4115 = vpack.c.b16 %v3167, %v3164
        %v4116 = vpack.c.b16 %v3171, %v3168
        %v4117 = vpack.c.b16 %v3172, %v3169
        %v4118 = vpack.c.b16 %v3173, %v3170
        %v4119 = vpack.c.b16 %v3177, %v3174
        %v4120 = vpack.c.b16 %v3178, %v3175
        %v4121 = vpack.c.b16 %v3179, %v3176
        %v4122 = vpack.c.b16 %v3183, %v3180
        %v4123 = vpack.c.b16 %v3184, %v3181
        %v4124 = vpack.c.b16 %v3185, %v3182
        %v4125 = vpack.c.b16 %v3189, %v3186
        %v4126 = vpack.c.b16 %v3190, %v3187
        %v4127 = vpack.c.b16 %v3191, %v3188
        %v4128 = vpack.c.b16 %v3195, %v3192
        %v4129 = vpack.c.b16 %v3196, %v3193
        %v4130 = vpack.c.b16 %v3197, %v3194
        %v4131 = vpack.c.b16 %v3201, %v3198
        %v4132 = vpack.c.b16 %v3202, %v3199
        %v4133 = vpack.c.b16 %v3203, %v3200
        %v4134 = vpack.c.b16 %v3207, %v3204
        %v4135 = vpack.c.b16 %v3208, %v3205
        %v4136 = vpack.c.b16 %v3209, %v3206
        %v4137 = vpack.c.b16 %v3213, %v3210
        %v4138 = vpack.c.b16 %v3214, %v3211
        %v4139 = vpack.c.b16 %v3215, %v3212
        %v4140 = vpack.c.b16 %v3219, %v3216
        %v4141 = vpack.c.b16 %v3220, %v3217
        %v4142 = vpack.c.b16 %v3221, %v3218
        %v4143 = vpack.c.b16 %v3225, %v3222
        %v4144 = vpack.c.b16 %v3226, %v3223
        %v4145 = vpack.c.b16 %v3227, %v3224
        %v4146 = vpack.c.b16 %v3231, %v3228
        %v4147 = vpack.c.b16 %v3232, %v3229
        %v4148 = vpack.c.b16 %v3233, %v3230
        %v4149 = vpack.c.b16 %v3237, %v3234
        %v4150 = vpack.c.b16 %v3238, %v3235
        %v4151 = vpack.c.b16 %v3239, %v3236
        %v4152 = vpack.c.b16 %v3243, %v3240
        %v4153 = vpack.c.b16 %v3244, %v3241
        %v4154 = vpack.c.b16 %v3245, %v3242
        %v4155 = vpack.c.b16 %v3249, %v3246
        %v4156 = vpack.c.b16 %v3250, %v3247
        %v4157 = vpack.c.b16 %v3251, %v3248
        %v4158 = vpack.c.b16 %v3255, %v3252
        %v4159 = vpack.c.b16 %v3256, %v3253
        %v4160 = vpack.c.b16 %v3257, %v3254
        %v4161 = vpack.c.b16 %v3261, %v3258
        %v4162 = vpack.c.b16 %v3262, %v3259
        %v4163 = vpack.c.b16 %v3263, %v3260
        %v4164 = vpack.c.b16 %v3267, %v3264
        %v4165 = vpack.c.b16 %v3268, %v3265
        %v4166 = vpack.c.b16 %v3269, %v3266
        %v4167 = vpack.c.b16 %v3273, %v3270
        %v4168 = vpack.c.b16 %v3274, %v3271
        %v4169 = vpack.c.b16 %v3275, %v3272
        %v4170 = vpack.c.b16 %v3279, %v3276
        %v4171 = vpack.c.b16 %v3280, %v3277
        %v4172 = vpack.c.b16 %v3281, %v3278
        %v4173 = vpack.c.b16 %v3285, %v3282
        %v4174 = vpack.c.b16 %v3286, %v3283
        %v4175 = vpack.c.b16 %v3287, %v3284
        %v4176 = vpack.c.b16 %v3291, %v3288
        %v4177 = vpack.c.b16 %v3292, %v3289
        %v4178 = vpack.c.b16 %v3293, %v3290
        %v4179 = vpack.c.b16 %v3297, %v3294
        %v4180 = vpack.c.b16 %v3298, %v3295
        %v4181 = vpack.c.b16 %v3299, %v3296
        %v4182 = vpack.c.b16 %v3303, %v3300
        %v4183 = vpack.c.b16 %v3304, %v3301
        %v4184 = vpack.c.b16 %v3305, %v3302
        %v4185 = vpack.c.b16 %v3309, %v3306
        %v4186 = vpack.c.b16 %v3310, %v3307
        %v4187 = vpack.c.b16 %v3311, %v3308
        %v4188 = vpack.c.b16 %v3315, %v3312
        %v4189 = vpack.c.b16 %v3316, %v3313
        %v4190 = vpack.c.b16 %v3317, %v3314
        %v4191 = vpack.c.b16 %v3321, %v3318
        %v4192 = vpack.c.b16 %v3322, %v3319
        %v4193 = vpack.c.b16 %v3323, %v3320
        %v4194 = vpack.c.b16 %v3327, %v3324
        %v4195 = vpack.c.b16 %v3328, %v3325
        %v4196 = vpack.c.b16 %v3329, %v3326
        %v4197 = vpack.c.b16 %v3333, %v3330
        %v4198 = vpack.c.b16 %v3334, %v3331
        %v4199 = vpack.c.b16 %v3335, %v3332
        %v4200 = vpack.c.b16 %v3339, %v3336
        %v4201 = vpack.c.b16 %v3340, %v3337
        %v4202 = vpack.c.b16 %v3341, %v3338
        %v4203 = vpack.c.b16 %v3345, %v3342
        %v4204 = vpack.c.b16 %v3346, %v3343
        %v4205 = vpack.c.b16 %v3347, %v3344
        %v4206 = vpack.c.b16 %v3351, %v3348
        %v4207 = vpack.c.b16 %v3352, %v3349
        %v4208 = vpack.c.b16 %v3353, %v3350
        %v4209 = vpack.c.b16 %v3357, %v3354
        %v4210 = vpack.c.b16 %v3358, %v3355
        %v4211 = vpack.c.b16 %v3359, %v3356
        %v4212 = vpack.c.b16 %v3363, %v3360
        %v4213 = vpack.c.b16 %v3364, %v3361
        %v4214 = vpack.c.b16 %v3365, %v3362
        %v4215 = vpack.c.b16 %v3369, %v3366
        %v4216 = vpack.c.b16 %v3370, %v3367
        %v4217 = vpack.c.b16 %v3371, %v3368
        %v4218 = vpack.c.b16 %v3375, %v3372
        %v4219 = vpack.c.b16 %v3376, %v3373
        %v4220 = vpack.c.b16 %v3377, %v3374
        %v4221 = vpack.c.b16 %v3381, %v3378
        %v4222 = vpack.c.b16 %v3382, %v3379
        %v4223 = vpack.c.b16 %v3383, %v3380
        %v4224 = vpack.c.b16 %v3387, %v3384
        %v4225 = vpack.c.b16 %v3388, %v3385
        %v4226 = vpack.c.b16 %v3389, %v3386
        %v4227 = vpack.c.b16 %v3393, %v3390
        %v4228 = vpack.c.b16 %v3394, %v3391
        %v4229 = vpack.c.b16 %v3395, %v3392
        %v4230 = vpack.c.b16 %v3399, %v3396
        %v4231 = vpack.c.b16 %v3400, %v3397
        %v4232 = vpack.c.b16 %v3401, %v3398
        %v4233 = vpack.c.b16 %v3405, %v3402
        %v4234 = vpack.c.b16 %v3406, %v3403
        %v4235 = vpack.c.b16 %v3407, %v3404
        %v4236 = vpack.c.b16 %v3411, %v3408
        %v4237 = vpack.c.b16 %v3412, %v3409
        %v4238 = vpack.c.b16 %v3413, %v3410
        %v4239 = vpack.c.b16 %v3417, %v3414
        %v4240 = vpack.c.b16 %v3418, %v3415
        %v4241 = vpack.c.b16 %v3419, %v3416
        %v4242 = vpack.c.b16 %v3423, %v3420
        %v4243 = vpack.c.b16 %v3424, %v3421
        %v4244 = vpack.c.b16 %v3425, %v3422
        %v4245 = vpack.c.b16 %v3429, %v3426
        %v4246 = vpack.c.b16 %v3430, %v3427
        %v4247 = vpack.c.b16 %v3431, %v3428
        %v4248 = vpack.c.b16 %v3435, %v3432
        %v4249 = vpack.c.b16 %v3436, %v3433
        %v4250 = vpack.c.b16 %v3437, %v3434
        %v4251 = vpack.c.b16 %v3441, %v3438
        %v4252 = vpack.c.b16 %v3442, %v3439
        %v4253 = vpack.c.b16 %v3443, %v3440
        %v4254 = vpack.c.b16 %v3447, %v3444
        %v4255 = vpack.c.b16 %v3448, %v3445
        %v4256 = vpack.c.b16 %v3449, %v3446
        %v4257 = vpack.c.b16 %v3453, %v3450
        %v4258 = vpack.c.b16 %v3454, %v3451
        %v4259 = vpack.c.b16 %v3455, %v3452
        %v4260 = vpack.c.b16 %v3459, %v3456
        %v4261 = vpack.c.b16 %v3460, %v3457
        %v4262 = vpack.c.b16 %v3461, %v3458
        %v4263 = vpack.c.b16 %v3465, %v3462
        %v4264 = vpack.c.b16 %v3466, %v3463
        %v4265 = vpack.c.b16 %v3467, %v3464
        %v4266 = vpack.c.b16 %v3471, %v3468
        %v4267 = vpack.c.b16 %v3472, %v3469
        %v4268 = vpack.c.b16 %v3473, %v3470
        %v4269 = vpack.c.b16 %v3477, %v3474
        %v4270 = vpack.c.b16 %v3478, %v3475
        %v4271 = vpack.c.b16 %v3479, %v3476
        %v4272 = vpack.c.b16 %v3483, %v3480
        %v4273 = vpack.c.b16 %v3484, %v3481
        %v4274 = vpack.c.b16 %v3485, %v3482
        %v4275 = vpack.c.b16 %v3489, %v3486
        %v4276 = vpack.c.b16 %v3490, %v3487
        %v4277 = vpack.c.b16 %v3491, %v3488
        %v4278 = vpack.c.b16 %v3495, %v3492
        %v4279 = vpack.c.b16 %v3496, %v3493
        %v4280 = vpack.c.b16 %v3497, %v3494
        %v4281 = vpack.c.b16 %v3501, %v3498
        %v4282 = vpack.c.b16 %v3502, %v3499
        %v4283 = vpack.c.b16 %v3503, %v3500
        %v4284 = vpack.c.b16 %v3507, %v3504
        %v4285 = vpack.c.b16 %v3508, %v3505
        %v4286 = vpack.c.b16 %v3509, %v3506
        %v4287 = vpack.c.b16 %v3513, %v3510
        %v4288 = vpack.c.b16 %v3514, %v3511
        %v4289 = vpack.c.b16 %v3515, %v3512
        %v4290 = vpack.c.b16 %v3519, %v3516
        %v4291 = vpack.c.b16 %v3520, %v3517
        %v4292 = vpack.c.b16 %v3521, %v3518
        %v4293 = vpack.c.b16 %v3525, %v3522
        %v4294 = vpack.c.b16 %v3526, %v3523
        %v4295 = vpack.c.b16 %v3527, %v3524
        %v4296 = vpack.c.b16 %v3531, %v3528
        %v4297 = vpack.c.b16 %v3532, %v3529
        %v4298 = vpack.c.b16 %v3533, %v3530
        %v4299 = vpack.c.b16 %v3537, %v3534
        %v4300 = vpack.c.b16 %v3538, %v3535
        %v4301 = vpack.c.b16 %v3539, %v3536
        %v4302 = vpack.c.b16 %v3543, %v3540
        %v4303 = vpack.c.b16 %v3544, %v3541
        %v4304 = vpack.c.b16 %v3545, %v3542
        %v4305 = vpack.c.b16 %v3549, %v3546
        %v4306 = vpack.c.b16 %v3550, %v3547
        %v4307 = vpack.c.b16 %v3551, %v3548
        %v4308 = vpack.c.b16 %v3555, %v3552
        %v4309 = vpack.c.b16 %v3556, %v3553
        %v4310 = vpack.c.b16 %v3557, %v3554
        %v4311 = vpack.c.b16 %v3561, %v3558
        %v4312 = vpack.c.b16 %v3562, %v3559
        %v4313 = vpack.c.b16 %v3563, %v3560
        %v4314 = vpack.c.b16 %v3567, %v3564
        %v4315 = vpack.c.b16 %v3568, %v3565
        %v4316 = vpack.c.b16 %v3569, %v3566
        %v4317 = vpack.c.b16 %v3573, %v3570
        %v4318 = vpack.c.b16 %v3574, %v3571
        %v4319 = vpack.c.b16 %v3575, %v3572
        %v4320 = vpack.c.b16 %v3579, %v3576
        %v4321 = vpack.c.b16 %v3580, %v3577
        %v4322 = vpack.c.b16 %v3581, %v3578
        %v4323 = vpack.c.b16 %v3585, %v3582
        %v4324 = vpack.c.b16 %v3586, %v3583
        %v4325 = vpack.c.b16 %v3587, %v3584
        %v4326 = vpack.c.b16 %v3591, %v3588
        %v4327 = vpack.c.b16 %v3592, %v3589
        %v4328 = vpack.c.b16 %v3593, %v3590
        %v4329 = vpack.c.b16 %v3597, %v3594
        %v4330 = vpack.c.b16 %v3598, %v3595
        %v4331 = vpack.c.b16 %v3599, %v3596
        %v4332 = vpack.c.b16 %v3603, %v3600
        %v4333 = vpack.c.b16 %v3604, %v3601
        %v4334 = vpack.c.b16 %v3605, %v3602
        %v4335 = vpack.c.b16 %v3609, %v3606
        %v4336 = vpack.c.b16 %v3610, %v3607
        %v4337 = vpack.c.b16 %v3611, %v3608
        %v4338 = vpack.c.b16 %v3615, %v3612
        %v4339 = vpack.c.b16 %v3616, %v3613
        %v4340 = vpack.c.b16 %v3617, %v3614
        %v4341 = vpack.c.b16 %v3621, %v3618
        %v4342 = vpack.c.b16 %v3622, %v3619
        %v4343 = vpack.c.b16 %v3623, %v3620
        %v4344 = vpack.c.b16 %v3627, %v3624
        %v4345 = vpack.c.b16 %v3628, %v3625
        %v4346 = vpack.c.b16 %v3629, %v3626
        %v4347 = vpack.c.b16 %v3633, %v3630
        %v4348 = vpack.c.b16 %v3634, %v3631
        %v4349 = vpack.c.b16 %v3635, %v3632
        %v4350 = vpack.c.b16 %v3639, %v3636
        %v4351 = vpack.c.b16 %v3640, %v3637
        %v4352 = vpack.c.b16 %v3641, %v3638
        %v4353 = vpack.c.b16 %v3645, %v3642
        %v4354 = vpack.c.b16 %v3646, %v3643
        %v4355 = vpack.c.b16 %v3647, %v3644
        %v4356 = vpack.c.b16 %v3651, %v3648
        %v4357 = vpack.c.b16 %v3652, %v3649
        %v4358 = vpack.c.b16 %v3653, %v3650
        %v4359 = vpack.c.b16 %v3657, %v3654
        %v4360 = vpack.c.b16 %v3658, %v3655
        %v4361 = vpack.c.b16 %v3659, %v3656
        %v4362 = vpack.c.b16 %v3663, %v3660
        %v4363 = vpack.c.b16 %v3664, %v3661
        %v4364 = vpack.c.b16 %v3665, %v3662
        %v4365 = vpack.c.b16 %v3669, %v3666
        %v4366 = vpack.c.b16 %v3670, %v3667
        %v4367 = vpack.c.b16 %v3671, %v3668
        %v4368 = vpack.c.b16 %v3675, %v3672
        %v4369 = vpack.c.b16 %v3676, %v3673
        %v4370 = vpack.c.b16 %v3677, %v3674
        %v4371 = vpack.c.b16 %v3681, %v3678
        %v4372 = vpack.c.b16 %v3682, %v3679
        %v4373 = vpack.c.b16 %v3683, %v3680
        %v4374 = vpack.c.b16 %v3687, %v3684
        %v4375 = vpack.c.b16 %v3688, %v3685
        %v4376 = vpack.c.b16 %v3689, %v3686
        %v4377 = vpack.c.b16 %v3693, %v3690
        %v4378 = vpack.c.b16 %v3694, %v3691
        %v4379 = vpack.c.b16 %v3695, %v3692
        %v4380 = vpack.c.b16 %v3699, %v3696
        %v4381 = vpack.c.b16 %v3700, %v3697
        %v4382 = vpack.c.b16 %v3701, %v3698
        %v4383 = vpack.c.b16 %v3705, %v3702
        %v4384 = vpack.c.b16 %v3706, %v3703
        %v4385 = vpack.c.b16 %v3707, %v3704
        %v4386 = vpack.c.b16 %v3711, %v3708
        %v4387 = vpack.c.b16 %v3712, %v3709
        %v4388 = vpack.c.b16 %v3713, %v3710
        %v4389 = vpack.c.b16 %v3717, %v3714
        %v4390 = vpack.c.b16 %v3718, %v3715
        %v4391 = vpack.c.b16 %v3719, %v3716
        %5064 = vmatprep.subr.bf16.mxu0 %v3721
        %5065 = vmatpush1.bf16.msra.mxu0 %v3720
        %5066 = vmatprep.subr.bf16.mxu0 %v3724
        %5067 = vmatpush1.bf16.msra.mxu0 %v3723
        %5068 = vmatprep.subr.bf16.mxu0 %v3727
        %5069 = vmatpush1.bf16.msra.mxu0 %v3726
        %5070 = vmatprep.subr.bf16.mxu0 %v3730
        %5071 = vmatpush1.bf16.msra.mxu0 %v3729
        %5072 = vmatprep.subr.bf16.mxu0 %v3733
        %5073 = vmatpush1.bf16.msra.mxu0 %v3732
        %5074 = vmatprep.subr.bf16.mxu0 %v3736
        %5075 = vmatpush1.bf16.msra.mxu0 %v3735
        %5076 = vmatprep.subr.bf16.mxu0 %v3739
        %5077 = vmatpush1.bf16.msra.mxu0 %v3738
        %5078 = vmatprep.subr.bf16.mxu0 %v3742
        %5079 = vmatpush1.bf16.msra.mxu0 %v3741
        %5080 = vmatprep.subr.bf16.mxu0 %v3745
        %5081 = vmatpush1.bf16.msra.mxu0 %v3744
        %5082 = vmatprep.subr.bf16.mxu0 %v3748
        %5083 = vmatpush1.bf16.msra.mxu0 %v3747
        %5084 = vmatprep.subr.bf16.mxu0 %v3751
        %5085 = vmatpush1.bf16.msra.mxu0 %v3750
        %5086 = vmatprep.subr.bf16.mxu0 %v3754
        %5087 = vmatpush1.bf16.msra.mxu0 %v3753
        %5088 = vmatprep.subr.bf16.mxu0 %v3757
        %5089 = vmatpush1.bf16.msra.mxu0 %v3756
        %5090 = vmatprep.subr.bf16.mxu0 %v3760
        %5091 = vmatpush1.bf16.msra.mxu0 %v3759
        %5092 = vmatprep.subr.bf16.mxu0 %v3763
        %5093 = vmatpush1.bf16.msra.mxu0 %v3762
        %5094 = vmatprep.subr.bf16.mxu0 %v3766
        %5095 = vmatpush1.bf16.msra.mxu0 %v3765
        %5096 = vmatprep.mubr.bf16.mxu0 %v1425
        %5097 = vmatmul.mubr.bf16.gmra.mrb[0].mxu0 %v1424
        %v5098 = vpop.f32.mrb[0].mxu0
        %v5099 = vadd.f32 0.0, %v5098
        %v5100 = vpop.f32.mrb[0].mxu0
        %v5101 = vadd.f32 0.0, %v5100
        %v5102 = vpop.f32.mrb[0].mxu0
        %v5103 = vpop.f32.mrb[0].mxu0
        %5104 = vdwg.mxu0
        %5105 = vmatprep.subr.bf16.mxu0 %v3769
        %5106 = vmatpush1.bf16.msra.mxu0 %v3768
        %5107 = vmatprep.subr.bf16.mxu0 %v3772
        %5108 = vmatpush1.bf16.msra.mxu0 %v3771
        %5109 = vmatprep.subr.bf16.mxu0 %v3775
        %5110 = vmatpush1.bf16.msra.mxu0 %v3774
        %5111 = vmatprep.subr.bf16.mxu0 %v3778
        %5112 = vmatpush1.bf16.msra.mxu0 %v3777
        %5113 = vmatprep.subr.bf16.mxu0 %v3781
        %5114 = vmatpush1.bf16.msra.mxu0 %v3780
        %5115 = vmatprep.subr.bf16.mxu0 %v3784
        %5116 = vmatpush1.bf16.msra.mxu0 %v3783
        %5117 = vmatprep.subr.bf16.mxu0 %v3787
        %5118 = vmatpush1.bf16.msra.mxu0 %v3786
        %5119 = vmatprep.subr.bf16.mxu0 %v3790
        %5120 = vmatpush1.bf16.msra.mxu0 %v3789
        %5121 = vmatprep.subr.bf16.mxu0 %v3793
        %5122 = vmatpush1.bf16.msra.mxu0 %v3792
        %5123 = vmatprep.subr.bf16.mxu0 %v3796
        %5124 = vmatpush1.bf16.msra.mxu0 %v3795
        %5125 = vmatprep.subr.bf16.mxu0 %v3799
        %5126 = vmatpush1.bf16.msra.mxu0 %v3798
        %5127 = vmatprep.subr.bf16.mxu0 %v3802
        %5128 = vmatpush1.bf16.msra.mxu0 %v3801
        %5129 = vmatprep.subr.bf16.mxu0 %v3805
        %5130 = vmatpush1.bf16.msra.mxu0 %v3804
        %5131 = vmatprep.subr.bf16.mxu0 %v3808
        %5132 = vmatpush1.bf16.msra.mxu0 %v3807
        %5133 = vmatprep.subr.bf16.mxu0 %v3811
        %5134 = vmatpush1.bf16.msra.mxu0 %v3810
        %5135 = vmatprep.subr.bf16.mxu0 %v3814
        %5136 = vmatpush1.bf16.msra.mxu0 %v3813
        %5137 = vmatprep.mubr.bf16.mxu0 %v1427
        %5138 = vmatmul.mubr.bf16.gmra.mrb[0].mxu0 %v1426
        %v5139 = vpop.f32.mrb[0].mxu0
        %v5140 = vadd.f32 %v5099, %v5139
        %v5141 = vpop.f32.mrb[0].mxu0
        %v5142 = vadd.f32 %v5101, %v5141
        %v5143 = vpop.f32.mrb[0].mxu0
        %v5144 = vpop.f32.mrb[0].mxu0
        %5145 = vdwg.mxu0
        %5146 = vmatprep.subr.bf16.mxu0 %v3817
        %5147 = vmatpush1.bf16.msra.mxu0 %v3816
        %5148 = vmatprep.subr.bf16.mxu0 %v3820
        %5149 = vmatpush1.bf16.msra.mxu0 %v3819
        %5150 = vmatprep.subr.bf16.mxu0 %v3823
        %5151 = vmatpush1.bf16.msra.mxu0 %v3822
        %5152 = vmatprep.subr.bf16.mxu0 %v3826
        %5153 = vmatpush1.bf16.msra.mxu0 %v3825
        %5154 = vmatprep.subr.bf16.mxu0 %v3829
        %5155 = vmatpush1.bf16.msra.mxu0 %v3828
        %5156 = vmatprep.subr.bf16.mxu0 %v3832
        %5157 = vmatpush1.bf16.msra.mxu0 %v3831
        %5158 = vmatprep.subr.bf16.mxu0 %v3835
        %5159 = vmatpush1.bf16.msra.mxu0 %v3834
        %5160 = vmatprep.subr.bf16.mxu0 %v3838
        %5161 = vmatpush1.bf16.msra.mxu0 %v3837
        %5162 = vmatprep.subr.bf16.mxu0 %v3841
        %5163 = vmatpush1.bf16.msra.mxu0 %v3840
        %5164 = vmatprep.subr.bf16.mxu0 %v3844
        %5165 = vmatpush1.bf16.msra.mxu0 %v3843
        %5166 = vmatprep.subr.bf16.mxu0 %v3847
        %5167 = vmatpush1.bf16.msra.mxu0 %v3846
        %5168 = vmatprep.subr.bf16.mxu0 %v3850
        %5169 = vmatpush1.bf16.msra.mxu0 %v3849
        %5170 = vmatprep.subr.bf16.mxu0 %v3853
        %5171 = vmatpush1.bf16.msra.mxu0 %v3852
        %5172 = vmatprep.subr.bf16.mxu0 %v3856
        %5173 = vmatpush1.bf16.msra.mxu0 %v3855
        %5174 = vmatprep.subr.bf16.mxu0 %v3859
        %5175 = vmatpush1.bf16.msra.mxu0 %v3858
        %5176 = vmatprep.subr.bf16.mxu0 %v3862
        %5177 = vmatpush1.bf16.msra.mxu0 %v3861
        %5178 = vmatprep.mubr.bf16.mxu0 %v1429
        %5179 = vmatmul.mubr.bf16.gmra.mrb[0].mxu0 %v1428
        %v5180 = vpop.f32.mrb[0].mxu0
        %v5181 = vadd.f32 %v5140, %v5180
        %v5182 = vpop.f32.mrb[0].mxu0
        %v5183 = vadd.f32 %v5142, %v5182
        %v5184 = vpop.f32.mrb[0].mxu0
        %v5185 = vpop.f32.mrb[0].mxu0
        %5186 = vdwg.mxu0
        %5187 = vmatprep.subr.bf16.mxu0 %v3865
        %5188 = vmatpush1.bf16.msra.mxu0 %v3864
        %5189 = vmatprep.subr.bf16.mxu0 %v3868
        %5190 = vmatpush1.bf16.msra.mxu0 %v3867
        %5191 = vmatprep.subr.bf16.mxu0 %v3871
        %5192 = vmatpush1.bf16.msra.mxu0 %v3870
        %5193 = vmatprep.subr.bf16.mxu0 %v3874
        %5194 = vmatpush1.bf16.msra.mxu0 %v3873
        %5195 = vmatprep.subr.bf16.mxu0 %v3877
        %5196 = vmatpush1.bf16.msra.mxu0 %v3876
        %5197 = vmatprep.subr.bf16.mxu0 %v3880
        %5198 = vmatpush1.bf16.msra.mxu0 %v3879
        %5199 = vmatprep.subr.bf16.mxu0 %v3883
        %5200 = vmatpush1.bf16.msra.mxu0 %v3882
        %5201 = vmatprep.subr.bf16.mxu0 %v3886
        %5202 = vmatpush1.bf16.msra.mxu0 %v3885
        %5203 = vmatprep.subr.bf16.mxu0 %v3889
        %5204 = vmatpush1.bf16.msra.mxu0 %v3888
        %5205 = vmatprep.subr.bf16.mxu0 %v3892
        %5206 = vmatpush1.bf16.msra.mxu0 %v3891
        %5207 = vmatprep.subr.bf16.mxu0 %v3895
        %5208 = vmatpush1.bf16.msra.mxu0 %v3894
        %5209 = vmatprep.subr.bf16.mxu0 %v3898
        %5210 = vmatpush1.bf16.msra.mxu0 %v3897
        %5211 = vmatprep.subr.bf16.mxu0 %v3901
        %5212 = vmatpush1.bf16.msra.mxu0 %v3900
        %5213 = vmatprep.subr.bf16.mxu0 %v3904
        %5214 = vmatpush1.bf16.msra.mxu0 %v3903
        %5215 = vmatprep.subr.bf16.mxu0 %v3907
        %5216 = vmatpush1.bf16.msra.mxu0 %v3906
        %5217 = vmatprep.subr.bf16.mxu0 %v3910
        %5218 = vmatpush1.bf16.msra.mxu0 %v3909
        %5219 = vmatprep.mubr.bf16.mxu0 %v1431
        %5220 = vmatmul.mubr.bf16.gmra.mrb[0].mxu0 %v1430
        %v5221 = vpop.f32.mrb[0].mxu0
        %v5222 = vadd.f32 %v5181, %v5221
        %v5223 = vpop.f32.mrb[0].mxu0
        %v5224 = vadd.f32 %v5183, %v5223
        %v5225 = vpop.f32.mrb[0].mxu0
        %v5226 = vpop.f32.mrb[0].mxu0
        %5227 = vdwg.mxu0
        %5228 = vmatprep.subr.bf16.mxu0 %v3913
        %5229 = vmatpush1.bf16.msra.mxu0 %v3912
        %5230 = vmatprep.subr.bf16.mxu0 %v3916
        %5231 = vmatpush1.bf16.msra.mxu0 %v3915
        %5232 = vmatprep.subr.bf16.mxu0 %v3919
        %5233 = vmatpush1.bf16.msra.mxu0 %v3918
        %5234 = vmatprep.subr.bf16.mxu0 %v3922
        %5235 = vmatpush1.bf16.msra.mxu0 %v3921
        %5236 = vmatprep.subr.bf16.mxu0 %v3925
        %5237 = vmatpush1.bf16.msra.mxu0 %v3924
        %5238 = vmatprep.subr.bf16.mxu0 %v3928
        %5239 = vmatpush1.bf16.msra.mxu0 %v3927
        %5240 = vmatprep.subr.bf16.mxu0 %v3931
        %5241 = vmatpush1.bf16.msra.mxu0 %v3930
        %5242 = vmatprep.subr.bf16.mxu0 %v3934
        %5243 = vmatpush1.bf16.msra.mxu0 %v3933
        %5244 = vmatprep.subr.bf16.mxu0 %v3937
        %5245 = vmatpush1.bf16.msra.mxu0 %v3936
        %5246 = vmatprep.subr.bf16.mxu0 %v3940
        %5247 = vmatpush1.bf16.msra.mxu0 %v3939
        %5248 = vmatprep.subr.bf16.mxu0 %v3943
        %5249 = vmatpush1.bf16.msra.mxu0 %v3942
        %5250 = vmatprep.subr.bf16.mxu0 %v3946
        %5251 = vmatpush1.bf16.msra.mxu0 %v3945
        %5252 = vmatprep.subr.bf16.mxu0 %v3949
        %5253 = vmatpush1.bf16.msra.mxu0 %v3948
        %5254 = vmatprep.subr.bf16.mxu0 %v3952
        %5255 = vmatpush1.bf16.msra.mxu0 %v3951
        %5256 = vmatprep.subr.bf16.mxu0 %v3955
        %5257 = vmatpush1.bf16.msra.mxu0 %v3954
        %5258 = vmatprep.subr.bf16.mxu0 %v3958
        %5259 = vmatpush1.bf16.msra.mxu0 %v3957
        %5260 = vmatprep.mubr.bf16.mxu0 %v1433
        %5261 = vmatmul.mubr.bf16.gmra.mrb[0].mxu0 %v1432
        %v5262 = vpop.f32.mrb[0].mxu0
        %v5263 = vadd.f32 %v5222, %v5262
        %v5264 = vpop.f32.mrb[0].mxu0
        %v5265 = vadd.f32 %v5224, %v5264
        %v5266 = vpop.f32.mrb[0].mxu0
        %v5267 = vpop.f32.mrb[0].mxu0
        %5268 = vdwg.mxu0
        %5269 = vmatprep.subr.bf16.mxu0 %v3961
        %5270 = vmatpush1.bf16.msra.mxu0 %v3960
        %5271 = vmatprep.subr.bf16.mxu0 %v3964
        %5272 = vmatpush1.bf16.msra.mxu0 %v3963
        %5273 = vmatprep.subr.bf16.mxu0 %v3967
        %5274 = vmatpush1.bf16.msra.mxu0 %v3966
        %5275 = vmatprep.subr.bf16.mxu0 %v3970
        %5276 = vmatpush1.bf16.msra.mxu0 %v3969
        %5277 = vmatprep.subr.bf16.mxu0 %v3973
        %5278 = vmatpush1.bf16.msra.mxu0 %v3972
        %5279 = vmatprep.subr.bf16.mxu0 %v3976
        %5280 = vmatpush1.bf16.msra.mxu0 %v3975
        %5281 = vmatprep.subr.bf16.mxu0 %v3979
        %5282 = vmatpush1.bf16.msra.mxu0 %v3978
        %5283 = vmatprep.subr.bf16.mxu0 %v3982
        %5284 = vmatpush1.bf16.msra.mxu0 %v3981
        %5285 = vmatprep.subr.bf16.mxu0 %v3985
        %5286 = vmatpush1.bf16.msra.mxu0 %v3984
        %5287 = vmatprep.subr.bf16.mxu0 %v3988
        %5288 = vmatpush1.bf16.msra.mxu0 %v3987
        %5289 = vmatprep.subr.bf16.mxu0 %v3991
        %5290 = vmatpush1.bf16.msra.mxu0 %v3990
        %5291 = vmatprep.subr.bf16.mxu0 %v3994
        %5292 = vmatpush1.bf16.msra.mxu0 %v3993
        %5293 = vmatprep.subr.bf16.mxu0 %v3997
        %5294 = vmatpush1.bf16.msra.mxu0 %v3996
        %5295 = vmatprep.subr.bf16.mxu0 %v4000
        %5296 = vmatpush1.bf16.msra.mxu0 %v3999
        %5297 = vmatprep.subr.bf16.mxu0 %v4003
        %5298 = vmatpush1.bf16.msra.mxu0 %v4002
        %5299 = vmatprep.subr.bf16.mxu0 %v4006
        %5300 = vmatpush1.bf16.msra.mxu0 %v4005
        %5301 = vmatprep.mubr.bf16.mxu0 %v1435
        %5302 = vmatmul.mubr.bf16.gmra.mrb[0].mxu0 %v1434
        %v5303 = vpop.f32.mrb[0].mxu0
        %v5304 = vadd.f32 %v5263, %v5303
        %v5305 = vpop.f32.mrb[0].mxu0
        %v5306 = vadd.f32 %v5265, %v5305
        %v5307 = vpop.f32.mrb[0].mxu0
        %v5308 = vpop.f32.mrb[0].mxu0
        %5309 = vdwg.mxu0
        %5310 = vmatprep.subr.bf16.mxu0 %v4009
        %5311 = vmatpush1.bf16.msra.mxu0 %v4008
        %5312 = vmatprep.subr.bf16.mxu0 %v4012
        %5313 = vmatpush1.bf16.msra.mxu0 %v4011
        %5314 = vmatprep.subr.bf16.mxu0 %v4015
        %5315 = vmatpush1.bf16.msra.mxu0 %v4014
        %5316 = vmatprep.subr.bf16.mxu0 %v4018
        %5317 = vmatpush1.bf16.msra.mxu0 %v4017
        %5318 = vmatprep.subr.bf16.mxu0 %v4021
        %5319 = vmatpush1.bf16.msra.mxu0 %v4020
        %5320 = vmatprep.subr.bf16.mxu0 %v4024
        %5321 = vmatpush1.bf16.msra.mxu0 %v4023
        %5322 = vmatprep.subr.bf16.mxu0 %v4027
        %5323 = vmatpush1.bf16.msra.mxu0 %v4026
        %5324 = vmatprep.subr.bf16.mxu0 %v4030
        %5325 = vmatpush1.bf16.msra.mxu0 %v4029
        %5326 = vmatprep.subr.bf16.mxu0 %v4033
        %5327 = vmatpush1.bf16.msra.mxu0 %v4032
        %5328 = vmatprep.subr.bf16.mxu0 %v4036
        %5329 = vmatpush1.bf16.msra.mxu0 %v4035
        %5330 = vmatprep.subr.bf16.mxu0 %v4039
        %5331 = vmatpush1.bf16.msra.mxu0 %v4038
        %5332 = vmatprep.subr.bf16.mxu0 %v4042
        %5333 = vmatpush1.bf16.msra.mxu0 %v4041
        %5334 = vmatprep.subr.bf16.mxu0 %v4045
        %5335 = vmatpush1.bf16.msra.mxu0 %v4044
        %5336 = vmatprep.subr.bf16.mxu0 %v4048
        %5337 = vmatpush1.bf16.msra.mxu0 %v4047
        %5338 = vmatprep.subr.bf16.mxu0 %v4051
        %5339 = vmatpush1.bf16.msra.mxu0 %v4050
        %5340 = vmatprep.subr.bf16.mxu0 %v4054
        %5341 = vmatpush1.bf16.msra.mxu0 %v4053
        %5342 = vmatprep.mubr.bf16.mxu0 %v1437
        %5343 = vmatmul.mubr.bf16.gmra.mrb[0].mxu0 %v1436
        %v5344 = vpop.f32.mrb[0].mxu0
        %v5345 = vadd.f32 %v5304, %v5344
        %v5346 = vpop.f32.mrb[0].mxu0
        %v5347 = vadd.f32 %v5306, %v5346
        %v5348 = vpop.f32.mrb[0].mxu0
        %v5349 = vpop.f32.mrb[0].mxu0
        %5350 = vdwg.mxu0
        %5351 = vmatprep.subr.bf16.mxu0 %v4057
        %5352 = vmatpush1.bf16.msra.mxu0 %v4056
        %5353 = vmatprep.subr.bf16.mxu0 %v4060
        %5354 = vmatpush1.bf16.msra.mxu0 %v4059
        %5355 = vmatprep.subr.bf16.mxu0 %v4063
        %5356 = vmatpush1.bf16.msra.mxu0 %v4062
        %5357 = vmatprep.subr.bf16.mxu0 %v4066
        %5358 = vmatpush1.bf16.msra.mxu0 %v4065
        %5359 = vmatprep.subr.bf16.mxu0 %v4069
        %5360 = vmatpush1.bf16.msra.mxu0 %v4068
        %5361 = vmatprep.subr.bf16.mxu0 %v4072
        %5362 = vmatpush1.bf16.msra.mxu0 %v4071
        %5363 = vmatprep.subr.bf16.mxu0 %v4075
        %5364 = vmatpush1.bf16.msra.mxu0 %v4074
        %5365 = vmatprep.subr.bf16.mxu0 %v4078
        %5366 = vmatpush1.bf16.msra.mxu0 %v4077
        %5367 = vmatprep.subr.bf16.mxu0 %v4081
        %5368 = vmatpush1.bf16.msra.mxu0 %v4080
        %5369 = vmatprep.subr.bf16.mxu0 %v4084
        %5370 = vmatpush1.bf16.msra.mxu0 %v4083
        %5371 = vmatprep.subr.bf16.mxu0 %v4087
        %5372 = vmatpush1.bf16.msra.mxu0 %v4086
        %5373 = vmatprep.subr.bf16.mxu0 %v4090
        %5374 = vmatpush1.bf16.msra.mxu0 %v4089
        %5375 = vmatprep.subr.bf16.mxu0 %v4093
        %5376 = vmatpush1.bf16.msra.mxu0 %v4092
        %5377 = vmatprep.subr.bf16.mxu0 %v4096
        %5378 = vmatpush1.bf16.msra.mxu0 %v4095
        %5379 = vmatprep.subr.bf16.mxu0 %v4099
        %5380 = vmatpush1.bf16.msra.mxu0 %v4098
        %5381 = vmatprep.subr.bf16.mxu0 %v4102
        %5382 = vmatpush1.bf16.msra.mxu0 %v4101
        %5383 = vmatprep.mubr.bf16.mxu0 %v1439
        %5384 = vmatmul.mubr.bf16.gmra.mrb[0].mxu0 %v1438
        %v5385 = vpop.f32.mrb[0].mxu0
        %v5386 = vadd.f32 %v5345, %v5385
        %v5387 = vpop.f32.mrb[0].mxu0
        %v5388 = vadd.f32 %v5347, %v5387
        %v5389 = vpop.f32.mrb[0].mxu0
        %v5390 = vpop.f32.mrb[0].mxu0
        %5391 = vdwg.mxu0
        %5392 = vmatprep.subr.bf16.mxu0 %v4105
        %5393 = vmatpush1.bf16.msra.mxu0 %v4104
        %5394 = vmatprep.subr.bf16.mxu0 %v4108
        %5395 = vmatpush1.bf16.msra.mxu0 %v4107
        %5396 = vmatprep.subr.bf16.mxu0 %v4111
        %5397 = vmatpush1.bf16.msra.mxu0 %v4110
        %5398 = vmatprep.subr.bf16.mxu0 %v4114
        %5399 = vmatpush1.bf16.msra.mxu0 %v4113
        %5400 = vmatprep.subr.bf16.mxu0 %v4117
        %5401 = vmatpush1.bf16.msra.mxu0 %v4116
        %5402 = vmatprep.subr.bf16.mxu0 %v4120
        %5403 = vmatpush1.bf16.msra.mxu0 %v4119
        %5404 = vmatprep.subr.bf16.mxu0 %v4123
        %5405 = vmatpush1.bf16.msra.mxu0 %v4122
        %5406 = vmatprep.subr.bf16.mxu0 %v4126
        %5407 = vmatpush1.bf16.msra.mxu0 %v4125
        %5408 = vmatprep.subr.bf16.mxu0 %v4129
        %5409 = vmatpush1.bf16.msra.mxu0 %v4128
        %5410 = vmatprep.subr.bf16.mxu0 %v4132
        %5411 = vmatpush1.bf16.msra.mxu0 %v4131
        %5412 = vmatprep.subr.bf16.mxu0 %v4135
        %5413 = vmatpush1.bf16.msra.mxu0 %v4134
        %5414 = vmatprep.subr.bf16.mxu0 %v4138
        %5415 = vmatpush1.bf16.msra.mxu0 %v4137
        %5416 = vmatprep.subr.bf16.mxu0 %v4141
        %5417 = vmatpush1.bf16.msra.mxu0 %v4140
        %5418 = vmatprep.subr.bf16.mxu0 %v4144
        %5419 = vmatpush1.bf16.msra.mxu0 %v4143
        %5420 = vmatprep.subr.bf16.mxu0 %v4147
        %5421 = vmatpush1.bf16.msra.mxu0 %v4146
        %5422 = vmatprep.subr.bf16.mxu0 %v4150
        %5423 = vmatpush1.bf16.msra.mxu0 %v4149
        %5424 = vmatprep.mubr.bf16.mxu0 %v1441
        %5425 = vmatmul.mubr.bf16.gmra.mrb[0].mxu0 %v1440
        %v5426 = vpop.f32.mrb[0].mxu0
        %v5427 = vadd.f32 %v5386, %v5426
        %v5428 = vpop.f32.mrb[0].mxu0
        %v5429 = vadd.f32 %v5388, %v5428
        %v5430 = vpop.f32.mrb[0].mxu0
        %v5431 = vpop.f32.mrb[0].mxu0
        %5432 = vdwg.mxu0
        %5433 = vmatprep.subr.bf16.mxu0 %v4153
        %5434 = vmatpush1.bf16.msra.mxu0 %v4152
        %5435 = vmatprep.subr.bf16.mxu0 %v4156
        %5436 = vmatpush1.bf16.msra.mxu0 %v4155
        %5437 = vmatprep.subr.bf16.mxu0 %v4159
        %5438 = vmatpush1.bf16.msra.mxu0 %v4158
        %5439 = vmatprep.subr.bf16.mxu0 %v4162
        %5440 = vmatpush1.bf16.msra.mxu0 %v4161
        %5441 = vmatprep.subr.bf16.mxu0 %v4165
        %5442 = vmatpush1.bf16.msra.mxu0 %v4164
        %5443 = vmatprep.subr.bf16.mxu0 %v4168
        %5444 = vmatpush1.bf16.msra.mxu0 %v4167
        %5445 = vmatprep.subr.bf16.mxu0 %v4171
        %5446 = vmatpush1.bf16.msra.mxu0 %v4170
        %5447 = vmatprep.subr.bf16.mxu0 %v4174
        %5448 = vmatpush1.bf16.msra.mxu0 %v4173
        %5449 = vmatprep.subr.bf16.mxu0 %v4177
        %5450 = vmatpush1.bf16.msra.mxu0 %v4176
        %5451 = vmatprep.subr.bf16.mxu0 %v4180
        %5452 = vmatpush1.bf16.msra.mxu0 %v4179
        %5453 = vmatprep.subr.bf16.mxu0 %v4183
        %5454 = vmatpush1.bf16.msra.mxu0 %v4182
        %5455 = vmatprep.subr.bf16.mxu0 %v4186
        %5456 = vmatpush1.bf16.msra.mxu0 %v4185
        %5457 = vmatprep.subr.bf16.mxu0 %v4189
        %5458 = vmatpush1.bf16.msra.mxu0 %v4188
        %5459 = vmatprep.subr.bf16.mxu0 %v4192
        %5460 = vmatpush1.bf16.msra.mxu0 %v4191
        %5461 = vmatprep.subr.bf16.mxu0 %v4195
        %5462 = vmatpush1.bf16.msra.mxu0 %v4194
        %5463 = vmatprep.subr.bf16.mxu0 %v4198
        %5464 = vmatpush1.bf16.msra.mxu0 %v4197
        %5465 = vmatprep.mubr.bf16.mxu0 %v1443
        %5466 = vmatmul.mubr.bf16.gmra.mrb[0].mxu0 %v1442
        %v5467 = vpop.f32.mrb[0].mxu0
        %v5468 = vadd.f32 %v5427, %v5467
        %v5469 = vpop.f32.mrb[0].mxu0
        %v5470 = vadd.f32 %v5429, %v5469
        %v5471 = vpop.f32.mrb[0].mxu0
        %v5472 = vpop.f32.mrb[0].mxu0
        %5473 = vdwg.mxu0
        %5474 = vmatprep.subr.bf16.mxu0 %v4201
        %5475 = vmatpush1.bf16.msra.mxu0 %v4200
        %5476 = vmatprep.subr.bf16.mxu0 %v4204
        %5477 = vmatpush1.bf16.msra.mxu0 %v4203
        %5478 = vmatprep.subr.bf16.mxu0 %v4207
        %5479 = vmatpush1.bf16.msra.mxu0 %v4206
        %5480 = vmatprep.subr.bf16.mxu0 %v4210
        %5481 = vmatpush1.bf16.msra.mxu0 %v4209
        %5482 = vmatprep.subr.bf16.mxu0 %v4213
        %5483 = vmatpush1.bf16.msra.mxu0 %v4212
        %5484 = vmatprep.subr.bf16.mxu0 %v4216
        %5485 = vmatpush1.bf16.msra.mxu0 %v4215
        %5486 = vmatprep.subr.bf16.mxu0 %v4219
        %5487 = vmatpush1.bf16.msra.mxu0 %v4218
        %5488 = vmatprep.subr.bf16.mxu0 %v4222
        %5489 = vmatpush1.bf16.msra.mxu0 %v4221
        %5490 = vmatprep.subr.bf16.mxu0 %v4225
        %5491 = vmatpush1.bf16.msra.mxu0 %v4224
        %5492 = vmatprep.subr.bf16.mxu0 %v4228
        %5493 = vmatpush1.bf16.msra.mxu0 %v4227
        %5494 = vmatprep.subr.bf16.mxu0 %v4231
        %5495 = vmatpush1.bf16.msra.mxu0 %v4230
        %5496 = vmatprep.subr.bf16.mxu0 %v4234
        %5497 = vmatpush1.bf16.msra.mxu0 %v4233
        %5498 = vmatprep.subr.bf16.mxu0 %v4237
        %5499 = vmatpush1.bf16.msra.mxu0 %v4236
        %5500 = vmatprep.subr.bf16.mxu0 %v4240
        %5501 = vmatpush1.bf16.msra.mxu0 %v4239
        %5502 = vmatprep.subr.bf16.mxu0 %v4243
        %5503 = vmatpush1.bf16.msra.mxu0 %v4242
        %5504 = vmatprep.subr.bf16.mxu0 %v4246
        %5505 = vmatpush1.bf16.msra.mxu0 %v4245
        %5506 = vmatprep.mubr.bf16.mxu0 %v1445
        %5507 = vmatmul.mubr.bf16.gmra.mrb[0].mxu0 %v1444
        %v5508 = vpop.f32.mrb[0].mxu0
        %v5509 = vadd.f32 %v5468, %v5508
        %v5510 = vpop.f32.mrb[0].mxu0
        %v5511 = vadd.f32 %v5470, %v5510
        %v5512 = vpop.f32.mrb[0].mxu0
        %v5513 = vpop.f32.mrb[0].mxu0
        %5514 = vdwg.mxu0
        %5515 = vmatprep.subr.bf16.mxu0 %v4249
        %5516 = vmatpush1.bf16.msra.mxu0 %v4248
        %5517 = vmatprep.subr.bf16.mxu0 %v4252
        %5518 = vmatpush1.bf16.msra.mxu0 %v4251
        %5519 = vmatprep.subr.bf16.mxu0 %v4255
        %5520 = vmatpush1.bf16.msra.mxu0 %v4254
        %5521 = vmatprep.subr.bf16.mxu0 %v4258
        %5522 = vmatpush1.bf16.msra.mxu0 %v4257
        %5523 = vmatprep.subr.bf16.mxu0 %v4261
        %5524 = vmatpush1.bf16.msra.mxu0 %v4260
        %5525 = vmatprep.subr.bf16.mxu0 %v4264
        %5526 = vmatpush1.bf16.msra.mxu0 %v4263
        %5527 = vmatprep.subr.bf16.mxu0 %v4267
        %5528 = vmatpush1.bf16.msra.mxu0 %v4266
        %5529 = vmatprep.subr.bf16.mxu0 %v4270
        %5530 = vmatpush1.bf16.msra.mxu0 %v4269
        %5531 = vmatprep.subr.bf16.mxu0 %v4273
        %5532 = vmatpush1.bf16.msra.mxu0 %v4272
        %5533 = vmatprep.subr.bf16.mxu0 %v4276
        %5534 = vmatpush1.bf16.msra.mxu0 %v4275
        %5535 = vmatprep.subr.bf16.mxu0 %v4279
        %5536 = vmatpush1.bf16.msra.mxu0 %v4278
        %5537 = vmatprep.subr.bf16.mxu0 %v4282
        %5538 = vmatpush1.bf16.msra.mxu0 %v4281
        %5539 = vmatprep.subr.bf16.mxu0 %v4285
        %5540 = vmatpush1.bf16.msra.mxu0 %v4284
        %5541 = vmatprep.subr.bf16.mxu0 %v4288
        %5542 = vmatpush1.bf16.msra.mxu0 %v4287
        %5543 = vmatprep.subr.bf16.mxu0 %v4291
        %5544 = vmatpush1.bf16.msra.mxu0 %v4290
        %5545 = vmatprep.subr.bf16.mxu0 %v4294
        %5546 = vmatpush1.bf16.msra.mxu0 %v4293
        %5547 = vmatprep.mubr.bf16.mxu0 %v1447
        %5548 = vmatmul.mubr.bf16.gmra.mrb[0].mxu0 %v1446
        %v5549 = vpop.f32.mrb[0].mxu0
        %v5550 = vadd.f32 %v5509, %v5549
        %v5551 = vpop.f32.mrb[0].mxu0
        %v5552 = vadd.f32 %v5511, %v5551
        %v5553 = vpop.f32.mrb[0].mxu0
        %v5554 = vpop.f32.mrb[0].mxu0
        %5555 = vdwg.mxu0
        %5556 = vmatprep.subr.bf16.mxu0 %v4297
        %5557 = vmatpush1.bf16.msra.mxu0 %v4296
        %5558 = vmatprep.subr.bf16.mxu0 %v4300
        %5559 = vmatpush1.bf16.msra.mxu0 %v4299
        %5560 = vmatprep.subr.bf16.mxu0 %v4303
        %5561 = vmatpush1.bf16.msra.mxu0 %v4302
        %5562 = vmatprep.subr.bf16.mxu0 %v4306
        %5563 = vmatpush1.bf16.msra.mxu0 %v4305
        %5564 = vmatprep.subr.bf16.mxu0 %v4309
        %5565 = vmatpush1.bf16.msra.mxu0 %v4308
        %5566 = vmatprep.subr.bf16.mxu0 %v4312
        %5567 = vmatpush1.bf16.msra.mxu0 %v4311
        %5568 = vmatprep.subr.bf16.mxu0 %v4315
        %5569 = vmatpush1.bf16.msra.mxu0 %v4314
        %5570 = vmatprep.subr.bf16.mxu0 %v4318
        %5571 = vmatpush1.bf16.msra.mxu0 %v4317
        %5572 = vmatprep.subr.bf16.mxu0 %v4321
        %5573 = vmatpush1.bf16.msra.mxu0 %v4320
        %5574 = vmatprep.subr.bf16.mxu0 %v4324
        %5575 = vmatpush1.bf16.msra.mxu0 %v4323
        %5576 = vmatprep.subr.bf16.mxu0 %v4327
        %5577 = vmatpush1.bf16.msra.mxu0 %v4326
        %5578 = vmatprep.subr.bf16.mxu0 %v4330
        %5579 = vmatpush1.bf16.msra.mxu0 %v4329
        %5580 = vmatprep.subr.bf16.mxu0 %v4333
        %5581 = vmatpush1.bf16.msra.mxu0 %v4332
        %5582 = vmatprep.subr.bf16.mxu0 %v4336
        %5583 = vmatpush1.bf16.msra.mxu0 %v4335
        %5584 = vmatprep.subr.bf16.mxu0 %v4339
        %5585 = vmatpush1.bf16.msra.mxu0 %v4338
        %5586 = vmatprep.subr.bf16.mxu0 %v4342
        %5587 = vmatpush1.bf16.msra.mxu0 %v4341
        %5588 = vmatprep.mubr.bf16.mxu0 %v1449
        %5589 = vmatmul.mubr.bf16.gmra.mrb[0].mxu0 %v1448
        %v5590 = vpop.f32.mrb[0].mxu0
        %v5591 = vadd.f32 %v5550, %v5590
        %v5592 = vpop.f32.mrb[0].mxu0
        %v5593 = vadd.f32 %v5552, %v5592
        %v5594 = vpop.f32.mrb[0].mxu0
        %v5595 = vpop.f32.mrb[0].mxu0
        %5596 = vdwg.mxu0
        %5597 = vmatprep.subr.bf16.mxu0 %v4345
        %5598 = vmatpush1.bf16.msra.mxu0 %v4344
        %5599 = vmatprep.subr.bf16.mxu0 %v4348
        %5600 = vmatpush1.bf16.msra.mxu0 %v4347
        %5601 = vmatprep.subr.bf16.mxu0 %v4351
        %5602 = vmatpush1.bf16.msra.mxu0 %v4350
        %5603 = vmatprep.subr.bf16.mxu0 %v4354
        %5604 = vmatpush1.bf16.msra.mxu0 %v4353
        %5605 = vmatprep.subr.bf16.mxu0 %v4357
        %5606 = vmatpush1.bf16.msra.mxu0 %v4356
        %5607 = vmatprep.subr.bf16.mxu0 %v4360
        %5608 = vmatpush1.bf16.msra.mxu0 %v4359
        %5609 = vmatprep.subr.bf16.mxu0 %v4363
        %5610 = vmatpush1.bf16.msra.mxu0 %v4362
        %5611 = vmatprep.subr.bf16.mxu0 %v4366
        %5612 = vmatpush1.bf16.msra.mxu0 %v4365
        %5613 = vmatprep.subr.bf16.mxu0 %v4369
        %5614 = vmatpush1.bf16.msra.mxu0 %v4368
        %5615 = vmatprep.subr.bf16.mxu0 %v4372
        %5616 = vmatpush1.bf16.msra.mxu0 %v4371
        %5617 = vmatprep.subr.bf16.mxu0 %v4375
        %5618 = vmatpush1.bf16.msra.mxu0 %v4374
        %5619 = vmatprep.subr.bf16.mxu0 %v4378
        %5620 = vmatpush1.bf16.msra.mxu0 %v4377
        %5621 = vmatprep.subr.bf16.mxu0 %v4381
        %5622 = vmatpush1.bf16.msra.mxu0 %v4380
        %5623 = vmatprep.subr.bf16.mxu0 %v4384
        %5624 = vmatpush1.bf16.msra.mxu0 %v4383
        %5625 = vmatprep.subr.bf16.mxu0 %v4387
        %5626 = vmatpush1.bf16.msra.mxu0 %v4386
        %5627 = vmatprep.subr.bf16.mxu0 %v4390
        %5628 = vmatpush1.bf16.msra.mxu0 %v4389
        %5629 = vmatprep.mubr.bf16.mxu0 %v1451
        %5630 = vmatmul.mubr.bf16.gmra.mrb[0].mxu0 %v1450
        %v5631 = vpop.f32.mrb[0].mxu0
        %v5632 = vadd.f32 %v5591, %v5631
        %v5633 = vpop.f32.mrb[0].mxu0
        %v5634 = vadd.f32 %v5593, %v5633
        %v5635 = vpop.f32.mrb[0].mxu0
        %v5636 = vpop.f32.mrb[0].mxu0
        %5637 = vdwg.mxu0
        %5638 = vmatprep.subr.bf16.mxu0 0
        %5639 = vmatpush1.bf16.msra.mxu0 %v3722
        %5640 = vmatprep.subr.bf16.mxu0 0
        %5641 = vmatpush1.bf16.msra.mxu0 %v3725
        %5642 = vmatprep.subr.bf16.mxu0 0
        %5643 = vmatpush1.bf16.msra.mxu0 %v3728
        %5644 = vmatprep.subr.bf16.mxu0 0
        %5645 = vmatpush1.bf16.msra.mxu0 %v3731
        %5646 = vmatprep.subr.bf16.mxu0 0
        %5647 = vmatpush1.bf16.msra.mxu0 %v3734
        %5648 = vmatprep.subr.bf16.mxu0 0
        %5649 = vmatpush1.bf16.msra.mxu0 %v3737
        %5650 = vmatprep.subr.bf16.mxu0 0
        %5651 = vmatpush1.bf16.msra.mxu0 %v3740
        %5652 = vmatprep.subr.bf16.mxu0 0
        %5653 = vmatpush1.bf16.msra.mxu0 %v3743
        %5654 = vmatprep.subr.bf16.mxu0 0
        %5655 = vmatpush1.bf16.msra.mxu0 %v3746
        %5656 = vmatprep.subr.bf16.mxu0 0
        %5657 = vmatpush1.bf16.msra.mxu0 %v3749
        %5658 = vmatprep.subr.bf16.mxu0 0
        %5659 = vmatpush1.bf16.msra.mxu0 %v3752
        %5660 = vmatprep.subr.bf16.mxu0 0
        %5661 = vmatpush1.bf16.msra.mxu0 %v3755
        %5662 = vmatprep.subr.bf16.mxu0 0
        %5663 = vmatpush1.bf16.msra.mxu0 %v3758
        %5664 = vmatprep.subr.bf16.mxu0 0
        %5665 = vmatpush1.bf16.msra.mxu0 %v3761
        %5666 = vmatprep.subr.bf16.mxu0 0
        %5667 = vmatpush1.bf16.msra.mxu0 %v3764
        %5668 = vmatprep.subr.bf16.mxu0 0
        %5669 = vmatpush1.bf16.msra.mxu0 %v3767
        %5670 = vmatprep.mubr.bf16.mxu0 %v1425
        %5671 = vmatmul.mubr.bf16.gmra.mrb[0].mxu0 %v1424
        %v5672 = vpop.f32.mrb[0].mxu0
        %v5673 = vadd.f32 0.0, %v5672
        %v5674 = vpop.f32.mrb[0].mxu0
        %v5675 = vpop.f32.mrb[0].mxu0
        %v5676 = vpop.f32.mrb[0].mxu0
        %5677 = vdwg.mxu0
        %5678 = vmatprep.subr.bf16.mxu0 0
        %5679 = vmatpush1.bf16.msra.mxu0 %v3770
        %5680 = vmatprep.subr.bf16.mxu0 0
        %5681 = vmatpush1.bf16.msra.mxu0 %v3773
        %5682 = vmatprep.subr.bf16.mxu0 0
        %5683 = vmatpush1.bf16.msra.mxu0 %v3776
        %5684 = vmatprep.subr.bf16.mxu0 0
        %5685 = vmatpush1.bf16.msra.mxu0 %v3779
        %5686 = vmatprep.subr.bf16.mxu0 0
        %5687 = vmatpush1.bf16.msra.mxu0 %v3782
        %5688 = vmatprep.subr.bf16.mxu0 0
        %5689 = vmatpush1.bf16.msra.mxu0 %v3785
        %5690 = vmatprep.subr.bf16.mxu0 0
        %5691 = vmatpush1.bf16.msra.mxu0 %v3788
        %5692 = vmatprep.subr.bf16.mxu0 0
        %5693 = vmatpush1.bf16.msra.mxu0 %v3791
        %5694 = vmatprep.subr.bf16.mxu0 0
        %5695 = vmatpush1.bf16.msra.mxu0 %v3794
        %5696 = vmatprep.subr.bf16.mxu0 0
        %5697 = vmatpush1.bf16.msra.mxu0 %v3797
        %5698 = vmatprep.subr.bf16.mxu0 0
        %5699 = vmatpush1.bf16.msra.mxu0 %v3800
        %5700 = vmatprep.subr.bf16.mxu0 0
        %5701 = vmatpush1.bf16.msra.mxu0 %v3803
        %5702 = vmatprep.subr.bf16.mxu0 0
        %5703 = vmatpush1.bf16.msra.mxu0 %v3806
        %5704 = vmatprep.subr.bf16.mxu0 0
        %5705 = vmatpush1.bf16.msra.mxu0 %v3809
        %5706 = vmatprep.subr.bf16.mxu0 0
        %5707 = vmatpush1.bf16.msra.mxu0 %v3812
        %5708 = vmatprep.subr.bf16.mxu0 0
        %5709 = vmatpush1.bf16.msra.mxu0 %v3815
        %5710 = vmatprep.mubr.bf16.mxu0 %v1427
        %5711 = vmatmul.mubr.bf16.gmra.mrb[0].mxu0 %v1426
        %v5712 = vpop.f32.mrb[0].mxu0
        %v5713 = vadd.f32 %v5673, %v5712
        %v5714 = vpop.f32.mrb[0].mxu0
        %v5715 = vpop.f32.mrb[0].mxu0
        %v5716 = vpop.f32.mrb[0].mxu0
        %5717 = vdwg.mxu0
        %5718 = vmatprep.subr.bf16.mxu0 0
        %5719 = vmatpush1.bf16.msra.mxu0 %v3818
        %5720 = vmatprep.subr.bf16.mxu0 0
        %5721 = vmatpush1.bf16.msra.mxu0 %v3821
        %5722 = vmatprep.subr.bf16.mxu0 0
        %5723 = vmatpush1.bf16.msra.mxu0 %v3824
        %5724 = vmatprep.subr.bf16.mxu0 0
        %5725 = vmatpush1.bf16.msra.mxu0 %v3827
        %5726 = vmatprep.subr.bf16.mxu0 0
        %5727 = vmatpush1.bf16.msra.mxu0 %v3830
        %5728 = vmatprep.subr.bf16.mxu0 0
        %5729 = vmatpush1.bf16.msra.mxu0 %v3833
        %5730 = vmatprep.subr.bf16.mxu0 0
        %5731 = vmatpush1.bf16.msra.mxu0 %v3836
        %5732 = vmatprep.subr.bf16.mxu0 0
        %5733 = vmatpush1.bf16.msra.mxu0 %v3839
        %5734 = vmatprep.subr.bf16.mxu0 0
        %5735 = vmatpush1.bf16.msra.mxu0 %v3842
        %5736 = vmatprep.subr.bf16.mxu0 0
        %5737 = vmatpush1.bf16.msra.mxu0 %v3845
        %5738 = vmatprep.subr.bf16.mxu0 0
        %5739 = vmatpush1.bf16.msra.mxu0 %v3848
        %5740 = vmatprep.subr.bf16.mxu0 0
        %5741 = vmatpush1.bf16.msra.mxu0 %v3851
        %5742 = vmatprep.subr.bf16.mxu0 0
        %5743 = vmatpush1.bf16.msra.mxu0 %v3854
        %5744 = vmatprep.subr.bf16.mxu0 0
        %5745 = vmatpush1.bf16.msra.mxu0 %v3857
        %5746 = vmatprep.subr.bf16.mxu0 0
        %5747 = vmatpush1.bf16.msra.mxu0 %v3860
        %5748 = vmatprep.subr.bf16.mxu0 0
        %5749 = vmatpush1.bf16.msra.mxu0 %v3863
        %5750 = vmatprep.mubr.bf16.mxu0 %v1429
        %5751 = vmatmul.mubr.bf16.gmra.mrb[0].mxu0 %v1428
        %v5752 = vpop.f32.mrb[0].mxu0
        %v5753 = vadd.f32 %v5713, %v5752
        %v5754 = vpop.f32.mrb[0].mxu0
        %v5755 = vpop.f32.mrb[0].mxu0
        %v5756 = vpop.f32.mrb[0].mxu0
        %5757 = vdwg.mxu0
        %5758 = vmatprep.subr.bf16.mxu0 0
        %5759 = vmatpush1.bf16.msra.mxu0 %v3866
        %5760 = vmatprep.subr.bf16.mxu0 0
        %5761 = vmatpush1.bf16.msra.mxu0 %v3869
        %5762 = vmatprep.subr.bf16.mxu0 0
        %5763 = vmatpush1.bf16.msra.mxu0 %v3872
        %5764 = vmatprep.subr.bf16.mxu0 0
        %5765 = vmatpush1.bf16.msra.mxu0 %v3875
        %5766 = vmatprep.subr.bf16.mxu0 0
        %5767 = vmatpush1.bf16.msra.mxu0 %v3878
        %5768 = vmatprep.subr.bf16.mxu0 0
        %5769 = vmatpush1.bf16.msra.mxu0 %v3881
        %5770 = vmatprep.subr.bf16.mxu0 0
        %5771 = vmatpush1.bf16.msra.mxu0 %v3884
        %5772 = vmatprep.subr.bf16.mxu0 0
        %5773 = vmatpush1.bf16.msra.mxu0 %v3887
        %5774 = vmatprep.subr.bf16.mxu0 0
        %5775 = vmatpush1.bf16.msra.mxu0 %v3890
        %5776 = vmatprep.subr.bf16.mxu0 0
        %5777 = vmatpush1.bf16.msra.mxu0 %v3893
        %5778 = vmatprep.subr.bf16.mxu0 0
        %5779 = vmatpush1.bf16.msra.mxu0 %v3896
        %5780 = vmatprep.subr.bf16.mxu0 0
        %5781 = vmatpush1.bf16.msra.mxu0 %v3899
        %5782 = vmatprep.subr.bf16.mxu0 0
        %5783 = vmatpush1.bf16.msra.mxu0 %v3902
        %5784 = vmatprep.subr.bf16.mxu0 0
        %5785 = vmatpush1.bf16.msra.mxu0 %v3905
        %5786 = vmatprep.subr.bf16.mxu0 0
        %5787 = vmatpush1.bf16.msra.mxu0 %v3908
        %5788 = vmatprep.subr.bf16.mxu0 0
        %5789 = vmatpush1.bf16.msra.mxu0 %v3911
        %5790 = vmatprep.mubr.bf16.mxu0 %v1431
        %5791 = vmatmul.mubr.bf16.gmra.mrb[0].mxu0 %v1430
        %v5792 = vpop.f32.mrb[0].mxu0
        %v5793 = vadd.f32 %v5753, %v5792
        %v5794 = vpop.f32.mrb[0].mxu0
        %v5795 = vpop.f32.mrb[0].mxu0
        %v5796 = vpop.f32.mrb[0].mxu0
        %5797 = vdwg.mxu0
        %5798 = vmatprep.subr.bf16.mxu0 0
        %5799 = vmatpush1.bf16.msra.mxu0 %v3914
        %5800 = vmatprep.subr.bf16.mxu0 0
        %5801 = vmatpush1.bf16.msra.mxu0 %v3917
        %5802 = vmatprep.subr.bf16.mxu0 0
        %5803 = vmatpush1.bf16.msra.mxu0 %v3920
        %5804 = vmatprep.subr.bf16.mxu0 0
        %5805 = vmatpush1.bf16.msra.mxu0 %v3923
        %5806 = vmatprep.subr.bf16.mxu0 0
        %5807 = vmatpush1.bf16.msra.mxu0 %v3926
        %5808 = vmatprep.subr.bf16.mxu0 0
        %5809 = vmatpush1.bf16.msra.mxu0 %v3929
        %5810 = vmatprep.subr.bf16.mxu0 0
        %5811 = vmatpush1.bf16.msra.mxu0 %v3932
        %5812 = vmatprep.subr.bf16.mxu0 0
        %5813 = vmatpush1.bf16.msra.mxu0 %v3935
        %5814 = vmatprep.subr.bf16.mxu0 0
        %5815 = vmatpush1.bf16.msra.mxu0 %v3938
        %5816 = vmatprep.subr.bf16.mxu0 0
        %5817 = vmatpush1.bf16.msra.mxu0 %v3941
        %5818 = vmatprep.subr.bf16.mxu0 0
        %5819 = vmatpush1.bf16.msra.mxu0 %v3944
        %5820 = vmatprep.subr.bf16.mxu0 0
        %5821 = vmatpush1.bf16.msra.mxu0 %v3947
        %5822 = vmatprep.subr.bf16.mxu0 0
        %5823 = vmatpush1.bf16.msra.mxu0 %v3950
        %5824 = vmatprep.subr.bf16.mxu0 0
        %5825 = vmatpush1.bf16.msra.mxu0 %v3953
        %5826 = vmatprep.subr.bf16.mxu0 0
        %5827 = vmatpush1.bf16.msra.mxu0 %v3956
        %5828 = vmatprep.subr.bf16.mxu0 0
        %5829 = vmatpush1.bf16.msra.mxu0 %v3959
        %5830 = vmatprep.mubr.bf16.mxu0 %v1433
        %5831 = vmatmul.mubr.bf16.gmra.mrb[0].mxu0 %v1432
        %v5832 = vpop.f32.mrb[0].mxu0
        %v5833 = vadd.f32 %v5793, %v5832
        %v5834 = vpop.f32.mrb[0].mxu0
        %v5835 = vpop.f32.mrb[0].mxu0
        %v5836 = vpop.f32.mrb[0].mxu0
        %5837 = vdwg.mxu0
        %5838 = vmatprep.subr.bf16.mxu0 0
        %5839 = vmatpush1.bf16.msra.mxu0 %v3962
        %5840 = vmatprep.subr.bf16.mxu0 0
        %5841 = vmatpush1.bf16.msra.mxu0 %v3965
        %5842 = vmatprep.subr.bf16.mxu0 0
        %5843 = vmatpush1.bf16.msra.mxu0 %v3968
        %5844 = vmatprep.subr.bf16.mxu0 0
        %5845 = vmatpush1.bf16.msra.mxu0 %v3971
        %5846 = vmatprep.subr.bf16.mxu0 0
        %5847 = vmatpush1.bf16.msra.mxu0 %v3974
        %5848 = vmatprep.subr.bf16.mxu0 0
        %5849 = vmatpush1.bf16.msra.mxu0 %v3977
        %5850 = vmatprep.subr.bf16.mxu0 0
        %5851 = vmatpush1.bf16.msra.mxu0 %v3980
        %5852 = vmatprep.subr.bf16.mxu0 0
        %5853 = vmatpush1.bf16.msra.mxu0 %v3983
        %5854 = vmatprep.subr.bf16.mxu0 0
        %5855 = vmatpush1.bf16.msra.mxu0 %v3986
        %5856 = vmatprep.subr.bf16.mxu0 0
        %5857 = vmatpush1.bf16.msra.mxu0 %v3989
        %5858 = vmatprep.subr.bf16.mxu0 0
        %5859 = vmatpush1.bf16.msra.mxu0 %v3992
        %5860 = vmatprep.subr.bf16.mxu0 0
        %5861 = vmatpush1.bf16.msra.mxu0 %v3995
        %5862 = vmatprep.subr.bf16.mxu0 0
        %5863 = vmatpush1.bf16.msra.mxu0 %v3998
        %5864 = vmatprep.subr.bf16.mxu0 0
        %5865 = vmatpush1.bf16.msra.mxu0 %v4001
        %5866 = vmatprep.subr.bf16.mxu0 0
        %5867 = vmatpush1.bf16.msra.mxu0 %v4004
        %5868 = vmatprep.subr.bf16.mxu0 0
        %5869 = vmatpush1.bf16.msra.mxu0 %v4007
        %5870 = vmatprep.mubr.bf16.mxu0 %v1435
        %5871 = vmatmul.mubr.bf16.gmra.mrb[0].mxu0 %v1434
        %v5872 = vpop.f32.mrb[0].mxu0
        %v5873 = vadd.f32 %v5833, %v5872
        %v5874 = vpop.f32.mrb[0].mxu0
        %v5875 = vpop.f32.mrb[0].mxu0
        %v5876 = vpop.f32.mrb[0].mxu0
        %5877 = vdwg.mxu0
        %5878 = vmatprep.subr.bf16.mxu0 0
        %5879 = vmatpush1.bf16.msra.mxu0 %v4010
        %5880 = vmatprep.subr.bf16.mxu0 0
        %5881 = vmatpush1.bf16.msra.mxu0 %v4013
        %5882 = vmatprep.subr.bf16.mxu0 0
        %5883 = vmatpush1.bf16.msra.mxu0 %v4016
        %5884 = vmatprep.subr.bf16.mxu0 0
        %5885 = vmatpush1.bf16.msra.mxu0 %v4019
        %5886 = vmatprep.subr.bf16.mxu0 0
        %5887 = vmatpush1.bf16.msra.mxu0 %v4022
        %5888 = vmatprep.subr.bf16.mxu0 0
        %5889 = vmatpush1.bf16.msra.mxu0 %v4025
        %5890 = vmatprep.subr.bf16.mxu0 0
        %5891 = vmatpush1.bf16.msra.mxu0 %v4028
        %5892 = vmatprep.subr.bf16.mxu0 0
        %5893 = vmatpush1.bf16.msra.mxu0 %v4031
        %5894 = vmatprep.subr.bf16.mxu0 0
        %5895 = vmatpush1.bf16.msra.mxu0 %v4034
        %5896 = vmatprep.subr.bf16.mxu0 0
        %5897 = vmatpush1.bf16.msra.mxu0 %v4037
        %5898 = vmatprep.subr.bf16.mxu0 0
        %5899 = vmatpush1.bf16.msra.mxu0 %v4040
        %5900 = vmatprep.subr.bf16.mxu0 0
        %5901 = vmatpush1.bf16.msra.mxu0 %v4043
        %5902 = vmatprep.subr.bf16.mxu0 0
        %5903 = vmatpush1.bf16.msra.mxu0 %v4046
        %5904 = vmatprep.subr.bf16.mxu0 0
        %5905 = vmatpush1.bf16.msra.mxu0 %v4049
        %5906 = vmatprep.subr.bf16.mxu0 0
        %5907 = vmatpush1.bf16.msra.mxu0 %v4052
        %5908 = vmatprep.subr.bf16.mxu0 0
        %5909 = vmatpush1.bf16.msra.mxu0 %v4055
        %5910 = vmatprep.mubr.bf16.mxu0 %v1437
        %5911 = vmatmul.mubr.bf16.gmra.mrb[0].mxu0 %v1436
        %v5912 = vpop.f32.mrb[0].mxu0
        %v5913 = vadd.f32 %v5873, %v5912
        %v5914 = vpop.f32.mrb[0].mxu0
        %v5915 = vpop.f32.mrb[0].mxu0
        %v5916 = vpop.f32.mrb[0].mxu0
        %5917 = vdwg.mxu0
        %5918 = vmatprep.subr.bf16.mxu0 0
        %5919 = vmatpush1.bf16.msra.mxu0 %v4058
        %5920 = vmatprep.subr.bf16.mxu0 0
        %5921 = vmatpush1.bf16.msra.mxu0 %v4061
        %5922 = vmatprep.subr.bf16.mxu0 0
        %5923 = vmatpush1.bf16.msra.mxu0 %v4064
        %5924 = vmatprep.subr.bf16.mxu0 0
        %5925 = vmatpush1.bf16.msra.mxu0 %v4067
        %5926 = vmatprep.subr.bf16.mxu0 0
        %5927 = vmatpush1.bf16.msra.mxu0 %v4070
        %5928 = vmatprep.subr.bf16.mxu0 0
        %5929 = vmatpush1.bf16.msra.mxu0 %v4073
        %5930 = vmatprep.subr.bf16.mxu0 0
        %5931 = vmatpush1.bf16.msra.mxu0 %v4076
        %5932 = vmatprep.subr.bf16.mxu0 0
        %5933 = vmatpush1.bf16.msra.mxu0 %v4079
        %5934 = vmatprep.subr.bf16.mxu0 0
        %5935 = vmatpush1.bf16.msra.mxu0 %v4082
        %5936 = vmatprep.subr.bf16.mxu0 0
        %5937 = vmatpush1.bf16.msra.mxu0 %v4085
        %5938 = vmatprep.subr.bf16.mxu0 0
        %5939 = vmatpush1.bf16.msra.mxu0 %v4088
        %5940 = vmatprep.subr.bf16.mxu0 0
        %5941 = vmatpush1.bf16.msra.mxu0 %v4091
        %5942 = vmatprep.subr.bf16.mxu0 0
        %5943 = vmatpush1.bf16.msra.mxu0 %v4094
        %5944 = vmatprep.subr.bf16.mxu0 0
        %5945 = vmatpush1.bf16.msra.mxu0 %v4097
        %5946 = vmatprep.subr.bf16.mxu0 0
        %5947 = vmatpush1.bf16.msra.mxu0 %v4100
        %5948 = vmatprep.subr.bf16.mxu0 0
        %5949 = vmatpush1.bf16.msra.mxu0 %v4103
        %5950 = vmatprep.mubr.bf16.mxu0 %v1439
        %5951 = vmatmul.mubr.bf16.gmra.mrb[0].mxu0 %v1438
        %v5952 = vpop.f32.mrb[0].mxu0
        %v5953 = vadd.f32 %v5913, %v5952
        %v5954 = vpop.f32.mrb[0].mxu0
        %v5955 = vpop.f32.mrb[0].mxu0
        %v5956 = vpop.f32.mrb[0].mxu0
        %5957 = vdwg.mxu0
        %5958 = vmatprep.subr.bf16.mxu0 0
        %5959 = vmatpush1.bf16.msra.mxu0 %v4106
        %5960 = vmatprep.subr.bf16.mxu0 0
        %5961 = vmatpush1.bf16.msra.mxu0 %v4109
        %5962 = vmatprep.subr.bf16.mxu0 0
        %5963 = vmatpush1.bf16.msra.mxu0 %v4112
        %5964 = vmatprep.subr.bf16.mxu0 0
        %5965 = vmatpush1.bf16.msra.mxu0 %v4115
        %5966 = vmatprep.subr.bf16.mxu0 0
        %5967 = vmatpush1.bf16.msra.mxu0 %v4118
        %5968 = vmatprep.subr.bf16.mxu0 0
        %5969 = vmatpush1.bf16.msra.mxu0 %v4121
        %5970 = vmatprep.subr.bf16.mxu0 0
        %5971 = vmatpush1.bf16.msra.mxu0 %v4124
        %5972 = vmatprep.subr.bf16.mxu0 0
        %5973 = vmatpush1.bf16.msra.mxu0 %v4127
        %5974 = vmatprep.subr.bf16.mxu0 0
        %5975 = vmatpush1.bf16.msra.mxu0 %v4130
        %5976 = vmatprep.subr.bf16.mxu0 0
        %5977 = vmatpush1.bf16.msra.mxu0 %v4133
        %5978 = vmatprep.subr.bf16.mxu0 0
        %5979 = vmatpush1.bf16.msra.mxu0 %v4136
        %5980 = vmatprep.subr.bf16.mxu0 0
        %5981 = vmatpush1.bf16.msra.mxu0 %v4139
        %5982 = vmatprep.subr.bf16.mxu0 0
        %5983 = vmatpush1.bf16.msra.mxu0 %v4142
        %5984 = vmatprep.subr.bf16.mxu0 0
        %5985 = vmatpush1.bf16.msra.mxu0 %v4145
        %5986 = vmatprep.subr.bf16.mxu0 0
        %5987 = vmatpush1.bf16.msra.mxu0 %v4148
        %5988 = vmatprep.subr.bf16.mxu0 0
        %5989 = vmatpush1.bf16.msra.mxu0 %v4151
        %5990 = vmatprep.mubr.bf16.mxu0 %v1441
        %5991 = vmatmul.mubr.bf16.gmra.mrb[0].mxu0 %v1440
        %v5992 = vpop.f32.mrb[0].mxu0
        %v5993 = vadd.f32 %v5953, %v5992
        %v5994 = vpop.f32.mrb[0].mxu0
        %v5995 = vpop.f32.mrb[0].mxu0
        %v5996 = vpop.f32.mrb[0].mxu0
        %5997 = vdwg.mxu0
        %5998 = vmatprep.subr.bf16.mxu0 0
        %5999 = vmatpush1.bf16.msra.mxu0 %v4154
        %6000 = vmatprep.subr.bf16.mxu0 0
        %6001 = vmatpush1.bf16.msra.mxu0 %v4157
        %6002 = vmatprep.subr.bf16.mxu0 0
        %6003 = vmatpush1.bf16.msra.mxu0 %v4160
        %6004 = vmatprep.subr.bf16.mxu0 0
        %6005 = vmatpush1.bf16.msra.mxu0 %v4163
        %6006 = vmatprep.subr.bf16.mxu0 0
        %6007 = vmatpush1.bf16.msra.mxu0 %v4166
        %6008 = vmatprep.subr.bf16.mxu0 0
        %6009 = vmatpush1.bf16.msra.mxu0 %v4169
        %6010 = vmatprep.subr.bf16.mxu0 0
        %6011 = vmatpush1.bf16.msra.mxu0 %v4172
        %6012 = vmatprep.subr.bf16.mxu0 0
        %6013 = vmatpush1.bf16.msra.mxu0 %v4175
        %6014 = vmatprep.subr.bf16.mxu0 0
        %6015 = vmatpush1.bf16.msra.mxu0 %v4178
        %6016 = vmatprep.subr.bf16.mxu0 0
        %6017 = vmatpush1.bf16.msra.mxu0 %v4181
        %6018 = vmatprep.subr.bf16.mxu0 0
        %6019 = vmatpush1.bf16.msra.mxu0 %v4184
        %6020 = vmatprep.subr.bf16.mxu0 0
        %6021 = vmatpush1.bf16.msra.mxu0 %v4187
        %6022 = vmatprep.subr.bf16.mxu0 0
        %6023 = vmatpush1.bf16.msra.mxu0 %v4190
        %6024 = vmatprep.subr.bf16.mxu0 0
        %6025 = vmatpush1.bf16.msra.mxu0 %v4193
        %6026 = vmatprep.subr.bf16.mxu0 0
        %6027 = vmatpush1.bf16.msra.mxu0 %v4196
        %6028 = vmatprep.subr.bf16.mxu0 0
        %6029 = vmatpush1.bf16.msra.mxu0 %v4199
        %6030 = vmatprep.mubr.bf16.mxu0 %v1443
        %6031 = vmatmul.mubr.bf16.gmra.mrb[0].mxu0 %v1442
        %v6032 = vpop.f32.mrb[0].mxu0
        %v6033 = vadd.f32 %v5993, %v6032
        %v6034 = vpop.f32.mrb[0].mxu0
        %v6035 = vpop.f32.mrb[0].mxu0
        %v6036 = vpop.f32.mrb[0].mxu0
        %6037 = vdwg.mxu0
        %6038 = vmatprep.subr.bf16.mxu0 0
        %6039 = vmatpush1.bf16.msra.mxu0 %v4202
        %6040 = vmatprep.subr.bf16.mxu0 0
        %6041 = vmatpush1.bf16.msra.mxu0 %v4205
        %6042 = vmatprep.subr.bf16.mxu0 0
        %6043 = vmatpush1.bf16.msra.mxu0 %v4208
        %6044 = vmatprep.subr.bf16.mxu0 0
        %6045 = vmatpush1.bf16.msra.mxu0 %v4211
        %6046 = vmatprep.subr.bf16.mxu0 0
        %6047 = vmatpush1.bf16.msra.mxu0 %v4214
        %6048 = vmatprep.subr.bf16.mxu0 0
        %6049 = vmatpush1.bf16.msra.mxu0 %v4217
        %6050 = vmatprep.subr.bf16.mxu0 0
        %6051 = vmatpush1.bf16.msra.mxu0 %v4220
        %6052 = vmatprep.subr.bf16.mxu0 0
        %6053 = vmatpush1.bf16.msra.mxu0 %v4223
        %6054 = vmatprep.subr.bf16.mxu0 0
        %6055 = vmatpush1.bf16.msra.mxu0 %v4226
        %6056 = vmatprep.subr.bf16.mxu0 0
        %6057 = vmatpush1.bf16.msra.mxu0 %v4229
        %6058 = vmatprep.subr.bf16.mxu0 0
        %6059 = vmatpush1.bf16.msra.mxu0 %v4232
        %6060 = vmatprep.subr.bf16.mxu0 0
        %6061 = vmatpush1.bf16.msra.mxu0 %v4235
        %6062 = vmatprep.subr.bf16.mxu0 0
        %6063 = vmatpush1.bf16.msra.mxu0 %v4238
        %6064 = vmatprep.subr.bf16.mxu0 0
        %6065 = vmatpush1.bf16.msra.mxu0 %v4241
        %6066 = vmatprep.subr.bf16.mxu0 0
        %6067 = vmatpush1.bf16.msra.mxu0 %v4244
        %6068 = vmatprep.subr.bf16.mxu0 0
        %6069 = vmatpush1.bf16.msra.mxu0 %v4247
        %6070 = vmatprep.mubr.bf16.mxu0 %v1445
        %6071 = vmatmul.mubr.bf16.gmra.mrb[0].mxu0 %v1444
        %v6072 = vpop.f32.mrb[0].mxu0
        %v6073 = vadd.f32 %v6033, %v6072
        %v6074 = vpop.f32.mrb[0].mxu0
        %v6075 = vpop.f32.mrb[0].mxu0
        %v6076 = vpop.f32.mrb[0].mxu0
        %6077 = vdwg.mxu0
        %6078 = vmatprep.subr.bf16.mxu0 0
        %6079 = vmatpush1.bf16.msra.mxu0 %v4250
        %6080 = vmatprep.subr.bf16.mxu0 0
        %6081 = vmatpush1.bf16.msra.mxu0 %v4253
        %6082 = vmatprep.subr.bf16.mxu0 0
        %6083 = vmatpush1.bf16.msra.mxu0 %v4256
        %6084 = vmatprep.subr.bf16.mxu0 0
        %6085 = vmatpush1.bf16.msra.mxu0 %v4259
        %6086 = vmatprep.subr.bf16.mxu0 0
        %6087 = vmatpush1.bf16.msra.mxu0 %v4262
        %6088 = vmatprep.subr.bf16.mxu0 0
        %6089 = vmatpush1.bf16.msra.mxu0 %v4265
        %6090 = vmatprep.subr.bf16.mxu0 0
        %6091 = vmatpush1.bf16.msra.mxu0 %v4268
        %6092 = vmatprep.subr.bf16.mxu0 0
        %6093 = vmatpush1.bf16.msra.mxu0 %v4271
        %6094 = vmatprep.subr.bf16.mxu0 0
        %6095 = vmatpush1.bf16.msra.mxu0 %v4274
        %6096 = vmatprep.subr.bf16.mxu0 0
        %6097 = vmatpush1.bf16.msra.mxu0 %v4277
        %6098 = vmatprep.subr.bf16.mxu0 0
        %6099 = vmatpush1.bf16.msra.mxu0 %v4280
        %6100 = vmatprep.subr.bf16.mxu0 0
        %6101 = vmatpush1.bf16.msra.mxu0 %v4283
        %6102 = vmatprep.subr.bf16.mxu0 0
        %6103 = vmatpush1.bf16.msra.mxu0 %v4286
        %6104 = vmatprep.subr.bf16.mxu0 0
        %6105 = vmatpush1.bf16.msra.mxu0 %v4289
        %6106 = vmatprep.subr.bf16.mxu0 0
        %6107 = vmatpush1.bf16.msra.mxu0 %v4292
        %6108 = vmatprep.subr.bf16.mxu0 0
        %6109 = vmatpush1.bf16.msra.mxu0 %v4295
        %6110 = vmatprep.mubr.bf16.mxu0 %v1447
        %6111 = vmatmul.mubr.bf16.gmra.mrb[0].mxu0 %v1446
        %v6112 = vpop.f32.mrb[0].mxu0
        %v6113 = vadd.f32 %v6073, %v6112
        %v6114 = vpop.f32.mrb[0].mxu0
        %v6115 = vpop.f32.mrb[0].mxu0
        %v6116 = vpop.f32.mrb[0].mxu0
        %6117 = vdwg.mxu0
        %6118 = vmatprep.subr.bf16.mxu0 0
        %6119 = vmatpush1.bf16.msra.mxu0 %v4298
        %6120 = vmatprep.subr.bf16.mxu0 0
        %6121 = vmatpush1.bf16.msra.mxu0 %v4301
        %6122 = vmatprep.subr.bf16.mxu0 0
        %6123 = vmatpush1.bf16.msra.mxu0 %v4304
        %6124 = vmatprep.subr.bf16.mxu0 0
        %6125 = vmatpush1.bf16.msra.mxu0 %v4307
        %6126 = vmatprep.subr.bf16.mxu0 0
        %6127 = vmatpush1.bf16.msra.mxu0 %v4310
        %6128 = vmatprep.subr.bf16.mxu0 0
        %6129 = vmatpush1.bf16.msra.mxu0 %v4313
        %6130 = vmatprep.subr.bf16.mxu0 0
        %6131 = vmatpush1.bf16.msra.mxu0 %v4316
        %6132 = vmatprep.subr.bf16.mxu0 0
        %6133 = vmatpush1.bf16.msra.mxu0 %v4319
        %6134 = vmatprep.subr.bf16.mxu0 0
        %6135 = vmatpush1.bf16.msra.mxu0 %v4322
        %6136 = vmatprep.subr.bf16.mxu0 0
        %6137 = vmatpush1.bf16.msra.mxu0 %v4325
        %6138 = vmatprep.subr.bf16.mxu0 0
        %6139 = vmatpush1.bf16.msra.mxu0 %v4328
        %6140 = vmatprep.subr.bf16.mxu0 0
        %6141 = vmatpush1.bf16.msra.mxu0 %v4331
        %6142 = vmatprep.subr.bf16.mxu0 0
        %6143 = vmatpush1.bf16.msra.mxu0 %v4334
        %6144 = vmatprep.subr.bf16.mxu0 0
        %6145 = vmatpush1.bf16.msra.mxu0 %v4337
        %6146 = vmatprep.subr.bf16.mxu0 0
        %6147 = vmatpush1.bf16.msra.mxu0 %v4340
        %6148 = vmatprep.subr.bf16.mxu0 0
        %6149 = vmatpush1.bf16.msra.mxu0 %v4343
        %6150 = vmatprep.mubr.bf16.mxu0 %v1449
        %6151 = vmatmul.mubr.bf16.gmra.mrb[0].mxu0 %v1448
        %v6152 = vpop.f32.mrb[0].mxu0
        %v6153 = vadd.f32 %v6113, %v6152
        %v6154 = vpop.f32.mrb[0].mxu0
        %v6155 = vpop.f32.mrb[0].mxu0
        %v6156 = vpop.f32.mrb[0].mxu0
        %6157 = vdwg.mxu0
        %6158 = vmatprep.subr.bf16.mxu0 0
        %6159 = vmatpush1.bf16.msra.mxu0 %v4346
        %6160 = vmatprep.subr.bf16.mxu0 0
        %6161 = vmatpush1.bf16.msra.mxu0 %v4349
        %6162 = vmatprep.subr.bf16.mxu0 0
        %6163 = vmatpush1.bf16.msra.mxu0 %v4352
        %6164 = vmatprep.subr.bf16.mxu0 0
        %6165 = vmatpush1.bf16.msra.mxu0 %v4355
        %6166 = vmatprep.subr.bf16.mxu0 0
        %6167 = vmatpush1.bf16.msra.mxu0 %v4358
        %6168 = vmatprep.subr.bf16.mxu0 0
        %6169 = vmatpush1.bf16.msra.mxu0 %v4361
        %6170 = vmatprep.subr.bf16.mxu0 0
        %6171 = vmatpush1.bf16.msra.mxu0 %v4364
        %6172 = vmatprep.subr.bf16.mxu0 0
        %6173 = vmatpush1.bf16.msra.mxu0 %v4367
        %6174 = vmatprep.subr.bf16.mxu0 0
        %6175 = vmatpush1.bf16.msra.mxu0 %v4370
        %6176 = vmatprep.subr.bf16.mxu0 0
        %6177 = vmatpush1.bf16.msra.mxu0 %v4373
        %6178 = vmatprep.subr.bf16.mxu0 0
        %6179 = vmatpush1.bf16.msra.mxu0 %v4376
        %6180 = vmatprep.subr.bf16.mxu0 0
        %6181 = vmatpush1.bf16.msra.mxu0 %v4379
        %6182 = vmatprep.subr.bf16.mxu0 0
        %6183 = vmatpush1.bf16.msra.mxu0 %v4382
        %6184 = vmatprep.subr.bf16.mxu0 0
        %6185 = vmatpush1.bf16.msra.mxu0 %v4385
        %6186 = vmatprep.subr.bf16.mxu0 0
        %6187 = vmatpush1.bf16.msra.mxu0 %v4388
        %6188 = vmatprep.subr.bf16.mxu0 0
        %6189 = vmatpush1.bf16.msra.mxu0 %v4391
        %6190 = vmatprep.mubr.bf16.mxu0 %v1451
        %6191 = vmatmul.mubr.bf16.gmra.mrb[0].mxu0 %v1450
        %v6192 = vpop.f32.mrb[0].mxu0
        %v6193 = vadd.f32 %v6153, %v6192
        %v6194 = vpop.f32.mrb[0].mxu0
        %v6195 = vpop.f32.mrb[0].mxu0
        %v6196 = vpop.f32.mrb[0].mxu0
        %6197 = vdwg.mxu0
        %v6198 = vadd.f32 %v469, %v5632
        %v6199 = vadd.f32 %v470, %v5634
        %v6200 = vadd.f32 %v471, %v6193
        %6201 = vst [vmem:[#allocation2] sm:$0xff] %v6198
        %6202 = vst [vmem:[#allocation2 + $0x8] sm:$0xff] %v6199
        %6203 = vst [vmem:[#allocation2 + $0x10] sm:$0xff] %v6200
        %p6204 = scmp.eq.s32.totalorder %s29, 1
        // Predicated region
        $region89: #{tpu_custom_call.1} parent=55 // pred_check
          %p6205 = pneg %p6204
        $region90: #{tpu_custom_call.1} parent=55 // pred_check_branch
          %6207 = sbr.rel (%p6205) target = $region92
        $region91: #{tpu_custom_call.1} parent=55 // pred_region
          %v6208 = vld [vmem:[#allocation2] sm:$0xff]
          %v6209 = vld [vmem:[#allocation2 + $0x8] sm:$0xff]
          %v6210 = vld [vmem:[#allocation2 + $0x10] sm:$0xff]
          %v6211 = vxor.u32 %v6208, 2147483648
          %v6212 = vmul.f32 %v6211, 1.442695
          %v6213 = vpow.pop %v6212
          %v6214 = vadd.f32 %v6213, 1.0
          %v6215 = vrcp.pop %v6214
          %v6216 = vmul.f32 1.0, %v6215
          %v6217 = vtanh.pop %v6209
          %v6218 = vxor.u32 %v6210, 2147483648
          %v6219 = vmul.f32 %v6218, 1.442695
          %v6220 = vpow.pop %v6219
          %v6221 = vadd.f32 %v6220, 1.0
          %v6222 = vrcp.pop %v6221
          %v6223 = vmul.f32 1.0, %v6222
          %v6224 = vmul.f32 %v6216, %v6217
          %v6225 = vtanh.pop %v6224
          %v6226 = vmul.f32 %v6223, %v6225
          %v6227 = vmax.f32 %v6226, 0.0
          %v6228 = vld [vmem:[%s3] sm:$0xff]
          %v6229 = vld [vmem:[%s3 + $0x8] sm:$0xff]
          %v6230 = vld [vmem:[%s3 + $0x10] sm:$0xff]
          %v6231 = vld [vmem:[%s3 + $0x18] sm:$0xff]
          %v6232 = vld [vmem:[%s3 + $0x20] sm:$0xff]
          %v6233 = vld [vmem:[%s3 + $0x28] sm:$0xff]
          %v6234 = vld [vmem:[%s3 + $0x30] sm:$0xff]
          %v6235 = vld [vmem:[%s3 + $0x38] sm:$0xff]
          %v6236 = vld [vmem:[%s3 + $0x40] sm:$0xff]
          %v6237 = vld [vmem:[%s3 + $0x48] sm:$0xff]
          %v6238 = vld [vmem:[%s3 + $0x50] sm:$0xff]
          %v6239 = vld [vmem:[%s3 + $0x58] sm:$0xff]
          %v6240 = vld [vmem:[%s3 + $0x60] sm:$0xff]
          %v6241 = vld [vmem:[%s3 + $0x68] sm:$0xff]
          %v6242 = vld [vmem:[%s3 + $0x70] sm:$0xff]
          %v6243 = vld [vmem:[%s3 + $0x78] sm:$0xff]
          %v6244 = vld [vmem:[#allocation9] sm:$0x1]
          %v6246 = vlaneseq
          %v6247 = vshrl.u32 %v6246, 7
          %v6248 = vsub.s32 0, %v6247
          %v6249 = vrot.slane %v6244, %v6248
          %6251 = vmatprep.subr.mxu0 0.0
          %6252 = vmatpush1.msra.mxu0 %v6228
          %6253 = vmatprep.subr.mxu0 0.0
          %6254 = vmatpush1.msra.mxu0 %v6229
          %6255 = vmatprep.subr.mxu0 0.0
          %6256 = vmatpush1.msra.mxu0 %v6230
          %6257 = vmatprep.subr.mxu0 0.0
          %6258 = vmatpush1.msra.mxu0 %v6231
          %6259 = vmatprep.subr.mxu0 0.0
          %6260 = vmatpush1.msra.mxu0 %v6232
          %6261 = vmatprep.subr.mxu0 0.0
          %6262 = vmatpush1.msra.mxu0 %v6233
          %6263 = vmatprep.subr.mxu0 0.0
          %6264 = vmatpush1.msra.mxu0 %v6234
          %6265 = vmatprep.subr.mxu0 0.0
          %6266 = vmatpush1.msra.mxu0 %v6235
          %6267 = vmatprep.subr.mxu0 0.0
          %6268 = vmatpush1.msra.mxu0 %v6236
          %6269 = vmatprep.subr.mxu0 0.0
          %6270 = vmatpush1.msra.mxu0 %v6237
          %6271 = vmatprep.subr.mxu0 0.0
          %6272 = vmatpush1.msra.mxu0 %v6238
          %6273 = vmatprep.subr.mxu0 0.0
          %6274 = vmatpush1.msra.mxu0 %v6239
          %6275 = vmatprep.subr.mxu0 0.0
          %6276 = vmatpush1.msra.mxu0 %v6240
          %6277 = vmatprep.subr.mxu0 0.0
          %6278 = vmatpush1.msra.mxu0 %v6241
          %6279 = vmatprep.subr.mxu0 0.0
          %6280 = vmatpush1.msra.mxu0 %v6242
          %6281 = vmatprep.subr.mxu0 0.0
          %6282 = vmatpush1.msra.mxu0 %v6243
          %6283 = vmatprep.subr.mxu0 0.0
          %6284 = vmatpush1.msra.mxu0 0.0
          %6285 = vmatprep.subr.mxu0 0.0
          %6286 = vmatpush1.msra.mxu0 0.0
          %6287 = vmatprep.subr.mxu0 0.0
          %6288 = vmatpush1.msra.mxu0 0.0
          %6289 = vmatprep.subr.mxu0 0.0
          %6290 = vmatpush1.msra.mxu0 0.0
          %6291 = vmatprep.subr.mxu0 0.0
          %6292 = vmatpush1.msra.mxu0 0.0
          %6293 = vmatprep.subr.mxu0 0.0
          %6294 = vmatpush1.msra.mxu0 0.0
          %6295 = vmatprep.subr.mxu0 0.0
          %6296 = vmatpush1.msra.mxu0 0.0
          %6297 = vmatprep.subr.mxu0 0.0
          %6298 = vmatpush1.msra.mxu0 0.0
          %6299 = vmatprep.subr.mxu0 0.0
          %6300 = vmatpush1.msra.mxu0 0.0
          %6301 = vmatprep.subr.mxu0 0.0
          %6302 = vmatpush1.msra.mxu0 0.0
          %6303 = vmatprep.subr.mxu0 0.0
          %6304 = vmatpush1.msra.mxu0 0.0
          %6305 = vmatprep.subr.mxu0 0.0
          %6306 = vmatpush1.msra.mxu0 0.0
          %6307 = vmatprep.subr.mxu0 0.0
          %6308 = vmatpush1.msra.mxu0 0.0
          %6309 = vmatprep.subr.mxu0 0.0
          %6310 = vmatpush1.msra.mxu0 0.0
          %6311 = vmatprep.subr.mxu0 0.0
          %6312 = vmatpush1.msra.mxu0 0.0
          %6313 = vmatprep.subr.mxu0 0.0
          %6314 = vmatpush1.msra.mxu0 0.0
          %6315 = vmatprep.mubr.f32.mxu0 0.0
          %6316 = vmatmul.mubr.f32.gmra.mrb[0].mxu0 %v6227
          %v6317 = vpop.f32.mrb[0].mxu0
          %v6318 = vadd.f32 %v6249, %v6317
          %v6319 = vpop.f32.mrb[0].mxu0
          %6320 = vdwg.mxu0
          %v6321 = vld [vmem:[%s5] sm:$0xff]
          %v6322 = vld [vmem:[%s5 + $0x8] sm:$0xff]
          %v6323 = vld [vmem:[%s5 + $0x10] sm:$0xff]
          %v6324 = vld [vmem:[%s5 + $0x18] sm:$0xff]
          %v6325 = vld [vmem:[%s5 + $0x20] sm:$0xff]
          %v6326 = vld [vmem:[%s5 + $0x28] sm:$0xff]
          %v6327 = vld [vmem:[%s5 + $0x30] sm:$0xff]
          %v6328 = vld [vmem:[%s5 + $0x38] sm:$0xff]
          %v6329 = vld [vmem:[#allocation11] sm:$0x1]
          %v6331 = vlaneseq
          %v6332 = vshrl.u32 %v6331, 7
          %v6333 = vsub.s32 0, %v6332
          %v6334 = vrot.slane %v6329, %v6333
          %vm6336 = vcmask 523264
          %v6338 = vsel %vm6336, %v6318, 0
          %6340 = vmatprep.subr.mxu0 0.0
          %6341 = vmatpush1.msra.mxu0 %v6321
          %6342 = vmatprep.subr.mxu0 0.0
          %6343 = vmatpush1.msra.mxu0 %v6322
          %6344 = vmatprep.subr.mxu0 0.0
          %6345 = vmatpush1.msra.mxu0 %v6323
          %6346 = vmatprep.subr.mxu0 0.0
          %6347 = vmatpush1.msra.mxu0 %v6324
          %6348 = vmatprep.subr.mxu0 0.0
          %6349 = vmatpush1.msra.mxu0 %v6325
          %6350 = vmatprep.subr.mxu0 0.0
          %6351 = vmatpush1.msra.mxu0 %v6326
          %6352 = vmatprep.subr.mxu0 0.0
          %6353 = vmatpush1.msra.mxu0 %v6327
          %6354 = vmatprep.subr.mxu0 0.0
          %6355 = vmatpush1.msra.mxu0 %v6328
          %6356 = vmatprep.subr.mxu0 0.0
          %6357 = vmatpush1.msra.mxu0 0.0
          %6358 = vmatprep.subr.mxu0 0.0
          %6359 = vmatpush1.msra.mxu0 0.0
          %6360 = vmatprep.subr.mxu0 0.0
          %6361 = vmatpush1.msra.mxu0 0.0
          %6362 = vmatprep.subr.mxu0 0.0
          %6363 = vmatpush1.msra.mxu0 0.0
          %6364 = vmatprep.subr.mxu0 0.0
          %6365 = vmatpush1.msra.mxu0 0.0
          %6366 = vmatprep.subr.mxu0 0.0
          %6367 = vmatpush1.msra.mxu0 0.0
          %6368 = vmatprep.subr.mxu0 0.0
          %6369 = vmatpush1.msra.mxu0 0.0
          %6370 = vmatprep.subr.mxu0 0.0
          %6371 = vmatpush1.msra.mxu0 0.0
          %6372 = vmatprep.subr.mxu0 0.0
          %6373 = vmatpush1.msra.mxu0 0.0
          %6374 = vmatprep.subr.mxu0 0.0
          %6375 = vmatpush1.msra.mxu0 0.0
          %6376 = vmatprep.subr.mxu0 0.0
          %6377 = vmatpush1.msra.mxu0 0.0
          %6378 = vmatprep.subr.mxu0 0.0
          %6379 = vmatpush1.msra.mxu0 0.0
          %6380 = vmatprep.subr.mxu0 0.0
          %6381 = vmatpush1.msra.mxu0 0.0
          %6382 = vmatprep.subr.mxu0 0.0
          %6383 = vmatpush1.msra.mxu0 0.0
          %6384 = vmatprep.subr.mxu0 0.0
          %6385 = vmatpush1.msra.mxu0 0.0
          %6386 = vmatprep.subr.mxu0 0.0
          %6387 = vmatpush1.msra.mxu0 0.0
          %6388 = vmatprep.subr.mxu0 0.0
          %6389 = vmatpush1.msra.mxu0 0.0
          %6390 = vmatprep.subr.mxu0 0.0
          %6391 = vmatpush1.msra.mxu0 0.0
          %6392 = vmatprep.subr.mxu0 0.0
          %6393 = vmatpush1.msra.mxu0 0.0
          %6394 = vmatprep.subr.mxu0 0.0
          %6395 = vmatpush1.msra.mxu0 0.0
          %6396 = vmatprep.subr.mxu0 0.0
          %6397 = vmatpush1.msra.mxu0 0.0
          %6398 = vmatprep.subr.mxu0 0.0
          %6399 = vmatpush1.msra.mxu0 0.0
          %6400 = vmatprep.subr.mxu0 0.0
          %6401 = vmatpush1.msra.mxu0 0.0
          %6402 = vmatprep.subr.mxu0 0.0
          %6403 = vmatpush1.msra.mxu0 0.0
          %6404 = vmatprep.mubr.f32.mxu0 0.0
          %6405 = vmatmul.mubr.f32.gmra.mrb[0].mxu0 %v6338
          %v6406 = vpop.f32.mrb[0].mxu0
          %v6407 = vadd.f32 %v6334, %v6406
          %v6408 = vpop.f32.mrb[0].mxu0
          %6409 = vdwg.mxu0
          %v6410 = vmax.f32 %v6407, 0.0
          %v6411 = vld [vmem:[#allocation12] sm:$0xff]
          %v6412 = vld [vmem:[#allocation12 + $0x8] sm:$0xff]
          %v6413 = vld [vmem:[#allocation12 + $0x10] sm:$0xff]
          %v6414 = vld [vmem:[#allocation12 + $0x18] sm:$0xff]
          %v6415 = vld [vmem:[#allocation14] sm:$0x1]
          %v6417 = vlaneseq
          %v6418 = vshrl.u32 %v6417, 7
          %v6419 = vsub.s32 0, %v6418
          %v6420 = vrot.slane %v6415, %v6419
          %vm6422 = vcmask 261120
          %v6424 = vsel %vm6422, %v6410, 0
          %6426 = vmatprep.subr.mxu0 0.0
          %6427 = vmatpush1.msra.mxu0 %v6411
          %6428 = vmatprep.subr.mxu0 0.0
          %6429 = vmatpush1.msra.mxu0 %v6412
          %6430 = vmatprep.subr.mxu0 0.0
          %6431 = vmatpush1.msra.mxu0 %v6413
          %6432 = vmatprep.subr.mxu0 0.0
          %6433 = vmatpush1.msra.mxu0 %v6414
          %6434 = vmatprep.subr.mxu0 0.0
          %6435 = vmatpush1.msra.mxu0 0.0
          %6436 = vmatprep.subr.mxu0 0.0
          %6437 = vmatpush1.msra.mxu0 0.0
          %6438 = vmatprep.subr.mxu0 0.0
          %6439 = vmatpush1.msra.mxu0 0.0
          %6440 = vmatprep.subr.mxu0 0.0
          %6441 = vmatpush1.msra.mxu0 0.0
          %6442 = vmatprep.subr.mxu0 0.0
          %6443 = vmatpush1.msra.mxu0 0.0
          %6444 = vmatprep.subr.mxu0 0.0
          %6445 = vmatpush1.msra.mxu0 0.0
          %6446 = vmatprep.subr.mxu0 0.0
          %6447 = vmatpush1.msra.mxu0 0.0
          %6448 = vmatprep.subr.mxu0 0.0
          %6449 = vmatpush1.msra.mxu0 0.0
          %6450 = vmatprep.subr.mxu0 0.0
          %6451 = vmatpush1.msra.mxu0 0.0
          %6452 = vmatprep.subr.mxu0 0.0
          %6453 = vmatpush1.msra.mxu0 0.0
          %6454 = vmatprep.subr.mxu0 0.0
          %6455 = vmatpush1.msra.mxu0 0.0
          %6456 = vmatprep.subr.mxu0 0.0
          %6457 = vmatpush1.msra.mxu0 0.0
          %6458 = vmatprep.subr.mxu0 0.0
          %6459 = vmatpush1.msra.mxu0 0.0
          %6460 = vmatprep.subr.mxu0 0.0
          %6461 = vmatpush1.msra.mxu0 0.0
          %6462 = vmatprep.subr.mxu0 0.0
          %6463 = vmatpush1.msra.mxu0 0.0
          %6464 = vmatprep.subr.mxu0 0.0
          %6465 = vmatpush1.msra.mxu0 0.0
          %6466 = vmatprep.subr.mxu0 0.0
          %6467 = vmatpush1.msra.mxu0 0.0
          %6468 = vmatprep.subr.mxu0 0.0
          %6469 = vmatpush1.msra.mxu0 0.0
          %6470 = vmatprep.subr.mxu0 0.0
          %6471 = vmatpush1.msra.mxu0 0.0
          %6472 = vmatprep.subr.mxu0 0.0
          %6473 = vmatpush1.msra.mxu0 0.0
          %6474 = vmatprep.subr.mxu0 0.0
          %6475 = vmatpush1.msra.mxu0 0.0
          %6476 = vmatprep.subr.mxu0 0.0
          %6477 = vmatpush1.msra.mxu0 0.0
          %6478 = vmatprep.subr.mxu0 0.0
          %6479 = vmatpush1.msra.mxu0 0.0
          %6480 = vmatprep.subr.mxu0 0.0
          %6481 = vmatpush1.msra.mxu0 0.0
          %6482 = vmatprep.subr.mxu0 0.0
          %6483 = vmatpush1.msra.mxu0 0.0
          %6484 = vmatprep.subr.mxu0 0.0
          %6485 = vmatpush1.msra.mxu0 0.0
          %6486 = vmatprep.subr.mxu0 0.0
          %6487 = vmatpush1.msra.mxu0 0.0
          %6488 = vmatprep.subr.mxu0 0.0
          %6489 = vmatpush1.msra.mxu0 0.0
          %6490 = vmatprep.mubr.f32.mxu0 0.0
          %6491 = vmatmul.mubr.f32.gmra.mrb[0].mxu0 %v6424
          %v6492 = vpop.f32.mrb[0].mxu0
          %v6493 = vadd.f32 %v6420, %v6492
          %v6494 = vpop.f32.mrb[0].mxu0
          %6495 = vdwg.mxu0
          %6496 = vst [vmem:[#allocation15] sm:$0xff] %v6493
        $region92: #{tpu_custom_call.1} parent=55 // pred_fallthru
          _
        // Predicated region
        $region93: #{tpu_custom_call.1} parent=55 // pred_check
          %p6497 = pneg %p241
        $region94: #{tpu_custom_call.1} parent=55 // pred_check_branch
          %6499 = sbr.rel (%p6497) target = $region96
        $region95: #{tpu_custom_call.1} parent=55 // pred_region
          %s6501 = ssub.s32 128, 128
          %6502 = vsyncadd [#allocation5], %s6501
          %s6504 = sshll.u32 [#allocation15], 4
          %s6505 = int_to_ptr.vmem [resolvable:$true] %s6504
          %6507 = dma.vmem_to_hbm [thread:$0]  %s6505, 128, %s9, [#allocation5]
        $region96: #{tpu_custom_call.1} parent=55 // pred_fallthru
          _
        // Predicated region
        $region97: #{tpu_custom_call.1} parent=55 // pred_check
          %p6508 = pneg %p241
        $region98: #{tpu_custom_call.1} parent=55 // pred_check_branch
          %6510 = sbr.rel (%p6508) target = $region100
        $region99: #{tpu_custom_call.1} parent=55 // pred_region
          %6511 = dma.done [#allocation5], 128
        $region100: #{tpu_custom_call.1} parent=55 // pred_fallthru
          _
      $region56: #{tpu_custom_call.1} parent=5 // pred_fallthru
        _
      %p6512 = scmp.le.s32.totalorder 2, %s24
      // Predicated region
      $region101: #{tpu_custom_call.1} parent=5 // pred_check
        %p6513 = pneg %p6512
      $region102: #{tpu_custom_call.1} parent=5 // pred_check_branch
        %6515 = sbr.rel (%p6513) target = $region104
      $region103: #{tpu_custom_call.1} parent=5 // pred_region
        %s6516 = ssub.s32 %s24, 2
      $region104: #{tpu_custom_call.1} parent=5 // pred_fallthru
        _
    $region6: #{tpu_custom_call.1} parent=1 // loop_footer
      %s28 = sadd.s32 1, %s24
    $region7: #{tpu_custom_call.1} parent=1 // loop_footer_branch
      %23 = sbr.rel target = $region3
    $region8: #{tpu_custom_call.1} parent=1 // loop_exit
      _
    %6517 = vsyncpa [#allocation4], 1
    %s6518 = scalar_lea.sflag [#allocation4], 1
    %6519 = vsyncpa %s6518, 1
    %6520 = vsyncpa [#allocation7], 1
    %s6521 = scalar_lea.sflag [#allocation7], 1
    %6522 = vsyncpa %s6521, 1
    %6523 = vsyncpa [#allocation10], 1
    %6524 = vsyncpa [#allocation13], 1
    %6525 = vsyncpa [#allocation5], 1
    %s6526 = scalar_lea.sflag [#allocation5], 1
    %6527 = vsyncpa %s6526, 1

</llo_original>
